<compile_context>
chip_gen: v5e
topology: v5e:2x2
jax: 0.10.0
libtpu: 0.0.40
codegen_flags: <defaults>
</compile_context>

<pallas_src>
import math
import functools

import jax
import jax.numpy as jnp
from jax.experimental import pallas as pl
from jax.experimental.pallas import tpu as pltpu

# ---------------- model hyper-parameters (small, consistent with the module) ----
D_MODEL = 32              # d_model
N_HEADS = 4               # number of attention heads
D_K = D_MODEL // N_HEADS  # d_k == d_v
HD = N_HEADS * D_K        # H * d_k == d_model here
D_FF = 64                 # feed-forward hidden size
N_LAYERS = 2              # num_decoder_layers
TARGET_VOCAB = 16         # target_len (embedding table rows)
EPS = 1e-5                # nn.LayerNorm default

# rows of the packed per-layer "small parameter" slab (L, 13, 128)
_R_LN0_G, _R_LN0_B = 0, 1     # LayerNorm after self-attention
_R_LN1_G, _R_LN1_B = 2, 3     # LayerNorm after cross-attention
_R_LN2_G, _R_LN2_B = 4, 5     # LayerNorm after FFN
_R_BO_SELF, _R_BO_CROSS = 6, 7
_R_BQKV_SELF = 8              # 3*HD = 96 lanes
_R_BQ_CROSS = 9               # HD   = 32 lanes
_R_FF_B1, _R_FF_B2 = 10, 11
_R_BKV_CROSS = 12             # [K bias (HD) | V bias (HD)] = 64 lanes


# ---------------------------- Pallas kernel -------------------------------------
def _decoder_stack_kernel(
    dec_ref, enc_ref, smask_ref, cmask_ref,
    wqkv_ref, wqc_ref, wkvc_ref, wo_ref, ffw1_ref, ffw2_ref, small_ref,
    out_ref, attn_ref,
    *, n_layers, n_heads, d_k, batch, s_dec, s_enc,
):
    H, dk, B = n_heads, d_k, batch
    Sd, Se = s_dec, s_enc
    Nd, Ne = B * Sd, B * Se
    HB = H * B
    scale = 1.0 / math.sqrt(float(dk))

    x = dec_ref[...]                       # (B*Sd, D)
    enc2 = enc_ref[...]                    # (B*Se, D)

    # Masks are layer-invariant: broadcast over heads ONCE (n = h*B + b).
    skeep = jnp.broadcast_to(smask_ref[0][None], (H, B, Sd, Sd)).reshape(HB, Sd, Sd)
    sbias = jnp.broadcast_to(smask_ref[1][None], (H, B, Sd, Sd)).reshape(HB, Sd, Sd)
    ckeep = jnp.broadcast_to(cmask_ref[0][None], (H, B, Sd, Se)).reshape(HB, Sd, Se)
    cbias = jnp.broadcast_to(cmask_ref[1][None], (H, B, Sd, Se)).reshape(HB, Sd, Se)

    def layer_norm(y, g, b):
        mu = jnp.mean(y, axis=-1, keepdims=True)
        var = jnp.mean((y - mu) * (y - mu), axis=-1, keepdims=True)
        return (y - mu) * jax.lax.rsqrt(var + EPS) * g + b

    def to_heads(y2, S):
        # (B*S, H*dk) -> (H*B, S, dk); per-head lane slices + leading reshape only.
        yh = jnp.stack([y2[:, h * dk:(h + 1) * dk] for h in range(H)], axis=0)
        return yh.reshape(H * B, S, dk)

    def merge_heads(ctx, S):
        # (H*B, S, dk) -> (B*S, H*dk) head-major concat (matches W_O row order).
        ctx_h = ctx.reshape(H, B * S, dk)
        return jnp.concatenate([ctx_h[h] for h in range(H)], axis=-1)

    def attention(Qb, Kb, Vb, keep, bias):
        # Qb: (HB, Sq, dk), Kb/Vb: (HB, Sk, dk)
        scores = jnp.einsum('nqd,nkd->nqk', Qb, Kb,
                            preferred_element_type=jnp.float32) * scale
        scores = scores * keep + bias                 # exact masked_fill(mask, -1e9)
        scores = scores - jnp.max(scores, axis=-1, keepdims=True)
        e = jnp.exp(scores)
        attn = e / jnp.sum(e, axis=-1, keepdims=True)  # (HB, Sq, Sk)
        ctx = jnp.einsum('nqk,nkd->nqd', attn, Vb,
                         preferred_element_type=jnp.float32)
        return attn, ctx

    # Hoisted, lane-dense (N = L*2*H*dk = 128) cross K/V projection for ALL layers.
    kv_cross_all = jnp.dot(enc2, wkvc_ref[...],
                           preferred_element_type=jnp.float32)   # (Ne, L*2*HD)

    for l in range(n_layers):   # static unroll (L small); activations stay in VMEM
        sm = small_ref[l]       # (13, 128) packed LN params + biases of this layer

        # ---- 1) masked self-attention (fused QKV matmul) + Add & Norm ----------
        qkv = (jnp.dot(x, wqkv_ref[l], preferred_element_type=jnp.float32)
               + sm[_R_BQKV_SELF, :3 * HD])                       # (Nd, 3*HD)
        Qb = to_heads(qkv[:, 0 * HD:1 * HD], Sd)
        Kb = to_heads(qkv[:, 1 * HD:2 * HD], Sd)
        Vb = to_heads(qkv[:, 2 * HD:3 * HD], Sd)
        sattn, sctx = attention(Qb, Kb, Vb, skeep, sbias)
        sa_out = (jnp.dot(merge_heads(sctx, Sd), wo_ref[2 * l + 0],
                          preferred_element_type=jnp.float32)
                  + sm[_R_BO_SELF, :D_MODEL])
        h1 = layer_norm(sa_out + x, sm[_R_LN0_G, :D_MODEL], sm[_R_LN0_B, :D_MODEL])

        # ---- 2) encoder-decoder attention (hoisted K/V) + Add & Norm -----------
        q_c = (jnp.dot(h1, wqc_ref[l], preferred_element_type=jnp.float32)
               + sm[_R_BQ_CROSS, :HD])                            # (Nd, HD)
        kv_l = kv_cross_all[:, l * 2 * HD:(l + 1) * 2 * HD] + sm[_R_BKV_CROSS, :2 * HD]
        Qcb = to_heads(q_c, Sd)
        Kcb = to_heads(kv_l[:, :HD], Se)
        Vcb = to_heads(kv_l[:, HD:], Se)
        cattn, cctx = attention(Qcb, Kcb, Vcb, ckeep, cbias)
        ca_out = (jnp.dot(merge_heads(cctx, Sd), wo_ref[2 * l + 1],
                          preferred_element_type=jnp.float32)
                  + sm[_R_BO_CROSS, :D_MODEL])
        h2 = layer_norm(ca_out + h1, sm[_R_LN1_G, :D_MODEL], sm[_R_LN1_B, :D_MODEL])

        # ---- 3) position-wise feed-forward + Add & Norm ------------------------
        ff = (jnp.dot(h2, ffw1_ref[l], preferred_element_type=jnp.float32)
              + sm[_R_FF_B1, :D_FF])
        ff = jnp.maximum(ff, 0.0)
        ff = (jnp.dot(ff, ffw2_ref[l], preferred_element_type=jnp.float32)
              + sm[_R_FF_B2, :D_MODEL])
        x = layer_norm(ff + h2, sm[_R_LN2_G, :D_MODEL], sm[_R_LN2_B, :D_MODEL])

        # ---- lane-dense attention-probability store (one (Sd, 128) store) ------
        pieces = [sattn[n] for n in range(HB)] + [cattn[n] for n in range(HB)]
        attn_ref[l] = jnp.concatenate(pieces, axis=-1)   # (Sd, HB*Sd + HB*Se)

    out_ref[...] = x


def run_decoder_stack(dec2d, enc2d, smask, cmask, params, *, batch, s_dec, s_enc):
    kernel = functools.partial(
        _decoder_stack_kernel, n_layers=N_LAYERS, n_heads=N_HEADS, d_k=D_K,
        batch=batch, s_dec=s_dec, s_enc=s_enc)

    inputs = [
        dec2d, enc2d, smask, cmask,
        params["w_qkv_self"], params["w_q_cross"], params["w_kv_cross"],
        params["w_o"], params["ff_w1"], params["ff_w2"], params["small"],
    ]

    HB = N_HEADS * batch
    out_shape = (
        jax.ShapeDtypeStruct((batch * s_dec, D_MODEL), jnp.float32),
        jax.ShapeDtypeStruct((N_LAYERS, s_dec, HB * (s_dec + s_enc)), jnp.float32),
    )

    # Advisory cost estimate (the kernel is overhead-bound at this size).
    Nd, Ne = batch * s_dec, batch * s_enc
    flops = 2 * Ne * D_MODEL * (N_LAYERS * 2 * HD)               # hoisted cross K/V
    for _ in range(N_LAYERS):
        flops += 2 * Nd * D_MODEL * 3 * HD                       # fused self QKV
        flops += 2 * Nd * D_MODEL * HD                           # cross Q
        flops += 2 * 2 * HB * s_dec * s_dec * D_K                # self scores+context
        flops += 2 * 2 * HB * s_dec * s_enc * D_K                # cross scores+context
        flops += 2 * 2 * Nd * HD * D_MODEL                       # two W_O matmuls
        flops += 2 * 2 * Nd * D_MODEL * D_FF                     # FFN matmuls
    transcendentals = N_LAYERS * HB * s_dec * (s_dec + s_enc)    # softmax exp
    bytes_accessed = 4 * (sum(int(a.size) for a in inputs)
                          + sum(math.prod(s.shape) for s in out_shape))

    vmem = pl.BlockSpec(memory_space=pltpu.MemorySpace.VMEM)
    return pl.pallas_call(
        kernel,
        in_specs=[vmem] * len(inputs),
        out_specs=(vmem, vmem),
        out_shape=out_shape,
        compiler_params=pltpu.CompilerParams(vmem_limit_bytes=32 * 1024 * 1024),
        cost_estimate=pl.CostEstimate(flops=int(flops),
                                      transcendentals=int(transcendentals),
                                      bytes_accessed=int(bytes_accessed)),
    )(*inputs)
    # TODO(synk): on v7x, add a 2-way "parallel" grid (batch/head split) to use the
    # second TensorCore; at this toy size the gridless monolith is the right call.


# ---------------------------- JAX glue (embedding / PE / masks) -----------------
def positional_encoding(seq_len, d_model):
    pos = jnp.arange(seq_len, dtype=jnp.float32)[:, None]
    div = jnp.exp(jnp.arange(0, d_model, 2, dtype=jnp.float32)
                  * (-math.log(10000.0) / d_model))
    pe = jnp.zeros((seq_len, d_model), jnp.float32)
    pe = pe.at[:, 0::2].set(jnp.sin(pos * div))
    pe = pe.at[:, 1::2].set(jnp.cos(pos * div))
    return pe


def get_attn_pad_mask(seq_q, seq_k):
    B, Lq = seq_q.shape
    Lk = seq_k.shape[1]
    pad = (seq_k == 0)[:, None, :]                       # token id 0 == <pad>
    return jnp.broadcast_to(pad, (B, Lq, Lk)).astype(jnp.int32)


def get_attn_subsequent_mask(seq):
    B, L = seq.shape
    sub = jnp.triu(jnp.ones((L, L), jnp.int32), k=1)
    return jnp.broadcast_to(sub[None], (B, L, L)).astype(jnp.int32)


def init_params(key):
    def lin(k, fan_in, shape):
        return jax.random.normal(k, shape, jnp.float32) / math.sqrt(fan_in)

    def pad_row(vec):
        return jnp.zeros((128,), jnp.float32).at[:vec.shape[0]].set(vec)

    wqkv_s, wq_c, wkv_c_blocks, wo, ffw1, ffw2, smalls = [], [], [], [], [], [], []
    ones_d = jnp.ones((D_MODEL,), jnp.float32)
    zeros_d = jnp.zeros((D_MODEL,), jnp.float32)
    for l in range(N_LAYERS):
        ks = jax.random.split(jax.random.fold_in(key, l), 10)
        # self-attention: fused QKV weight slab (D, 3*HD), head-major columns
        wq = lin(ks[0], D_MODEL, (D_MODEL, HD))
        wk = lin(ks[1], D_MODEL, (D_MODEL, HD))
        wv = lin(ks[2], D_MODEL, (D_MODEL, HD))
        wqkv_s.append(jnp.concatenate([wq, wk, wv], axis=1))
        wo.append(lin(ks[3], HD, (HD, D_MODEL)))             # W_O self
        # cross-attention: Q per layer, K/V packed across layers (lane-dense hoist)
        wq_c.append(lin(ks[4], D_MODEL, (D_MODEL, HD)))
        wk_cl = lin(ks[5], D_MODEL, (D_MODEL, HD))
        wv_cl = lin(ks[6], D_MODEL, (D_MODEL, HD))
        wkv_c_blocks.append(jnp.concatenate([wk_cl, wv_cl], axis=1))   # (D, 2*HD)
        wo.append(lin(ks[7], HD, (HD, D_MODEL)))             # W_O cross
        # FFN
        ffw1.append(lin(ks[8], D_MODEL, (D_MODEL, D_FF)))
        ffw2.append(lin(ks[9], D_FF, (D_FF, D_MODEL)))
        # packed (13, 128) slab: LN gammas/betas + all biases (zero-init biases)
        smalls.append(jnp.stack([
            pad_row(ones_d), pad_row(zeros_d),                         # LN post-self
            pad_row(ones_d), pad_row(zeros_d),                         # LN post-cross
            pad_row(ones_d), pad_row(zeros_d),                         # LN post-FFN
            pad_row(jnp.zeros((D_MODEL,), jnp.float32)),               # b_o self
            pad_row(jnp.zeros((D_MODEL,), jnp.float32)),               # b_o cross
            pad_row(jnp.zeros((3 * HD,), jnp.float32)),                # b_qkv self
            pad_row(jnp.zeros((HD,), jnp.float32)),                    # b_q cross
            pad_row(jnp.zeros((D_FF,), jnp.float32)),                  # ff b1
            pad_row(jnp.zeros((D_MODEL,), jnp.float32)),               # ff b2
            pad_row(jnp.zeros((2 * HD,), jnp.float32)),                # cross K/V bias
        ], axis=0))

    embedding = jax.random.normal(jax.random.fold_in(key, 12345),
                                  (TARGET_VOCAB, D_MODEL), jnp.float32)
    return dict(
        embedding=embedding,
        w_qkv_self=jnp.stack(wqkv_s),                   # (L, D, 3*HD)
        w_q_cross=jnp.stack(wq_c),                      # (L, D, HD)
        w_kv_cross=jnp.concatenate(wkv_c_blocks, 1),    # (D, L*2*HD) == (32, 128)
        w_o=jnp.stack(wo),                              # (2*L, HD, D)
        ff_w1=jnp.stack(ffw1),                          # (L, D, F)
        ff_w2=jnp.stack(ffw2),                          # (L, F, D)
        small=jnp.stack(smalls),                        # (L, 13, 128)
    )


@jax.jit
def decoder_forward(decoder_inputs, encoder_inputs, encoder_outputs, params):
    B, S = decoder_inputs.shape
    Se = encoder_inputs.shape[1]
    HB = N_HEADS * B

    # target embedding (gather) + sinusoidal positional encoding -- glue in JAX
    dec = params["embedding"][decoder_inputs] + positional_encoding(S, D_MODEL)[None]
    # TODO(synk): dropout inside PositionalEncoding is omitted (inference / eval mode).

    self_mask = (get_attn_pad_mask(decoder_inputs, decoder_inputs)
                 + get_attn_subsequent_mask(decoder_inputs)) > 0          # (B, S, S)
    cross_mask = get_attn_pad_mask(decoder_inputs, encoder_inputs) > 0    # (B, S, Se)

    def mask_pack(m):     # bool (B, Sq, Sk) -> (2, B, Sq, Sk) stacked [keep, bias]
        keep = jnp.where(m, 0.0, 1.0).astype(jnp.float32)
        bias = jnp.where(m, -1e9, 0.0).astype(jnp.float32)
        return jnp.stack([keep, bias], axis=0)

    out2d, attn_out = run_decoder_stack(
        dec.reshape(B * S, D_MODEL),
        encoder_outputs.reshape(B * Se, D_MODEL),
        mask_pack(self_mask), mask_pack(cross_mask), params,
        batch=B, s_dec=S, s_enc=Se)

    dec_out = out2d.reshape(B, S, D_MODEL)
    # attn_out: (L, Sq, HB*S + HB*Se), flat index = (h*B + b)*Sk + k
    sflat = attn_out[:, :, : HB * S]
    cflat = attn_out[:, :, HB * S:]
    sattn = sflat.reshape(N_LAYERS, S, N_HEADS, B, S).transpose(0, 3, 2, 1, 4)
    cattn = cflat.reshape(N_LAYERS, S, N_HEADS, B, Se).transpose(0, 3, 2, 1, 4)
    self_attns = [sattn[l] for l in range(N_LAYERS)]
    cross_attns = [cattn[l] for l in range(N_LAYERS)]
    return dec_out, self_attns, cross_attns


if __name__ == "__main__":
    key = jax.random.PRNGKey(0)
    B, S, Se = 2, 8, 8
    k1, k2, k3, k4 = jax.random.split(key, 4)

    decoder_inputs = jax.random.randint(k1, (B, S), 0, TARGET_VOCAB, dtype=jnp.int32)
    encoder_inputs = jax.random.randint(k2, (B, Se), 0, TARGET_VOCAB, dtype=jnp.int32)
    encoder_outputs = jax.random.normal(k3, (B, Se, D_MODEL), jnp.float32)
    params = init_params(k4)

    out, self_attns, cross_attns = decoder_forward(
        decoder_inputs, encoder_inputs, encoder_outputs, params)

    jax.block_until_ready(out)
    for a in self_attns + cross_attns:
        jax.block_until_ready(a)

    assert out.shape == (B, S, D_MODEL)
    assert self_attns[0].shape == (B, N_HEADS, S, S)
    assert cross_attns[0].shape == (B, N_HEADS, S, Se)
    assert bool(jnp.all(jnp.isfinite(out)))
    print("KERNEL_OK")
</pallas_src>

<mosaic_0001>
module attributes {stable_mosaic.version = 11 : i64} {
  func.func @_decoder_stack_kernel(%arg0: memref<16x32xf32, #tpu.memory_space<vmem>>, %arg1: memref<16x32xf32, #tpu.memory_space<vmem>>, %arg2: memref<2x2x8x8xf32, #tpu.memory_space<vmem>>, %arg3: memref<2x2x8x8xf32, #tpu.memory_space<vmem>>, %arg4: memref<2x32x96xf32, #tpu.memory_space<vmem>>, %arg5: memref<2x32x32xf32, #tpu.memory_space<vmem>>, %arg6: memref<32x128xf32, #tpu.memory_space<vmem>>, %arg7: memref<4x32x32xf32, #tpu.memory_space<vmem>>, %arg8: memref<2x32x64xf32, #tpu.memory_space<vmem>>, %arg9: memref<2x64x32xf32, #tpu.memory_space<vmem>>, %arg10: memref<2x13x128xf32, #tpu.memory_space<vmem>>, %arg11: memref<16x32xf32, #tpu.memory_space<vmem>>, %arg12: memref<2x8x128xf32, #tpu.memory_space<vmem>>) attributes {dimension_semantics = [], scalar_prefetch = 0 : i64, scratch_operands = 0 : i64, tpu.core_type = #tpu.core_type<tc>} {
    %c0 = arith.constant 0 : index
    %c0_0 = arith.constant 0 : index
    %0 = vector.load %arg0[%c0, %c0_0] : memref<16x32xf32, #tpu.memory_space<vmem>>, vector<16x32xf32>
    %c0_1 = arith.constant 0 : index
    %c0_2 = arith.constant 0 : index
    %1 = vector.load %arg1[%c0_1, %c0_2] : memref<16x32xf32, #tpu.memory_space<vmem>>, vector<16x32xf32>
    %c0_3 = arith.constant 0 : index
    %c0_4 = arith.constant 0 : index
    %c0_5 = arith.constant 0 : index
    %c0_6 = arith.constant 0 : index
    %2 = vector.load %arg2[%c0_3, %c0_4, %c0_5, %c0_6] : memref<2x2x8x8xf32, #tpu.memory_space<vmem>>, vector<1x2x8x8xf32>
    %3 = vector.shape_cast %2 : vector<1x2x8x8xf32> to vector<2x8x8xf32>
    %4 = vector.shape_cast %3 : vector<2x8x8xf32> to vector<1x2x8x8xf32>
    %5 = vector.shape_cast %4 : vector<1x2x8x8xf32> to vector<1x2x8x8xf32>
    %6 = vector.broadcast %5 : vector<1x2x8x8xf32> to vector<4x2x8x8xf32>
    %7 = vector.shape_cast %6 : vector<4x2x8x8xf32> to vector<8x8x8xf32>
    %c1 = arith.constant 1 : index
    %c0_7 = arith.constant 0 : index
    %c0_8 = arith.constant 0 : index
    %c0_9 = arith.constant 0 : index
    %8 = vector.load %arg2[%c1, %c0_7, %c0_8, %c0_9] : memref<2x2x8x8xf32, #tpu.memory_space<vmem>>, vector<1x2x8x8xf32>
    %9 = vector.shape_cast %8 : vector<1x2x8x8xf32> to vector<2x8x8xf32>
    %10 = vector.shape_cast %9 : vector<2x8x8xf32> to vector<1x2x8x8xf32>
    %11 = vector.shape_cast %10 : vector<1x2x8x8xf32> to vector<1x2x8x8xf32>
    %12 = vector.broadcast %11 : vector<1x2x8x8xf32> to vector<4x2x8x8xf32>
    %13 = vector.shape_cast %12 : vector<4x2x8x8xf32> to vector<8x8x8xf32>
    %c0_10 = arith.constant 0 : index
    %c0_11 = arith.constant 0 : index
    %c0_12 = arith.constant 0 : index
    %c0_13 = arith.constant 0 : index
    %14 = vector.load %arg3[%c0_10, %c0_11, %c0_12, %c0_13] : memref<2x2x8x8xf32, #tpu.memory_space<vmem>>, vector<1x2x8x8xf32>
    %15 = vector.shape_cast %14 : vector<1x2x8x8xf32> to vector<2x8x8xf32>
    %16 = vector.shape_cast %15 : vector<2x8x8xf32> to vector<1x2x8x8xf32>
    %17 = vector.shape_cast %16 : vector<1x2x8x8xf32> to vector<1x2x8x8xf32>
    %18 = vector.broadcast %17 : vector<1x2x8x8xf32> to vector<4x2x8x8xf32>
    %19 = vector.shape_cast %18 : vector<4x2x8x8xf32> to vector<8x8x8xf32>
    %c1_14 = arith.constant 1 : index
    %c0_15 = arith.constant 0 : index
    %c0_16 = arith.constant 0 : index
    %c0_17 = arith.constant 0 : index
    %20 = vector.load %arg3[%c1_14, %c0_15, %c0_16, %c0_17] : memref<2x2x8x8xf32, #tpu.memory_space<vmem>>, vector<1x2x8x8xf32>
    %21 = vector.shape_cast %20 : vector<1x2x8x8xf32> to vector<2x8x8xf32>
    %22 = vector.shape_cast %21 : vector<2x8x8xf32> to vector<1x2x8x8xf32>
    %23 = vector.shape_cast %22 : vector<1x2x8x8xf32> to vector<1x2x8x8xf32>
    %24 = vector.broadcast %23 : vector<1x2x8x8xf32> to vector<4x2x8x8xf32>
    %25 = vector.shape_cast %24 : vector<4x2x8x8xf32> to vector<8x8x8xf32>
    %c0_18 = arith.constant 0 : index
    %c0_19 = arith.constant 0 : index
    %26 = vector.load %arg6[%c0_18, %c0_19] : memref<32x128xf32, #tpu.memory_space<vmem>>, vector<32x128xf32>
    %cst = arith.constant dense<0.000000e+00> : vector<16x128xf32>
    %27 = tpu.matmul %1, %26, %cst {dimension_numbers = #tpu.dot_dimension_numbers<[1], [0], [0], [1], [0, 0, 1, 1], [], []>} : vector<16x32xf32>, vector<32x128xf32>, vector<16x128xf32> -> vector<16x128xf32>
    %c0_20 = arith.constant 0 : index
    %c0_21 = arith.constant 0 : index
    %c0_22 = arith.constant 0 : index
    %28 = vector.load %arg10[%c0_20, %c0_21, %c0_22] : memref<2x13x128xf32, #tpu.memory_space<vmem>>, vector<1x13x128xf32>
    %29 = vector.shape_cast %28 : vector<1x13x128xf32> to vector<13x128xf32>
    %c0_23 = arith.constant 0 : index
    %c0_24 = arith.constant 0 : index
    %c0_25 = arith.constant 0 : index
    %30 = vector.load %arg4[%c0_23, %c0_24, %c0_25] : memref<2x32x96xf32, #tpu.memory_space<vmem>>, vector<1x32x96xf32>
    %31 = vector.shape_cast %30 : vector<1x32x96xf32> to vector<32x96xf32>
    %cst_26 = arith.constant dense<0.000000e+00> : vector<16x96xf32>
    %32 = tpu.matmul %0, %31, %cst_26 {dimension_numbers = #tpu.dot_dimension_numbers<[1], [0], [0], [1], [0, 0, 1, 1], [], []>} : vector<16x32xf32>, vector<32x96xf32>, vector<16x96xf32> -> vector<16x96xf32>
    %33 = vector.extract_strided_slice %29 {offsets = [8, 0], sizes = [1, 96], strides = [1, 1]} : vector<13x128xf32> to vector<1x96xf32>
    %34 = vector.shape_cast %33 : vector<1x96xf32> to vector<96xf32>
    %35 = vector.shape_cast %34 : vector<96xf32> to vector<1x96xf32>
    %36 = vector.broadcast %35 : vector<1x96xf32> to vector<16x96xf32>
    %37 = arith.addf %32, %36 : vector<16x96xf32>
    %38 = vector.extract_strided_slice %37 {offsets = [0, 0], sizes = [16, 32], strides = [1, 1]} : vector<16x96xf32> to vector<16x32xf32>
    %39 = vector.extract_strided_slice %38 {offsets = [0, 0], sizes = [16, 8], strides = [1, 1]} : vector<16x32xf32> to vector<16x8xf32>
    %40 = vector.extract_strided_slice %38 {offsets = [0, 8], sizes = [16, 8], strides = [1, 1]} : vector<16x32xf32> to vector<16x8xf32>
    %41 = vector.extract_strided_slice %38 {offsets = [0, 16], sizes = [16, 8], strides = [1, 1]} : vector<16x32xf32> to vector<16x8xf32>
    %42 = vector.extract_strided_slice %38 {offsets = [0, 24], sizes = [16, 8], strides = [1, 1]} : vector<16x32xf32> to vector<16x8xf32>
    %43 = vector.shape_cast %39 : vector<16x8xf32> to vector<1x16x8xf32>
    %44 = vector.shape_cast %40 : vector<16x8xf32> to vector<1x16x8xf32>
    %45 = vector.shape_cast %41 : vector<16x8xf32> to vector<1x16x8xf32>
    %46 = vector.shape_cast %42 : vector<16x8xf32> to vector<1x16x8xf32>
    %47 = tpu.concatenate %43, %44, %45, %46 in 0 : vector<1x16x8xf32>, vector<1x16x8xf32>, vector<1x16x8xf32>, vector<1x16x8xf32> -> vector<4x16x8xf32>
    %48 = vector.shape_cast %47 : vector<4x16x8xf32> to vector<8x8x8xf32>
    %49 = vector.extract_strided_slice %37 {offsets = [0, 32], sizes = [16, 32], strides = [1, 1]} : vector<16x96xf32> to vector<16x32xf32>
    %50 = vector.extract_strided_slice %49 {offsets = [0, 0], sizes = [16, 8], strides = [1, 1]} : vector<16x32xf32> to vector<16x8xf32>
    %51 = vector.extract_strided_slice %49 {offsets = [0, 8], sizes = [16, 8], strides = [1, 1]} : vector<16x32xf32> to vector<16x8xf32>
    %52 = vector.extract_strided_slice %49 {offsets = [0, 16], sizes = [16, 8], strides = [1, 1]} : vector<16x32xf32> to vector<16x8xf32>
    %53 = vector.extract_strided_slice %49 {offsets = [0, 24], sizes = [16, 8], strides = [1, 1]} : vector<16x32xf32> to vector<16x8xf32>
    %54 = vector.shape_cast %50 : vector<16x8xf32> to vector<1x16x8xf32>
    %55 = vector.shape_cast %51 : vector<16x8xf32> to vector<1x16x8xf32>
    %56 = vector.shape_cast %52 : vector<16x8xf32> to vector<1x16x8xf32>
    %57 = vector.shape_cast %53 : vector<16x8xf32> to vector<1x16x8xf32>
    %58 = tpu.concatenate %54, %55, %56, %57 in 0 : vector<1x16x8xf32>, vector<1x16x8xf32>, vector<1x16x8xf32>, vector<1x16x8xf32> -> vector<4x16x8xf32>
    %59 = vector.shape_cast %58 : vector<4x16x8xf32> to vector<8x8x8xf32>
    %60 = vector.extract_strided_slice %37 {offsets = [0, 64], sizes = [16, 32], strides = [1, 1]} : vector<16x96xf32> to vector<16x32xf32>
    %61 = vector.extract_strided_slice %60 {offsets = [0, 0], sizes = [16, 8], strides = [1, 1]} : vector<16x32xf32> to vector<16x8xf32>
    %62 = vector.extract_strided_slice %60 {offsets = [0, 8], sizes = [16, 8], strides = [1, 1]} : vector<16x32xf32> to vector<16x8xf32>
    %63 = vector.extract_strided_slice %60 {offsets = [0, 16], sizes = [16, 8], strides = [1, 1]} : vector<16x32xf32> to vector<16x8xf32>
    %64 = vector.extract_strided_slice %60 {offsets = [0, 24], sizes = [16, 8], strides = [1, 1]} : vector<16x32xf32> to vector<16x8xf32>
    %65 = vector.shape_cast %61 : vector<16x8xf32> to vector<1x16x8xf32>
    %66 = vector.shape_cast %62 : vector<16x8xf32> to vector<1x16x8xf32>
    %67 = vector.shape_cast %63 : vector<16x8xf32> to vector<1x16x8xf32>
    %68 = vector.shape_cast %64 : vector<16x8xf32> to vector<1x16x8xf32>
    %69 = tpu.concatenate %65, %66, %67, %68 in 0 : vector<1x16x8xf32>, vector<1x16x8xf32>, vector<1x16x8xf32>, vector<1x16x8xf32> -> vector<4x16x8xf32>
    %70 = vector.shape_cast %69 : vector<4x16x8xf32> to vector<8x8x8xf32>
    "tpu.trace_start"() <{level = 10 : i32, message = "nqd,nkd->nqk"}> : () -> ()
    %cst_27 = arith.constant dense<0.000000e+00> : vector<8x8x8xf32>
    %71 = tpu.matmul %48, %59, %cst_27 {dimension_numbers = #tpu.dot_dimension_numbers<[2], [2], [1], [1], [0, 0, 0, 1, 1, 1], [0], [0]>} : vector<8x8x8xf32>, vector<8x8x8xf32>, vector<8x8x8xf32> -> vector<8x8x8xf32>
    "tpu.trace_stop"() : () -> ()
    %cst_28 = arith.constant 0.353553385 : f32
    %72 = vector.broadcast %cst_28 : f32 to vector<8x8x8xf32>
    %73 = arith.mulf %71, %72 : vector<8x8x8xf32>
    %74 = arith.mulf %73, %7 : vector<8x8x8xf32>
    %75 = arith.addf %74, %13 : vector<8x8x8xf32>
    %cst_29 = arith.constant dense<0xFF800000> : vector<8x8xf32>
    %76 = vector.multi_reduction <maximumf>, %75, %cst_29 [2] : vector<8x8x8xf32> to vector<8x8xf32>
    %77 = vector.shape_cast %76 : vector<8x8xf32> to vector<8x8x1xf32>
    %78 = vector.broadcast %77 : vector<8x8x1xf32> to vector<8x8x8xf32>
    %79 = arith.subf %75, %78 : vector<8x8x8xf32>
    %80 = math.exp %79 : vector<8x8x8xf32>
    %cst_30 = arith.constant dense<0.000000e+00> : vector<8x8xf32>
    %81 = vector.multi_reduction <add>, %80, %cst_30 [2] : vector<8x8x8xf32> to vector<8x8xf32>
    %82 = vector.shape_cast %81 : vector<8x8xf32> to vector<8x8x1xf32>
    %83 = vector.broadcast %82 : vector<8x8x1xf32> to vector<8x8x8xf32>
    %84 = arith.divf %80, %83 : vector<8x8x8xf32>
    "tpu.trace_start"() <{level = 10 : i32, message = "nqk,nkd->nqd"}> : () -> ()
    %cst_31 = arith.constant dense<0.000000e+00> : vector<8x8x8xf32>
    %85 = tpu.matmul %84, %70, %cst_31 {dimension_numbers = #tpu.dot_dimension_numbers<[2], [1], [1], [2], [0, 0, 0, 1, 1, 2], [0], [0]>} : vector<8x8x8xf32>, vector<8x8x8xf32>, vector<8x8x8xf32> -> vector<8x8x8xf32>
    "tpu.trace_stop"() : () -> ()
    %86 = vector.shape_cast %85 : vector<8x8x8xf32> to vector<4x16x8xf32>
    %87 = vector.extract_strided_slice %86 {offsets = [0, 0, 0], sizes = [1, 16, 8], strides = [1, 1, 1]} : vector<4x16x8xf32> to vector<1x16x8xf32>
    %88 = vector.shape_cast %87 : vector<1x16x8xf32> to vector<16x8xf32>
    %89 = vector.extract_strided_slice %86 {offsets = [1, 0, 0], sizes = [1, 16, 8], strides = [1, 1, 1]} : vector<4x16x8xf32> to vector<1x16x8xf32>
    %90 = vector.shape_cast %89 : vector<1x16x8xf32> to vector<16x8xf32>
    %91 = vector.extract_strided_slice %86 {offsets = [2, 0, 0], sizes = [1, 16, 8], strides = [1, 1, 1]} : vector<4x16x8xf32> to vector<1x16x8xf32>
    %92 = vector.shape_cast %91 : vector<1x16x8xf32> to vector<16x8xf32>
    %93 = vector.extract_strided_slice %86 {offsets = [3, 0, 0], sizes = [1, 16, 8], strides = [1, 1, 1]} : vector<4x16x8xf32> to vector<1x16x8xf32>
    %94 = vector.shape_cast %93 : vector<1x16x8xf32> to vector<16x8xf32>
    %95 = tpu.concatenate %88, %90, %92, %94 in 1 : vector<16x8xf32>, vector<16x8xf32>, vector<16x8xf32>, vector<16x8xf32> -> vector<16x32xf32>
    %c0_32 = arith.constant 0 : index
    %c0_33 = arith.constant 0 : index
    %c0_34 = arith.constant 0 : index
    %96 = vector.load %arg7[%c0_32, %c0_33, %c0_34] : memref<4x32x32xf32, #tpu.memory_space<vmem>>, vector<1x32x32xf32>
    %97 = vector.shape_cast %96 : vector<1x32x32xf32> to vector<32x32xf32>
    %cst_35 = arith.constant dense<0.000000e+00> : vector<16x32xf32>
    %98 = tpu.matmul %95, %97, %cst_35 {dimension_numbers = #tpu.dot_dimension_numbers<[1], [0], [0], [1], [0, 0, 1, 1], [], []>} : vector<16x32xf32>, vector<32x32xf32>, vector<16x32xf32> -> vector<16x32xf32>
    %99 = vector.extract_strided_slice %29 {offsets = [6, 0], sizes = [1, 32], strides = [1, 1]} : vector<13x128xf32> to vector<1x32xf32>
    %100 = vector.shape_cast %99 : vector<1x32xf32> to vector<32xf32>
    %101 = vector.shape_cast %100 : vector<32xf32> to vector<1x32xf32>
    %102 = vector.broadcast %101 : vector<1x32xf32> to vector<16x32xf32>
    %103 = arith.addf %98, %102 : vector<16x32xf32>
    %104 = arith.addf %103, %0 : vector<16x32xf32>
    %105 = vector.extract_strided_slice %29 {offsets = [0, 0], sizes = [1, 32], strides = [1, 1]} : vector<13x128xf32> to vector<1x32xf32>
    %106 = vector.shape_cast %105 : vector<1x32xf32> to vector<32xf32>
    %107 = vector.extract_strided_slice %29 {offsets = [1, 0], sizes = [1, 32], strides = [1, 1]} : vector<13x128xf32> to vector<1x32xf32>
    %108 = vector.shape_cast %107 : vector<1x32xf32> to vector<32xf32>
    %cst_36 = arith.constant dense<0.000000e+00> : vector<16xf32>
    %109 = vector.multi_reduction <add>, %104, %cst_36 [1] : vector<16x32xf32> to vector<16xf32>
    %110 = vector.shape_cast %109 : vector<16xf32> to vector<16x1xf32>
    %cst_37 = arith.constant 3.200000e+01 : f32
    %111 = vector.broadcast %cst_37 : f32 to vector<16x1xf32>
    %112 = arith.divf %110, %111 : vector<16x1xf32>
    %113 = vector.broadcast %112 : vector<16x1xf32> to vector<16x32xf32>
    %114 = arith.subf %104, %113 : vector<16x32xf32>
    %115 = vector.broadcast %112 : vector<16x1xf32> to vector<16x32xf32>
    %116 = arith.subf %104, %115 : vector<16x32xf32>
    %117 = arith.mulf %114, %116 : vector<16x32xf32>
    %cst_38 = arith.constant dense<0.000000e+00> : vector<16xf32>
    %118 = vector.multi_reduction <add>, %117, %cst_38 [1] : vector<16x32xf32> to vector<16xf32>
    %119 = vector.shape_cast %118 : vector<16xf32> to vector<16x1xf32>
    %cst_39 = arith.constant 3.200000e+01 : f32
    %120 = vector.broadcast %cst_39 : f32 to vector<16x1xf32>
    %121 = arith.divf %119, %120 : vector<16x1xf32>
    %122 = vector.broadcast %112 : vector<16x1xf32> to vector<16x32xf32>
    %123 = arith.subf %104, %122 : vector<16x32xf32>
    %cst_40 = arith.constant 9.99999974E-6 : f32
    %124 = vector.broadcast %cst_40 : f32 to vector<16x1xf32>
    %125 = arith.addf %121, %124 : vector<16x1xf32>
    %126 = math.rsqrt %125 : vector<16x1xf32>
    %127 = vector.broadcast %126 : vector<16x1xf32> to vector<16x32xf32>
    %128 = arith.mulf %123, %127 : vector<16x32xf32>
    %129 = vector.shape_cast %106 : vector<32xf32> to vector<1x32xf32>
    %130 = vector.broadcast %129 : vector<1x32xf32> to vector<16x32xf32>
    %131 = arith.mulf %128, %130 : vector<16x32xf32>
    %132 = vector.shape_cast %108 : vector<32xf32> to vector<1x32xf32>
    %133 = vector.broadcast %132 : vector<1x32xf32> to vector<16x32xf32>
    %134 = arith.addf %131, %133 : vector<16x32xf32>
    %c0_41 = arith.constant 0 : index
    %c0_42 = arith.constant 0 : index
    %c0_43 = arith.constant 0 : index
    %135 = vector.load %arg5[%c0_41, %c0_42, %c0_43] : memref<2x32x32xf32, #tpu.memory_space<vmem>>, vector<1x32x32xf32>
    %136 = vector.shape_cast %135 : vector<1x32x32xf32> to vector<32x32xf32>
    %cst_44 = arith.constant dense<0.000000e+00> : vector<16x32xf32>
    %137 = tpu.matmul %134, %136, %cst_44 {dimension_numbers = #tpu.dot_dimension_numbers<[1], [0], [0], [1], [0, 0, 1, 1], [], []>} : vector<16x32xf32>, vector<32x32xf32>, vector<16x32xf32> -> vector<16x32xf32>
    %138 = vector.extract_strided_slice %29 {offsets = [9, 0], sizes = [1, 32], strides = [1, 1]} : vector<13x128xf32> to vector<1x32xf32>
    %139 = vector.shape_cast %138 : vector<1x32xf32> to vector<32xf32>
    %140 = vector.shape_cast %139 : vector<32xf32> to vector<1x32xf32>
    %141 = vector.broadcast %140 : vector<1x32xf32> to vector<16x32xf32>
    %142 = arith.addf %137, %141 : vector<16x32xf32>
    %143 = vector.extract_strided_slice %27 {offsets = [0, 0], sizes = [16, 64], strides = [1, 1]} : vector<16x128xf32> to vector<16x64xf32>
    %144 = vector.extract_strided_slice %29 {offsets = [12, 0], sizes = [1, 64], strides = [1, 1]} : vector<13x128xf32> to vector<1x64xf32>
    %145 = vector.shape_cast %144 : vector<1x64xf32> to vector<64xf32>
    %146 = vector.shape_cast %145 : vector<64xf32> to vector<1x64xf32>
    %147 = vector.broadcast %146 : vector<1x64xf32> to vector<16x64xf32>
    %148 = arith.addf %143, %147 : vector<16x64xf32>
    %149 = vector.extract_strided_slice %142 {offsets = [0, 0], sizes = [16, 8], strides = [1, 1]} : vector<16x32xf32> to vector<16x8xf32>
    %150 = vector.extract_strided_slice %142 {offsets = [0, 8], sizes = [16, 8], strides = [1, 1]} : vector<16x32xf32> to vector<16x8xf32>
    %151 = vector.extract_strided_slice %142 {offsets = [0, 16], sizes = [16, 8], strides = [1, 1]} : vector<16x32xf32> to vector<16x8xf32>
    %152 = vector.extract_strided_slice %142 {offsets = [0, 24], sizes = [16, 8], strides = [1, 1]} : vector<16x32xf32> to vector<16x8xf32>
    %153 = vector.shape_cast %149 : vector<16x8xf32> to vector<1x16x8xf32>
    %154 = vector.shape_cast %150 : vector<16x8xf32> to vector<1x16x8xf32>
    %155 = vector.shape_cast %151 : vector<16x8xf32> to vector<1x16x8xf32>
    %156 = vector.shape_cast %152 : vector<16x8xf32> to vector<1x16x8xf32>
    %157 = tpu.concatenate %153, %154, %155, %156 in 0 : vector<1x16x8xf32>, vector<1x16x8xf32>, vector<1x16x8xf32>, vector<1x16x8xf32> -> vector<4x16x8xf32>
    %158 = vector.shape_cast %157 : vector<4x16x8xf32> to vector<8x8x8xf32>
    %159 = vector.extract_strided_slice %148 {offsets = [0, 0], sizes = [16, 32], strides = [1, 1]} : vector<16x64xf32> to vector<16x32xf32>
    %160 = vector.extract_strided_slice %159 {offsets = [0, 0], sizes = [16, 8], strides = [1, 1]} : vector<16x32xf32> to vector<16x8xf32>
    %161 = vector.extract_strided_slice %159 {offsets = [0, 8], sizes = [16, 8], strides = [1, 1]} : vector<16x32xf32> to vector<16x8xf32>
    %162 = vector.extract_strided_slice %159 {offsets = [0, 16], sizes = [16, 8], strides = [1, 1]} : vector<16x32xf32> to vector<16x8xf32>
    %163 = vector.extract_strided_slice %159 {offsets = [0, 24], sizes = [16, 8], strides = [1, 1]} : vector<16x32xf32> to vector<16x8xf32>
    %164 = vector.shape_cast %160 : vector<16x8xf32> to vector<1x16x8xf32>
    %165 = vector.shape_cast %161 : vector<16x8xf32> to vector<1x16x8xf32>
    %166 = vector.shape_cast %162 : vector<16x8xf32> to vector<1x16x8xf32>
    %167 = vector.shape_cast %163 : vector<16x8xf32> to vector<1x16x8xf32>
    %168 = tpu.concatenate %164, %165, %166, %167 in 0 : vector<1x16x8xf32>, vector<1x16x8xf32>, vector<1x16x8xf32>, vector<1x16x8xf32> -> vector<4x16x8xf32>
    %169 = vector.shape_cast %168 : vector<4x16x8xf32> to vector<8x8x8xf32>
    %170 = vector.extract_strided_slice %148 {offsets = [0, 32], sizes = [16, 32], strides = [1, 1]} : vector<16x64xf32> to vector<16x32xf32>
    %171 = vector.extract_strided_slice %170 {offsets = [0, 0], sizes = [16, 8], strides = [1, 1]} : vector<16x32xf32> to vector<16x8xf32>
    %172 = vector.extract_strided_slice %170 {offsets = [0, 8], sizes = [16, 8], strides = [1, 1]} : vector<16x32xf32> to vector<16x8xf32>
    %173 = vector.extract_strided_slice %170 {offsets = [0, 16], sizes = [16, 8], strides = [1, 1]} : vector<16x32xf32> to vector<16x8xf32>
    %174 = vector.extract_strided_slice %170 {offsets = [0, 24], sizes = [16, 8], strides = [1, 1]} : vector<16x32xf32> to vector<16x8xf32>
    %175 = vector.shape_cast %171 : vector<16x8xf32> to vector<1x16x8xf32>
    %176 = vector.shape_cast %172 : vector<16x8xf32> to vector<1x16x8xf32>
    %177 = vector.shape_cast %173 : vector<16x8xf32> to vector<1x16x8xf32>
    %178 = vector.shape_cast %174 : vector<16x8xf32> to vector<1x16x8xf32>
    %179 = tpu.concatenate %175, %176, %177, %178 in 0 : vector<1x16x8xf32>, vector<1x16x8xf32>, vector<1x16x8xf32>, vector<1x16x8xf32> -> vector<4x16x8xf32>
    %180 = vector.shape_cast %179 : vector<4x16x8xf32> to vector<8x8x8xf32>
    "tpu.trace_start"() <{level = 10 : i32, message = "nqd,nkd->nqk"}> : () -> ()
    %cst_45 = arith.constant dense<0.000000e+00> : vector<8x8x8xf32>
    %181 = tpu.matmul %158, %169, %cst_45 {dimension_numbers = #tpu.dot_dimension_numbers<[2], [2], [1], [1], [0, 0, 0, 1, 1, 1], [0], [0]>} : vector<8x8x8xf32>, vector<8x8x8xf32>, vector<8x8x8xf32> -> vector<8x8x8xf32>
    "tpu.trace_stop"() : () -> ()
    %cst_46 = arith.constant 0.353553385 : f32
    %182 = vector.broadcast %cst_46 : f32 to vector<8x8x8xf32>
    %183 = arith.mulf %181, %182 : vector<8x8x8xf32>
    %184 = arith.mulf %183, %19 : vector<8x8x8xf32>
    %185 = arith.addf %184, %25 : vector<8x8x8xf32>
    %cst_47 = arith.constant dense<0xFF800000> : vector<8x8xf32>
    %186 = vector.multi_reduction <maximumf>, %185, %cst_47 [2] : vector<8x8x8xf32> to vector<8x8xf32>
    %187 = vector.shape_cast %186 : vector<8x8xf32> to vector<8x8x1xf32>
    %188 = vector.broadcast %187 : vector<8x8x1xf32> to vector<8x8x8xf32>
    %189 = arith.subf %185, %188 : vector<8x8x8xf32>
    %190 = math.exp %189 : vector<8x8x8xf32>
    %cst_48 = arith.constant dense<0.000000e+00> : vector<8x8xf32>
    %191 = vector.multi_reduction <add>, %190, %cst_48 [2] : vector<8x8x8xf32> to vector<8x8xf32>
    %192 = vector.shape_cast %191 : vector<8x8xf32> to vector<8x8x1xf32>
    %193 = vector.broadcast %192 : vector<8x8x1xf32> to vector<8x8x8xf32>
    %194 = arith.divf %190, %193 : vector<8x8x8xf32>
    "tpu.trace_start"() <{level = 10 : i32, message = "nqk,nkd->nqd"}> : () -> ()
    %cst_49 = arith.constant dense<0.000000e+00> : vector<8x8x8xf32>
    %195 = tpu.matmul %194, %180, %cst_49 {dimension_numbers = #tpu.dot_dimension_numbers<[2], [1], [1], [2], [0, 0, 0, 1, 1, 2], [0], [0]>} : vector<8x8x8xf32>, vector<8x8x8xf32>, vector<8x8x8xf32> -> vector<8x8x8xf32>
    "tpu.trace_stop"() : () -> ()
    %196 = vector.shape_cast %195 : vector<8x8x8xf32> to vector<4x16x8xf32>
    %197 = vector.extract_strided_slice %196 {offsets = [0, 0, 0], sizes = [1, 16, 8], strides = [1, 1, 1]} : vector<4x16x8xf32> to vector<1x16x8xf32>
    %198 = vector.shape_cast %197 : vector<1x16x8xf32> to vector<16x8xf32>
    %199 = vector.extract_strided_slice %196 {offsets = [1, 0, 0], sizes = [1, 16, 8], strides = [1, 1, 1]} : vector<4x16x8xf32> to vector<1x16x8xf32>
    %200 = vector.shape_cast %199 : vector<1x16x8xf32> to vector<16x8xf32>
    %201 = vector.extract_strided_slice %196 {offsets = [2, 0, 0], sizes = [1, 16, 8], strides = [1, 1, 1]} : vector<4x16x8xf32> to vector<1x16x8xf32>
    %202 = vector.shape_cast %201 : vector<1x16x8xf32> to vector<16x8xf32>
    %203 = vector.extract_strided_slice %196 {offsets = [3, 0, 0], sizes = [1, 16, 8], strides = [1, 1, 1]} : vector<4x16x8xf32> to vector<1x16x8xf32>
    %204 = vector.shape_cast %203 : vector<1x16x8xf32> to vector<16x8xf32>
    %205 = tpu.concatenate %198, %200, %202, %204 in 1 : vector<16x8xf32>, vector<16x8xf32>, vector<16x8xf32>, vector<16x8xf32> -> vector<16x32xf32>
    %c1_50 = arith.constant 1 : index
    %c0_51 = arith.constant 0 : index
    %c0_52 = arith.constant 0 : index
    %206 = vector.load %arg7[%c1_50, %c0_51, %c0_52] : memref<4x32x32xf32, #tpu.memory_space<vmem>>, vector<1x32x32xf32>
    %207 = vector.shape_cast %206 : vector<1x32x32xf32> to vector<32x32xf32>
    %cst_53 = arith.constant dense<0.000000e+00> : vector<16x32xf32>
    %208 = tpu.matmul %205, %207, %cst_53 {dimension_numbers = #tpu.dot_dimension_numbers<[1], [0], [0], [1], [0, 0, 1, 1], [], []>} : vector<16x32xf32>, vector<32x32xf32>, vector<16x32xf32> -> vector<16x32xf32>
    %209 = vector.extract_strided_slice %29 {offsets = [7, 0], sizes = [1, 32], strides = [1, 1]} : vector<13x128xf32> to vector<1x32xf32>
    %210 = vector.shape_cast %209 : vector<1x32xf32> to vector<32xf32>
    %211 = vector.shape_cast %210 : vector<32xf32> to vector<1x32xf32>
    %212 = vector.broadcast %211 : vector<1x32xf32> to vector<16x32xf32>
    %213 = arith.addf %208, %212 : vector<16x32xf32>
    %214 = arith.addf %213, %134 : vector<16x32xf32>
    %215 = vector.extract_strided_slice %29 {offsets = [2, 0], sizes = [1, 32], strides = [1, 1]} : vector<13x128xf32> to vector<1x32xf32>
    %216 = vector.shape_cast %215 : vector<1x32xf32> to vector<32xf32>
    %217 = vector.extract_strided_slice %29 {offsets = [3, 0], sizes = [1, 32], strides = [1, 1]} : vector<13x128xf32> to vector<1x32xf32>
    %218 = vector.shape_cast %217 : vector<1x32xf32> to vector<32xf32>
    %cst_54 = arith.constant dense<0.000000e+00> : vector<16xf32>
    %219 = vector.multi_reduction <add>, %214, %cst_54 [1] : vector<16x32xf32> to vector<16xf32>
    %220 = vector.shape_cast %219 : vector<16xf32> to vector<16x1xf32>
    %cst_55 = arith.constant 3.200000e+01 : f32
    %221 = vector.broadcast %cst_55 : f32 to vector<16x1xf32>
    %222 = arith.divf %220, %221 : vector<16x1xf32>
    %223 = vector.broadcast %222 : vector<16x1xf32> to vector<16x32xf32>
    %224 = arith.subf %214, %223 : vector<16x32xf32>
    %225 = vector.broadcast %222 : vector<16x1xf32> to vector<16x32xf32>
    %226 = arith.subf %214, %225 : vector<16x32xf32>
    %227 = arith.mulf %224, %226 : vector<16x32xf32>
    %cst_56 = arith.constant dense<0.000000e+00> : vector<16xf32>
    %228 = vector.multi_reduction <add>, %227, %cst_56 [1] : vector<16x32xf32> to vector<16xf32>
    %229 = vector.shape_cast %228 : vector<16xf32> to vector<16x1xf32>
    %cst_57 = arith.constant 3.200000e+01 : f32
    %230 = vector.broadcast %cst_57 : f32 to vector<16x1xf32>
    %231 = arith.divf %229, %230 : vector<16x1xf32>
    %232 = vector.broadcast %222 : vector<16x1xf32> to vector<16x32xf32>
    %233 = arith.subf %214, %232 : vector<16x32xf32>
    %cst_58 = arith.constant 9.99999974E-6 : f32
    %234 = vector.broadcast %cst_58 : f32 to vector<16x1xf32>
    %235 = arith.addf %231, %234 : vector<16x1xf32>
    %236 = math.rsqrt %235 : vector<16x1xf32>
    %237 = vector.broadcast %236 : vector<16x1xf32> to vector<16x32xf32>
    %238 = arith.mulf %233, %237 : vector<16x32xf32>
    %239 = vector.shape_cast %216 : vector<32xf32> to vector<1x32xf32>
    %240 = vector.broadcast %239 : vector<1x32xf32> to vector<16x32xf32>
    %241 = arith.mulf %238, %240 : vector<16x32xf32>
    %242 = vector.shape_cast %218 : vector<32xf32> to vector<1x32xf32>
    %243 = vector.broadcast %242 : vector<1x32xf32> to vector<16x32xf32>
    %244 = arith.addf %241, %243 : vector<16x32xf32>
    %c0_59 = arith.constant 0 : index
    %c0_60 = arith.constant 0 : index
    %c0_61 = arith.constant 0 : index
    %245 = vector.load %arg8[%c0_59, %c0_60, %c0_61] : memref<2x32x64xf32, #tpu.memory_space<vmem>>, vector<1x32x64xf32>
    %246 = vector.shape_cast %245 : vector<1x32x64xf32> to vector<32x64xf32>
    %cst_62 = arith.constant dense<0.000000e+00> : vector<16x64xf32>
    %247 = tpu.matmul %244, %246, %cst_62 {dimension_numbers = #tpu.dot_dimension_numbers<[1], [0], [0], [1], [0, 0, 1, 1], [], []>} : vector<16x32xf32>, vector<32x64xf32>, vector<16x64xf32> -> vector<16x64xf32>
    %248 = vector.extract_strided_slice %29 {offsets = [10, 0], sizes = [1, 64], strides = [1, 1]} : vector<13x128xf32> to vector<1x64xf32>
    %249 = vector.shape_cast %248 : vector<1x64xf32> to vector<64xf32>
    %250 = vector.shape_cast %249 : vector<64xf32> to vector<1x64xf32>
    %251 = vector.broadcast %250 : vector<1x64xf32> to vector<16x64xf32>
    %252 = arith.addf %247, %251 : vector<16x64xf32>
    %cst_63 = arith.constant 0.000000e+00 : f32
    %253 = vector.broadcast %cst_63 : f32 to vector<16x64xf32>
    %254 = arith.maximumf %252, %253 : vector<16x64xf32>
    %c0_64 = arith.constant 0 : index
    %c0_65 = arith.constant 0 : index
    %c0_66 = arith.constant 0 : index
    %255 = vector.load %arg9[%c0_64, %c0_65, %c0_66] : memref<2x64x32xf32, #tpu.memory_space<vmem>>, vector<1x64x32xf32>
    %256 = vector.shape_cast %255 : vector<1x64x32xf32> to vector<64x32xf32>
    %cst_67 = arith.constant dense<0.000000e+00> : vector<16x32xf32>
    %257 = tpu.matmul %254, %256, %cst_67 {dimension_numbers = #tpu.dot_dimension_numbers<[1], [0], [0], [1], [0, 0, 1, 1], [], []>} : vector<16x64xf32>, vector<64x32xf32>, vector<16x32xf32> -> vector<16x32xf32>
    %258 = vector.extract_strided_slice %29 {offsets = [11, 0], sizes = [1, 32], strides = [1, 1]} : vector<13x128xf32> to vector<1x32xf32>
    %259 = vector.shape_cast %258 : vector<1x32xf32> to vector<32xf32>
    %260 = vector.shape_cast %259 : vector<32xf32> to vector<1x32xf32>
    %261 = vector.broadcast %260 : vector<1x32xf32> to vector<16x32xf32>
    %262 = arith.addf %257, %261 : vector<16x32xf32>
    %263 = arith.addf %262, %244 : vector<16x32xf32>
    %264 = vector.extract_strided_slice %29 {offsets = [4, 0], sizes = [1, 32], strides = [1, 1]} : vector<13x128xf32> to vector<1x32xf32>
    %265 = vector.shape_cast %264 : vector<1x32xf32> to vector<32xf32>
    %266 = vector.extract_strided_slice %29 {offsets = [5, 0], sizes = [1, 32], strides = [1, 1]} : vector<13x128xf32> to vector<1x32xf32>
    %267 = vector.shape_cast %266 : vector<1x32xf32> to vector<32xf32>
    %cst_68 = arith.constant dense<0.000000e+00> : vector<16xf32>
    %268 = vector.multi_reduction <add>, %263, %cst_68 [1] : vector<16x32xf32> to vector<16xf32>
    %269 = vector.shape_cast %268 : vector<16xf32> to vector<16x1xf32>
    %cst_69 = arith.constant 3.200000e+01 : f32
    %270 = vector.broadcast %cst_69 : f32 to vector<16x1xf32>
    %271 = arith.divf %269, %270 : vector<16x1xf32>
    %272 = vector.broadcast %271 : vector<16x1xf32> to vector<16x32xf32>
    %273 = arith.subf %263, %272 : vector<16x32xf32>
    %274 = vector.broadcast %271 : vector<16x1xf32> to vector<16x32xf32>
    %275 = arith.subf %263, %274 : vector<16x32xf32>
    %276 = arith.mulf %273, %275 : vector<16x32xf32>
    %cst_70 = arith.constant dense<0.000000e+00> : vector<16xf32>
    %277 = vector.multi_reduction <add>, %276, %cst_70 [1] : vector<16x32xf32> to vector<16xf32>
    %278 = vector.shape_cast %277 : vector<16xf32> to vector<16x1xf32>
    %cst_71 = arith.constant 3.200000e+01 : f32
    %279 = vector.broadcast %cst_71 : f32 to vector<16x1xf32>
    %280 = arith.divf %278, %279 : vector<16x1xf32>
    %281 = vector.broadcast %271 : vector<16x1xf32> to vector<16x32xf32>
    %282 = arith.subf %263, %281 : vector<16x32xf32>
    %cst_72 = arith.constant 9.99999974E-6 : f32
    %283 = vector.broadcast %cst_72 : f32 to vector<16x1xf32>
    %284 = arith.addf %280, %283 : vector<16x1xf32>
    %285 = math.rsqrt %284 : vector<16x1xf32>
    %286 = vector.broadcast %285 : vector<16x1xf32> to vector<16x32xf32>
    %287 = arith.mulf %282, %286 : vector<16x32xf32>
    %288 = vector.shape_cast %265 : vector<32xf32> to vector<1x32xf32>
    %289 = vector.broadcast %288 : vector<1x32xf32> to vector<16x32xf32>
    %290 = arith.mulf %287, %289 : vector<16x32xf32>
    %291 = vector.shape_cast %267 : vector<32xf32> to vector<1x32xf32>
    %292 = vector.broadcast %291 : vector<1x32xf32> to vector<16x32xf32>
    %293 = arith.addf %290, %292 : vector<16x32xf32>
    %294 = vector.extract_strided_slice %84 {offsets = [0, 0, 0], sizes = [1, 8, 8], strides = [1, 1, 1]} : vector<8x8x8xf32> to vector<1x8x8xf32>
    %295 = vector.shape_cast %294 : vector<1x8x8xf32> to vector<8x8xf32>
    %296 = vector.extract_strided_slice %84 {offsets = [1, 0, 0], sizes = [1, 8, 8], strides = [1, 1, 1]} : vector<8x8x8xf32> to vector<1x8x8xf32>
    %297 = vector.shape_cast %296 : vector<1x8x8xf32> to vector<8x8xf32>
    %298 = vector.extract_strided_slice %84 {offsets = [2, 0, 0], sizes = [1, 8, 8], strides = [1, 1, 1]} : vector<8x8x8xf32> to vector<1x8x8xf32>
    %299 = vector.shape_cast %298 : vector<1x8x8xf32> to vector<8x8xf32>
    %300 = vector.extract_strided_slice %84 {offsets = [3, 0, 0], sizes = [1, 8, 8], strides = [1, 1, 1]} : vector<8x8x8xf32> to vector<1x8x8xf32>
    %301 = vector.shape_cast %300 : vector<1x8x8xf32> to vector<8x8xf32>
    %302 = vector.extract_strided_slice %84 {offsets = [4, 0, 0], sizes = [1, 8, 8], strides = [1, 1, 1]} : vector<8x8x8xf32> to vector<1x8x8xf32>
    %303 = vector.shape_cast %302 : vector<1x8x8xf32> to vector<8x8xf32>
    %304 = vector.extract_strided_slice %84 {offsets = [5, 0, 0], sizes = [1, 8, 8], strides = [1, 1, 1]} : vector<8x8x8xf32> to vector<1x8x8xf32>
    %305 = vector.shape_cast %304 : vector<1x8x8xf32> to vector<8x8xf32>
    %306 = vector.extract_strided_slice %84 {offsets = [6, 0, 0], sizes = [1, 8, 8], strides = [1, 1, 1]} : vector<8x8x8xf32> to vector<1x8x8xf32>
    %307 = vector.shape_cast %306 : vector<1x8x8xf32> to vector<8x8xf32>
    %308 = vector.extract_strided_slice %84 {offsets = [7, 0, 0], sizes = [1, 8, 8], strides = [1, 1, 1]} : vector<8x8x8xf32> to vector<1x8x8xf32>
    %309 = vector.shape_cast %308 : vector<1x8x8xf32> to vector<8x8xf32>
    %310 = vector.extract_strided_slice %194 {offsets = [0, 0, 0], sizes = [1, 8, 8], strides = [1, 1, 1]} : vector<8x8x8xf32> to vector<1x8x8xf32>
    %311 = vector.shape_cast %310 : vector<1x8x8xf32> to vector<8x8xf32>
    %312 = vector.extract_strided_slice %194 {offsets = [1, 0, 0], sizes = [1, 8, 8], strides = [1, 1, 1]} : vector<8x8x8xf32> to vector<1x8x8xf32>
    %313 = vector.shape_cast %312 : vector<1x8x8xf32> to vector<8x8xf32>
    %314 = vector.extract_strided_slice %194 {offsets = [2, 0, 0], sizes = [1, 8, 8], strides = [1, 1, 1]} : vector<8x8x8xf32> to vector<1x8x8xf32>
    %315 = vector.shape_cast %314 : vector<1x8x8xf32> to vector<8x8xf32>
    %316 = vector.extract_strided_slice %194 {offsets = [3, 0, 0], sizes = [1, 8, 8], strides = [1, 1, 1]} : vector<8x8x8xf32> to vector<1x8x8xf32>
    %317 = vector.shape_cast %316 : vector<1x8x8xf32> to vector<8x8xf32>
    %318 = vector.extract_strided_slice %194 {offsets = [4, 0, 0], sizes = [1, 8, 8], strides = [1, 1, 1]} : vector<8x8x8xf32> to vector<1x8x8xf32>
    %319 = vector.shape_cast %318 : vector<1x8x8xf32> to vector<8x8xf32>
    %320 = vector.extract_strided_slice %194 {offsets = [5, 0, 0], sizes = [1, 8, 8], strides = [1, 1, 1]} : vector<8x8x8xf32> to vector<1x8x8xf32>
    %321 = vector.shape_cast %320 : vector<1x8x8xf32> to vector<8x8xf32>
    %322 = vector.extract_strided_slice %194 {offsets = [6, 0, 0], sizes = [1, 8, 8], strides = [1, 1, 1]} : vector<8x8x8xf32> to vector<1x8x8xf32>
    %323 = vector.shape_cast %322 : vector<1x8x8xf32> to vector<8x8xf32>
    %324 = vector.extract_strided_slice %194 {offsets = [7, 0, 0], sizes = [1, 8, 8], strides = [1, 1, 1]} : vector<8x8x8xf32> to vector<1x8x8xf32>
    %325 = vector.shape_cast %324 : vector<1x8x8xf32> to vector<8x8xf32>
    %326 = tpu.concatenate %295, %297, %299, %301, %303, %305, %307, %309, %311, %313, %315, %317, %319, %321, %323, %325 in 1 : vector<8x8xf32>, vector<8x8xf32>, vector<8x8xf32>, vector<8x8xf32>, vector<8x8xf32>, vector<8x8xf32>, vector<8x8xf32>, vector<8x8xf32>, vector<8x8xf32>, vector<8x8xf32>, vector<8x8xf32>, vector<8x8xf32>, vector<8x8xf32>, vector<8x8xf32>, vector<8x8xf32>, vector<8x8xf32> -> vector<8x128xf32>
    %c0_73 = arith.constant 0 : index
    %c0_74 = arith.constant 0 : index
    %c0_75 = arith.constant 0 : index
    %327 = vector.load %arg12[%c0_73, %c0_74, %c0_75] : memref<2x8x128xf32, #tpu.memory_space<vmem>>, vector<1x8x128xf32>
    %328 = vector.shape_cast %327 : vector<1x8x128xf32> to vector<8x128xf32>
    %329 = vector.shape_cast %326 : vector<8x128xf32> to vector<1x8x128xf32>
    tpu.vector_store %arg12[%c0_73, %c0_74, %c0_75], %329 {strides = array<i32>} : memref<2x8x128xf32, #tpu.memory_space<vmem>>, vector<1x8x128xf32>,
    %c1_76 = arith.constant 1 : index
    %c0_77 = arith.constant 0 : index
    %c0_78 = arith.constant 0 : index
    %330 = vector.load %arg10[%c1_76, %c0_77, %c0_78] : memref<2x13x128xf32, #tpu.memory_space<vmem>>, vector<1x13x128xf32>
    %331 = vector.shape_cast %330 : vector<1x13x128xf32> to vector<13x128xf32>
    %c1_79 = arith.constant 1 : index
    %c0_80 = arith.constant 0 : index
    %c0_81 = arith.constant 0 : index
    %332 = vector.load %arg4[%c1_79, %c0_80, %c0_81] : memref<2x32x96xf32, #tpu.memory_space<vmem>>, vector<1x32x96xf32>
    %333 = vector.shape_cast %332 : vector<1x32x96xf32> to vector<32x96xf32>
    %cst_82 = arith.constant dense<0.000000e+00> : vector<16x96xf32>
    %334 = tpu.matmul %293, %333, %cst_82 {dimension_numbers = #tpu.dot_dimension_numbers<[1], [0], [0], [1], [0, 0, 1, 1], [], []>} : vector<16x32xf32>, vector<32x96xf32>, vector<16x96xf32> -> vector<16x96xf32>
    %335 = vector.extract_strided_slice %331 {offsets = [8, 0], sizes = [1, 96], strides = [1, 1]} : vector<13x128xf32> to vector<1x96xf32>
    %336 = vector.shape_cast %335 : vector<1x96xf32> to vector<96xf32>
    %337 = vector.shape_cast %336 : vector<96xf32> to vector<1x96xf32>
    %338 = vector.broadcast %337 : vector<1x96xf32> to vector<16x96xf32>
    %339 = arith.addf %334, %338 : vector<16x96xf32>
    %340 = vector.extract_strided_slice %339 {offsets = [0, 0], sizes = [16, 32], strides = [1, 1]} : vector<16x96xf32> to vector<16x32xf32>
    %341 = vector.extract_strided_slice %340 {offsets = [0, 0], sizes = [16, 8], strides = [1, 1]} : vector<16x32xf32> to vector<16x8xf32>
    %342 = vector.extract_strided_slice %340 {offsets = [0, 8], sizes = [16, 8], strides = [1, 1]} : vector<16x32xf32> to vector<16x8xf32>
    %343 = vector.extract_strided_slice %340 {offsets = [0, 16], sizes = [16, 8], strides = [1, 1]} : vector<16x32xf32> to vector<16x8xf32>
    %344 = vector.extract_strided_slice %340 {offsets = [0, 24], sizes = [16, 8], strides = [1, 1]} : vector<16x32xf32> to vector<16x8xf32>
    %345 = vector.shape_cast %341 : vector<16x8xf32> to vector<1x16x8xf32>
    %346 = vector.shape_cast %342 : vector<16x8xf32> to vector<1x16x8xf32>
    %347 = vector.shape_cast %343 : vector<16x8xf32> to vector<1x16x8xf32>
    %348 = vector.shape_cast %344 : vector<16x8xf32> to vector<1x16x8xf32>
    %349 = tpu.concatenate %345, %346, %347, %348 in 0 : vector<1x16x8xf32>, vector<1x16x8xf32>, vector<1x16x8xf32>, vector<1x16x8xf32> -> vector<4x16x8xf32>
    %350 = vector.shape_cast %349 : vector<4x16x8xf32> to vector<8x8x8xf32>
    %351 = vector.extract_strided_slice %339 {offsets = [0, 32], sizes = [16, 32], strides = [1, 1]} : vector<16x96xf32> to vector<16x32xf32>
    %352 = vector.extract_strided_slice %351 {offsets = [0, 0], sizes = [16, 8], strides = [1, 1]} : vector<16x32xf32> to vector<16x8xf32>
    %353 = vector.extract_strided_slice %351 {offsets = [0, 8], sizes = [16, 8], strides = [1, 1]} : vector<16x32xf32> to vector<16x8xf32>
    %354 = vector.extract_strided_slice %351 {offsets = [0, 16], sizes = [16, 8], strides = [1, 1]} : vector<16x32xf32> to vector<16x8xf32>
    %355 = vector.extract_strided_slice %351 {offsets = [0, 24], sizes = [16, 8], strides = [1, 1]} : vector<16x32xf32> to vector<16x8xf32>
    %356 = vector.shape_cast %352 : vector<16x8xf32> to vector<1x16x8xf32>
    %357 = vector.shape_cast %353 : vector<16x8xf32> to vector<1x16x8xf32>
    %358 = vector.shape_cast %354 : vector<16x8xf32> to vector<1x16x8xf32>
    %359 = vector.shape_cast %355 : vector<16x8xf32> to vector<1x16x8xf32>
    %360 = tpu.concatenate %356, %357, %358, %359 in 0 : vector<1x16x8xf32>, vector<1x16x8xf32>, vector<1x16x8xf32>, vector<1x16x8xf32> -> vector<4x16x8xf32>
    %361 = vector.shape_cast %360 : vector<4x16x8xf32> to vector<8x8x8xf32>
    %362 = vector.extract_strided_slice %339 {offsets = [0, 64], sizes = [16, 32], strides = [1, 1]} : vector<16x96xf32> to vector<16x32xf32>
    %363 = vector.extract_strided_slice %362 {offsets = [0, 0], sizes = [16, 8], strides = [1, 1]} : vector<16x32xf32> to vector<16x8xf32>
    %364 = vector.extract_strided_slice %362 {offsets = [0, 8], sizes = [16, 8], strides = [1, 1]} : vector<16x32xf32> to vector<16x8xf32>
    %365 = vector.extract_strided_slice %362 {offsets = [0, 16], sizes = [16, 8], strides = [1, 1]} : vector<16x32xf32> to vector<16x8xf32>
    %366 = vector.extract_strided_slice %362 {offsets = [0, 24], sizes = [16, 8], strides = [1, 1]} : vector<16x32xf32> to vector<16x8xf32>
    %367 = vector.shape_cast %363 : vector<16x8xf32> to vector<1x16x8xf32>
    %368 = vector.shape_cast %364 : vector<16x8xf32> to vector<1x16x8xf32>
    %369 = vector.shape_cast %365 : vector<16x8xf32> to vector<1x16x8xf32>
    %370 = vector.shape_cast %366 : vector<16x8xf32> to vector<1x16x8xf32>
    %371 = tpu.concatenate %367, %368, %369, %370 in 0 : vector<1x16x8xf32>, vector<1x16x8xf32>, vector<1x16x8xf32>, vector<1x16x8xf32> -> vector<4x16x8xf32>
    %372 = vector.shape_cast %371 : vector<4x16x8xf32> to vector<8x8x8xf32>
    "tpu.trace_start"() <{level = 10 : i32, message = "nqd,nkd->nqk"}> : () -> ()
    %cst_83 = arith.constant dense<0.000000e+00> : vector<8x8x8xf32>
    %373 = tpu.matmul %350, %361, %cst_83 {dimension_numbers = #tpu.dot_dimension_numbers<[2], [2], [1], [1], [0, 0, 0, 1, 1, 1], [0], [0]>} : vector<8x8x8xf32>, vector<8x8x8xf32>, vector<8x8x8xf32> -> vector<8x8x8xf32>
    "tpu.trace_stop"() : () -> ()
    %cst_84 = arith.constant 0.353553385 : f32
    %374 = vector.broadcast %cst_84 : f32 to vector<8x8x8xf32>
    %375 = arith.mulf %373, %374 : vector<8x8x8xf32>
    %376 = arith.mulf %375, %7 : vector<8x8x8xf32>
    %377 = arith.addf %376, %13 : vector<8x8x8xf32>
    %cst_85 = arith.constant dense<0xFF800000> : vector<8x8xf32>
    %378 = vector.multi_reduction <maximumf>, %377, %cst_85 [2] : vector<8x8x8xf32> to vector<8x8xf32>
    %379 = vector.shape_cast %378 : vector<8x8xf32> to vector<8x8x1xf32>
    %380 = vector.broadcast %379 : vector<8x8x1xf32> to vector<8x8x8xf32>
    %381 = arith.subf %377, %380 : vector<8x8x8xf32>
    %382 = math.exp %381 : vector<8x8x8xf32>
    %cst_86 = arith.constant dense<0.000000e+00> : vector<8x8xf32>
    %383 = vector.multi_reduction <add>, %382, %cst_86 [2] : vector<8x8x8xf32> to vector<8x8xf32>
    %384 = vector.shape_cast %383 : vector<8x8xf32> to vector<8x8x1xf32>
    %385 = vector.broadcast %384 : vector<8x8x1xf32> to vector<8x8x8xf32>
    %386 = arith.divf %382, %385 : vector<8x8x8xf32>
    "tpu.trace_start"() <{level = 10 : i32, message = "nqk,nkd->nqd"}> : () -> ()
    %cst_87 = arith.constant dense<0.000000e+00> : vector<8x8x8xf32>
    %387 = tpu.matmul %386, %372, %cst_87 {dimension_numbers = #tpu.dot_dimension_numbers<[2], [1], [1], [2], [0, 0, 0, 1, 1, 2], [0], [0]>} : vector<8x8x8xf32>, vector<8x8x8xf32>, vector<8x8x8xf32> -> vector<8x8x8xf32>
    "tpu.trace_stop"() : () -> ()
    %388 = vector.shape_cast %387 : vector<8x8x8xf32> to vector<4x16x8xf32>
    %389 = vector.extract_strided_slice %388 {offsets = [0, 0, 0], sizes = [1, 16, 8], strides = [1, 1, 1]} : vector<4x16x8xf32> to vector<1x16x8xf32>
    %390 = vector.shape_cast %389 : vector<1x16x8xf32> to vector<16x8xf32>
    %391 = vector.extract_strided_slice %388 {offsets = [1, 0, 0], sizes = [1, 16, 8], strides = [1, 1, 1]} : vector<4x16x8xf32> to vector<1x16x8xf32>
    %392 = vector.shape_cast %391 : vector<1x16x8xf32> to vector<16x8xf32>
    %393 = vector.extract_strided_slice %388 {offsets = [2, 0, 0], sizes = [1, 16, 8], strides = [1, 1, 1]} : vector<4x16x8xf32> to vector<1x16x8xf32>
    %394 = vector.shape_cast %393 : vector<1x16x8xf32> to vector<16x8xf32>
    %395 = vector.extract_strided_slice %388 {offsets = [3, 0, 0], sizes = [1, 16, 8], strides = [1, 1, 1]} : vector<4x16x8xf32> to vector<1x16x8xf32>
    %396 = vector.shape_cast %395 : vector<1x16x8xf32> to vector<16x8xf32>
    %397 = tpu.concatenate %390, %392, %394, %396 in 1 : vector<16x8xf32>, vector<16x8xf32>, vector<16x8xf32>, vector<16x8xf32> -> vector<16x32xf32>
    %c2 = arith.constant 2 : index
    %c0_88 = arith.constant 0 : index
    %c0_89 = arith.constant 0 : index
    %398 = vector.load %arg7[%c2, %c0_88, %c0_89] : memref<4x32x32xf32, #tpu.memory_space<vmem>>, vector<1x32x32xf32>
    %399 = vector.shape_cast %398 : vector<1x32x32xf32> to vector<32x32xf32>
    %cst_90 = arith.constant dense<0.000000e+00> : vector<16x32xf32>
    %400 = tpu.matmul %397, %399, %cst_90 {dimension_numbers = #tpu.dot_dimension_numbers<[1], [0], [0], [1], [0, 0, 1, 1], [], []>} : vector<16x32xf32>, vector<32x32xf32>, vector<16x32xf32> -> vector<16x32xf32>
    %401 = vector.extract_strided_slice %331 {offsets = [6, 0], sizes = [1, 32], strides = [1, 1]} : vector<13x128xf32> to vector<1x32xf32>
    %402 = vector.shape_cast %401 : vector<1x32xf32> to vector<32xf32>
    %403 = vector.shape_cast %402 : vector<32xf32> to vector<1x32xf32>
    %404 = vector.broadcast %403 : vector<1x32xf32> to vector<16x32xf32>
    %405 = arith.addf %400, %404 : vector<16x32xf32>
    %406 = arith.addf %405, %293 : vector<16x32xf32>
    %407 = vector.extract_strided_slice %331 {offsets = [0, 0], sizes = [1, 32], strides = [1, 1]} : vector<13x128xf32> to vector<1x32xf32>
    %408 = vector.shape_cast %407 : vector<1x32xf32> to vector<32xf32>
    %409 = vector.extract_strided_slice %331 {offsets = [1, 0], sizes = [1, 32], strides = [1, 1]} : vector<13x128xf32> to vector<1x32xf32>
    %410 = vector.shape_cast %409 : vector<1x32xf32> to vector<32xf32>
    %cst_91 = arith.constant dense<0.000000e+00> : vector<16xf32>
    %411 = vector.multi_reduction <add>, %406, %cst_91 [1] : vector<16x32xf32> to vector<16xf32>
    %412 = vector.shape_cast %411 : vector<16xf32> to vector<16x1xf32>
    %cst_92 = arith.constant 3.200000e+01 : f32
    %413 = vector.broadcast %cst_92 : f32 to vector<16x1xf32>
    %414 = arith.divf %412, %413 : vector<16x1xf32>
    %415 = vector.broadcast %414 : vector<16x1xf32> to vector<16x32xf32>
    %416 = arith.subf %406, %415 : vector<16x32xf32>
    %417 = vector.broadcast %414 : vector<16x1xf32> to vector<16x32xf32>
    %418 = arith.subf %406, %417 : vector<16x32xf32>
    %419 = arith.mulf %416, %418 : vector<16x32xf32>
    %cst_93 = arith.constant dense<0.000000e+00> : vector<16xf32>
    %420 = vector.multi_reduction <add>, %419, %cst_93 [1] : vector<16x32xf32> to vector<16xf32>
    %421 = vector.shape_cast %420 : vector<16xf32> to vector<16x1xf32>
    %cst_94 = arith.constant 3.200000e+01 : f32
    %422 = vector.broadcast %cst_94 : f32 to vector<16x1xf32>
    %423 = arith.divf %421, %422 : vector<16x1xf32>
    %424 = vector.broadcast %414 : vector<16x1xf32> to vector<16x32xf32>
    %425 = arith.subf %406, %424 : vector<16x32xf32>
    %cst_95 = arith.constant 9.99999974E-6 : f32
    %426 = vector.broadcast %cst_95 : f32 to vector<16x1xf32>
    %427 = arith.addf %423, %426 : vector<16x1xf32>
    %428 = math.rsqrt %427 : vector<16x1xf32>
    %429 = vector.broadcast %428 : vector<16x1xf32> to vector<16x32xf32>
    %430 = arith.mulf %425, %429 : vector<16x32xf32>
    %431 = vector.shape_cast %408 : vector<32xf32> to vector<1x32xf32>
    %432 = vector.broadcast %431 : vector<1x32xf32> to vector<16x32xf32>
    %433 = arith.mulf %430, %432 : vector<16x32xf32>
    %434 = vector.shape_cast %410 : vector<32xf32> to vector<1x32xf32>
    %435 = vector.broadcast %434 : vector<1x32xf32> to vector<16x32xf32>
    %436 = arith.addf %433, %435 : vector<16x32xf32>
    %c1_96 = arith.constant 1 : index
    %c0_97 = arith.constant 0 : index
    %c0_98 = arith.constant 0 : index
    %437 = vector.load %arg5[%c1_96, %c0_97, %c0_98] : memref<2x32x32xf32, #tpu.memory_space<vmem>>, vector<1x32x32xf32>
    %438 = vector.shape_cast %437 : vector<1x32x32xf32> to vector<32x32xf32>
    %cst_99 = arith.constant dense<0.000000e+00> : vector<16x32xf32>
    %439 = tpu.matmul %436, %438, %cst_99 {dimension_numbers = #tpu.dot_dimension_numbers<[1], [0], [0], [1], [0, 0, 1, 1], [], []>} : vector<16x32xf32>, vector<32x32xf32>, vector<16x32xf32> -> vector<16x32xf32>
    %440 = vector.extract_strided_slice %331 {offsets = [9, 0], sizes = [1, 32], strides = [1, 1]} : vector<13x128xf32> to vector<1x32xf32>
    %441 = vector.shape_cast %440 : vector<1x32xf32> to vector<32xf32>
    %442 = vector.shape_cast %441 : vector<32xf32> to vector<1x32xf32>
    %443 = vector.broadcast %442 : vector<1x32xf32> to vector<16x32xf32>
    %444 = arith.addf %439, %443 : vector<16x32xf32>
    %445 = vector.extract_strided_slice %27 {offsets = [0, 64], sizes = [16, 64], strides = [1, 1]} : vector<16x128xf32> to vector<16x64xf32>
    %446 = vector.extract_strided_slice %331 {offsets = [12, 0], sizes = [1, 64], strides = [1, 1]} : vector<13x128xf32> to vector<1x64xf32>
    %447 = vector.shape_cast %446 : vector<1x64xf32> to vector<64xf32>
    %448 = vector.shape_cast %447 : vector<64xf32> to vector<1x64xf32>
    %449 = vector.broadcast %448 : vector<1x64xf32> to vector<16x64xf32>
    %450 = arith.addf %445, %449 : vector<16x64xf32>
    %451 = vector.extract_strided_slice %444 {offsets = [0, 0], sizes = [16, 8], strides = [1, 1]} : vector<16x32xf32> to vector<16x8xf32>
    %452 = vector.extract_strided_slice %444 {offsets = [0, 8], sizes = [16, 8], strides = [1, 1]} : vector<16x32xf32> to vector<16x8xf32>
    %453 = vector.extract_strided_slice %444 {offsets = [0, 16], sizes = [16, 8], strides = [1, 1]} : vector<16x32xf32> to vector<16x8xf32>
    %454 = vector.extract_strided_slice %444 {offsets = [0, 24], sizes = [16, 8], strides = [1, 1]} : vector<16x32xf32> to vector<16x8xf32>
    %455 = vector.shape_cast %451 : vector<16x8xf32> to vector<1x16x8xf32>
    %456 = vector.shape_cast %452 : vector<16x8xf32> to vector<1x16x8xf32>
    %457 = vector.shape_cast %453 : vector<16x8xf32> to vector<1x16x8xf32>
    %458 = vector.shape_cast %454 : vector<16x8xf32> to vector<1x16x8xf32>
    %459 = tpu.concatenate %455, %456, %457, %458 in 0 : vector<1x16x8xf32>, vector<1x16x8xf32>, vector<1x16x8xf32>, vector<1x16x8xf32> -> vector<4x16x8xf32>
    %460 = vector.shape_cast %459 : vector<4x16x8xf32> to vector<8x8x8xf32>
    %461 = vector.extract_strided_slice %450 {offsets = [0, 0], sizes = [16, 32], strides = [1, 1]} : vector<16x64xf32> to vector<16x32xf32>
    %462 = vector.extract_strided_slice %461 {offsets = [0, 0], sizes = [16, 8], strides = [1, 1]} : vector<16x32xf32> to vector<16x8xf32>
    %463 = vector.extract_strided_slice %461 {offsets = [0, 8], sizes = [16, 8], strides = [1, 1]} : vector<16x32xf32> to vector<16x8xf32>
    %464 = vector.extract_strided_slice %461 {offsets = [0, 16], sizes = [16, 8], strides = [1, 1]} : vector<16x32xf32> to vector<16x8xf32>
    %465 = vector.extract_strided_slice %461 {offsets = [0, 24], sizes = [16, 8], strides = [1, 1]} : vector<16x32xf32> to vector<16x8xf32>
    %466 = vector.shape_cast %462 : vector<16x8xf32> to vector<1x16x8xf32>
    %467 = vector.shape_cast %463 : vector<16x8xf32> to vector<1x16x8xf32>
    %468 = vector.shape_cast %464 : vector<16x8xf32> to vector<1x16x8xf32>
    %469 = vector.shape_cast %465 : vector<16x8xf32> to vector<1x16x8xf32>
    %470 = tpu.concatenate %466, %467, %468, %469 in 0 : vector<1x16x8xf32>, vector<1x16x8xf32>, vector<1x16x8xf32>, vector<1x16x8xf32> -> vector<4x16x8xf32>
    %471 = vector.shape_cast %470 : vector<4x16x8xf32> to vector<8x8x8xf32>
    %472 = vector.extract_strided_slice %450 {offsets = [0, 32], sizes = [16, 32], strides = [1, 1]} : vector<16x64xf32> to vector<16x32xf32>
    %473 = vector.extract_strided_slice %472 {offsets = [0, 0], sizes = [16, 8], strides = [1, 1]} : vector<16x32xf32> to vector<16x8xf32>
    %474 = vector.extract_strided_slice %472 {offsets = [0, 8], sizes = [16, 8], strides = [1, 1]} : vector<16x32xf32> to vector<16x8xf32>
    %475 = vector.extract_strided_slice %472 {offsets = [0, 16], sizes = [16, 8], strides = [1, 1]} : vector<16x32xf32> to vector<16x8xf32>
    %476 = vector.extract_strided_slice %472 {offsets = [0, 24], sizes = [16, 8], strides = [1, 1]} : vector<16x32xf32> to vector<16x8xf32>
    %477 = vector.shape_cast %473 : vector<16x8xf32> to vector<1x16x8xf32>
    %478 = vector.shape_cast %474 : vector<16x8xf32> to vector<1x16x8xf32>
    %479 = vector.shape_cast %475 : vector<16x8xf32> to vector<1x16x8xf32>
    %480 = vector.shape_cast %476 : vector<16x8xf32> to vector<1x16x8xf32>
    %481 = tpu.concatenate %477, %478, %479, %480 in 0 : vector<1x16x8xf32>, vector<1x16x8xf32>, vector<1x16x8xf32>, vector<1x16x8xf32> -> vector<4x16x8xf32>
    %482 = vector.shape_cast %481 : vector<4x16x8xf32> to vector<8x8x8xf32>
    "tpu.trace_start"() <{level = 10 : i32, message = "nqd,nkd->nqk"}> : () -> ()
    %cst_100 = arith.constant dense<0.000000e+00> : vector<8x8x8xf32>
    %483 = tpu.matmul %460, %471, %cst_100 {dimension_numbers = #tpu.dot_dimension_numbers<[2], [2], [1], [1], [0, 0, 0, 1, 1, 1], [0], [0]>} : vector<8x8x8xf32>, vector<8x8x8xf32>, vector<8x8x8xf32> -> vector<8x8x8xf32>
    "tpu.trace_stop"() : () -> ()
    %cst_101 = arith.constant 0.353553385 : f32
    %484 = vector.broadcast %cst_101 : f32 to vector<8x8x8xf32>
    %485 = arith.mulf %483, %484 : vector<8x8x8xf32>
    %486 = arith.mulf %485, %19 : vector<8x8x8xf32>
    %487 = arith.addf %486, %25 : vector<8x8x8xf32>
    %cst_102 = arith.constant dense<0xFF800000> : vector<8x8xf32>
    %488 = vector.multi_reduction <maximumf>, %487, %cst_102 [2] : vector<8x8x8xf32> to vector<8x8xf32>
    %489 = vector.shape_cast %488 : vector<8x8xf32> to vector<8x8x1xf32>
    %490 = vector.broadcast %489 : vector<8x8x1xf32> to vector<8x8x8xf32>
    %491 = arith.subf %487, %490 : vector<8x8x8xf32>
    %492 = math.exp %491 : vector<8x8x8xf32>
    %cst_103 = arith.constant dense<0.000000e+00> : vector<8x8xf32>
    %493 = vector.multi_reduction <add>, %492, %cst_103 [2] : vector<8x8x8xf32> to vector<8x8xf32>
    %494 = vector.shape_cast %493 : vector<8x8xf32> to vector<8x8x1xf32>
    %495 = vector.broadcast %494 : vector<8x8x1xf32> to vector<8x8x8xf32>
    %496 = arith.divf %492, %495 : vector<8x8x8xf32>
    "tpu.trace_start"() <{level = 10 : i32, message = "nqk,nkd->nqd"}> : () -> ()
    %cst_104 = arith.constant dense<0.000000e+00> : vector<8x8x8xf32>
    %497 = tpu.matmul %496, %482, %cst_104 {dimension_numbers = #tpu.dot_dimension_numbers<[2], [1], [1], [2], [0, 0, 0, 1, 1, 2], [0], [0]>} : vector<8x8x8xf32>, vector<8x8x8xf32>, vector<8x8x8xf32> -> vector<8x8x8xf32>
    "tpu.trace_stop"() : () -> ()
    %498 = vector.shape_cast %497 : vector<8x8x8xf32> to vector<4x16x8xf32>
    %499 = vector.extract_strided_slice %498 {offsets = [0, 0, 0], sizes = [1, 16, 8], strides = [1, 1, 1]} : vector<4x16x8xf32> to vector<1x16x8xf32>
    %500 = vector.shape_cast %499 : vector<1x16x8xf32> to vector<16x8xf32>
    %501 = vector.extract_strided_slice %498 {offsets = [1, 0, 0], sizes = [1, 16, 8], strides = [1, 1, 1]} : vector<4x16x8xf32> to vector<1x16x8xf32>
    %502 = vector.shape_cast %501 : vector<1x16x8xf32> to vector<16x8xf32>
    %503 = vector.extract_strided_slice %498 {offsets = [2, 0, 0], sizes = [1, 16, 8], strides = [1, 1, 1]} : vector<4x16x8xf32> to vector<1x16x8xf32>
    %504 = vector.shape_cast %503 : vector<1x16x8xf32> to vector<16x8xf32>
    %505 = vector.extract_strided_slice %498 {offsets = [3, 0, 0], sizes = [1, 16, 8], strides = [1, 1, 1]} : vector<4x16x8xf32> to vector<1x16x8xf32>
    %506 = vector.shape_cast %505 : vector<1x16x8xf32> to vector<16x8xf32>
    %507 = tpu.concatenate %500, %502, %504, %506 in 1 : vector<16x8xf32>, vector<16x8xf32>, vector<16x8xf32>, vector<16x8xf32> -> vector<16x32xf32>
    %c3 = arith.constant 3 : index
    %c0_105 = arith.constant 0 : index
    %c0_106 = arith.constant 0 : index
    %508 = vector.load %arg7[%c3, %c0_105, %c0_106] : memref<4x32x32xf32, #tpu.memory_space<vmem>>, vector<1x32x32xf32>
    %509 = vector.shape_cast %508 : vector<1x32x32xf32> to vector<32x32xf32>
    %cst_107 = arith.constant dense<0.000000e+00> : vector<16x32xf32>
    %510 = tpu.matmul %507, %509, %cst_107 {dimension_numbers = #tpu.dot_dimension_numbers<[1], [0], [0], [1], [0, 0, 1, 1], [], []>} : vector<16x32xf32>, vector<32x32xf32>, vector<16x32xf32> -> vector<16x32xf32>
    %511 = vector.extract_strided_slice %331 {offsets = [7, 0], sizes = [1, 32], strides = [1, 1]} : vector<13x128xf32> to vector<1x32xf32>
    %512 = vector.shape_cast %511 : vector<1x32xf32> to vector<32xf32>
    %513 = vector.shape_cast %512 : vector<32xf32> to vector<1x32xf32>
    %514 = vector.broadcast %513 : vector<1x32xf32> to vector<16x32xf32>
    %515 = arith.addf %510, %514 : vector<16x32xf32>
    %516 = arith.addf %515, %436 : vector<16x32xf32>
    %517 = vector.extract_strided_slice %331 {offsets = [2, 0], sizes = [1, 32], strides = [1, 1]} : vector<13x128xf32> to vector<1x32xf32>
    %518 = vector.shape_cast %517 : vector<1x32xf32> to vector<32xf32>
    %519 = vector.extract_strided_slice %331 {offsets = [3, 0], sizes = [1, 32], strides = [1, 1]} : vector<13x128xf32> to vector<1x32xf32>
    %520 = vector.shape_cast %519 : vector<1x32xf32> to vector<32xf32>
    %cst_108 = arith.constant dense<0.000000e+00> : vector<16xf32>
    %521 = vector.multi_reduction <add>, %516, %cst_108 [1] : vector<16x32xf32> to vector<16xf32>
    %522 = vector.shape_cast %521 : vector<16xf32> to vector<16x1xf32>
    %cst_109 = arith.constant 3.200000e+01 : f32
    %523 = vector.broadcast %cst_109 : f32 to vector<16x1xf32>
    %524 = arith.divf %522, %523 : vector<16x1xf32>
    %525 = vector.broadcast %524 : vector<16x1xf32> to vector<16x32xf32>
    %526 = arith.subf %516, %525 : vector<16x32xf32>
    %527 = vector.broadcast %524 : vector<16x1xf32> to vector<16x32xf32>
    %528 = arith.subf %516, %527 : vector<16x32xf32>
    %529 = arith.mulf %526, %528 : vector<16x32xf32>
    %cst_110 = arith.constant dense<0.000000e+00> : vector<16xf32>
    %530 = vector.multi_reduction <add>, %529, %cst_110 [1] : vector<16x32xf32> to vector<16xf32>
    %531 = vector.shape_cast %530 : vector<16xf32> to vector<16x1xf32>
    %cst_111 = arith.constant 3.200000e+01 : f32
    %532 = vector.broadcast %cst_111 : f32 to vector<16x1xf32>
    %533 = arith.divf %531, %532 : vector<16x1xf32>
    %534 = vector.broadcast %524 : vector<16x1xf32> to vector<16x32xf32>
    %535 = arith.subf %516, %534 : vector<16x32xf32>
    %cst_112 = arith.constant 9.99999974E-6 : f32
    %536 = vector.broadcast %cst_112 : f32 to vector<16x1xf32>
    %537 = arith.addf %533, %536 : vector<16x1xf32>
    %538 = math.rsqrt %537 : vector<16x1xf32>
    %539 = vector.broadcast %538 : vector<16x1xf32> to vector<16x32xf32>
    %540 = arith.mulf %535, %539 : vector<16x32xf32>
    %541 = vector.shape_cast %518 : vector<32xf32> to vector<1x32xf32>
    %542 = vector.broadcast %541 : vector<1x32xf32> to vector<16x32xf32>
    %543 = arith.mulf %540, %542 : vector<16x32xf32>
    %544 = vector.shape_cast %520 : vector<32xf32> to vector<1x32xf32>
    %545 = vector.broadcast %544 : vector<1x32xf32> to vector<16x32xf32>
    %546 = arith.addf %543, %545 : vector<16x32xf32>
    %c1_113 = arith.constant 1 : index
    %c0_114 = arith.constant 0 : index
    %c0_115 = arith.constant 0 : index
    %547 = vector.load %arg8[%c1_113, %c0_114, %c0_115] : memref<2x32x64xf32, #tpu.memory_space<vmem>>, vector<1x32x64xf32>
    %548 = vector.shape_cast %547 : vector<1x32x64xf32> to vector<32x64xf32>
    %cst_116 = arith.constant dense<0.000000e+00> : vector<16x64xf32>
    %549 = tpu.matmul %546, %548, %cst_116 {dimension_numbers = #tpu.dot_dimension_numbers<[1], [0], [0], [1], [0, 0, 1, 1], [], []>} : vector<16x32xf32>, vector<32x64xf32>, vector<16x64xf32> -> vector<16x64xf32>
    %550 = vector.extract_strided_slice %331 {offsets = [10, 0], sizes = [1, 64], strides = [1, 1]} : vector<13x128xf32> to vector<1x64xf32>
    %551 = vector.shape_cast %550 : vector<1x64xf32> to vector<64xf32>
    %552 = vector.shape_cast %551 : vector<64xf32> to vector<1x64xf32>
    %553 = vector.broadcast %552 : vector<1x64xf32> to vector<16x64xf32>
    %554 = arith.addf %549, %553 : vector<16x64xf32>
    %cst_117 = arith.constant 0.000000e+00 : f32
    %555 = vector.broadcast %cst_117 : f32 to vector<16x64xf32>
    %556 = arith.maximumf %554, %555 : vector<16x64xf32>
    %c1_118 = arith.constant 1 : index
    %c0_119 = arith.constant 0 : index
    %c0_120 = arith.constant 0 : index
    %557 = vector.load %arg9[%c1_118, %c0_119, %c0_120] : memref<2x64x32xf32, #tpu.memory_space<vmem>>, vector<1x64x32xf32>
    %558 = vector.shape_cast %557 : vector<1x64x32xf32> to vector<64x32xf32>
    %cst_121 = arith.constant dense<0.000000e+00> : vector<16x32xf32>
    %559 = tpu.matmul %556, %558, %cst_121 {dimension_numbers = #tpu.dot_dimension_numbers<[1], [0], [0], [1], [0, 0, 1, 1], [], []>} : vector<16x64xf32>, vector<64x32xf32>, vector<16x32xf32> -> vector<16x32xf32>
    %560 = vector.extract_strided_slice %331 {offsets = [11, 0], sizes = [1, 32], strides = [1, 1]} : vector<13x128xf32> to vector<1x32xf32>
    %561 = vector.shape_cast %560 : vector<1x32xf32> to vector<32xf32>
    %562 = vector.shape_cast %561 : vector<32xf32> to vector<1x32xf32>
    %563 = vector.broadcast %562 : vector<1x32xf32> to vector<16x32xf32>
    %564 = arith.addf %559, %563 : vector<16x32xf32>
    %565 = arith.addf %564, %546 : vector<16x32xf32>
    %566 = vector.extract_strided_slice %331 {offsets = [4, 0], sizes = [1, 32], strides = [1, 1]} : vector<13x128xf32> to vector<1x32xf32>
    %567 = vector.shape_cast %566 : vector<1x32xf32> to vector<32xf32>
    %568 = vector.extract_strided_slice %331 {offsets = [5, 0], sizes = [1, 32], strides = [1, 1]} : vector<13x128xf32> to vector<1x32xf32>
    %569 = vector.shape_cast %568 : vector<1x32xf32> to vector<32xf32>
    %cst_122 = arith.constant dense<0.000000e+00> : vector<16xf32>
    %570 = vector.multi_reduction <add>, %565, %cst_122 [1] : vector<16x32xf32> to vector<16xf32>
    %571 = vector.shape_cast %570 : vector<16xf32> to vector<16x1xf32>
    %cst_123 = arith.constant 3.200000e+01 : f32
    %572 = vector.broadcast %cst_123 : f32 to vector<16x1xf32>
    %573 = arith.divf %571, %572 : vector<16x1xf32>
    %574 = vector.broadcast %573 : vector<16x1xf32> to vector<16x32xf32>
    %575 = arith.subf %565, %574 : vector<16x32xf32>
    %576 = vector.broadcast %573 : vector<16x1xf32> to vector<16x32xf32>
    %577 = arith.subf %565, %576 : vector<16x32xf32>
    %578 = arith.mulf %575, %577 : vector<16x32xf32>
    %cst_124 = arith.constant dense<0.000000e+00> : vector<16xf32>
    %579 = vector.multi_reduction <add>, %578, %cst_124 [1] : vector<16x32xf32> to vector<16xf32>
    %580 = vector.shape_cast %579 : vector<16xf32> to vector<16x1xf32>
    %cst_125 = arith.constant 3.200000e+01 : f32
    %581 = vector.broadcast %cst_125 : f32 to vector<16x1xf32>
    %582 = arith.divf %580, %581 : vector<16x1xf32>
    %583 = vector.broadcast %573 : vector<16x1xf32> to vector<16x32xf32>
    %584 = arith.subf %565, %583 : vector<16x32xf32>
    %cst_126 = arith.constant 9.99999974E-6 : f32
    %585 = vector.broadcast %cst_126 : f32 to vector<16x1xf32>
    %586 = arith.addf %582, %585 : vector<16x1xf32>
    %587 = math.rsqrt %586 : vector<16x1xf32>
    %588 = vector.broadcast %587 : vector<16x1xf32> to vector<16x32xf32>
    %589 = arith.mulf %584, %588 : vector<16x32xf32>
    %590 = vector.shape_cast %567 : vector<32xf32> to vector<1x32xf32>
    %591 = vector.broadcast %590 : vector<1x32xf32> to vector<16x32xf32>
    %592 = arith.mulf %589, %591 : vector<16x32xf32>
    %593 = vector.shape_cast %569 : vector<32xf32> to vector<1x32xf32>
    %594 = vector.broadcast %593 : vector<1x32xf32> to vector<16x32xf32>
    %595 = arith.addf %592, %594 : vector<16x32xf32>
    %596 = vector.extract_strided_slice %386 {offsets = [0, 0, 0], sizes = [1, 8, 8], strides = [1, 1, 1]} : vector<8x8x8xf32> to vector<1x8x8xf32>
    %597 = vector.shape_cast %596 : vector<1x8x8xf32> to vector<8x8xf32>
    %598 = vector.extract_strided_slice %386 {offsets = [1, 0, 0], sizes = [1, 8, 8], strides = [1, 1, 1]} : vector<8x8x8xf32> to vector<1x8x8xf32>
    %599 = vector.shape_cast %598 : vector<1x8x8xf32> to vector<8x8xf32>
    %600 = vector.extract_strided_slice %386 {offsets = [2, 0, 0], sizes = [1, 8, 8], strides = [1, 1, 1]} : vector<8x8x8xf32> to vector<1x8x8xf32>
    %601 = vector.shape_cast %600 : vector<1x8x8xf32> to vector<8x8xf32>
    %602 = vector.extract_strided_slice %386 {offsets = [3, 0, 0], sizes = [1, 8, 8], strides = [1, 1, 1]} : vector<8x8x8xf32> to vector<1x8x8xf32>
    %603 = vector.shape_cast %602 : vector<1x8x8xf32> to vector<8x8xf32>
    %604 = vector.extract_strided_slice %386 {offsets = [4, 0, 0], sizes = [1, 8, 8], strides = [1, 1, 1]} : vector<8x8x8xf32> to vector<1x8x8xf32>
    %605 = vector.shape_cast %604 : vector<1x8x8xf32> to vector<8x8xf32>
    %606 = vector.extract_strided_slice %386 {offsets = [5, 0, 0], sizes = [1, 8, 8], strides = [1, 1, 1]} : vector<8x8x8xf32> to vector<1x8x8xf32>
    %607 = vector.shape_cast %606 : vector<1x8x8xf32> to vector<8x8xf32>
    %608 = vector.extract_strided_slice %386 {offsets = [6, 0, 0], sizes = [1, 8, 8], strides = [1, 1, 1]} : vector<8x8x8xf32> to vector<1x8x8xf32>
    %609 = vector.shape_cast %608 : vector<1x8x8xf32> to vector<8x8xf32>
    %610 = vector.extract_strided_slice %386 {offsets = [7, 0, 0], sizes = [1, 8, 8], strides = [1, 1, 1]} : vector<8x8x8xf32> to vector<1x8x8xf32>
    %611 = vector.shape_cast %610 : vector<1x8x8xf32> to vector<8x8xf32>
    %612 = vector.extract_strided_slice %496 {offsets = [0, 0, 0], sizes = [1, 8, 8], strides = [1, 1, 1]} : vector<8x8x8xf32> to vector<1x8x8xf32>
    %613 = vector.shape_cast %612 : vector<1x8x8xf32> to vector<8x8xf32>
    %614 = vector.extract_strided_slice %496 {offsets = [1, 0, 0], sizes = [1, 8, 8], strides = [1, 1, 1]} : vector<8x8x8xf32> to vector<1x8x8xf32>
    %615 = vector.shape_cast %614 : vector<1x8x8xf32> to vector<8x8xf32>
    %616 = vector.extract_strided_slice %496 {offsets = [2, 0, 0], sizes = [1, 8, 8], strides = [1, 1, 1]} : vector<8x8x8xf32> to vector<1x8x8xf32>
    %617 = vector.shape_cast %616 : vector<1x8x8xf32> to vector<8x8xf32>
    %618 = vector.extract_strided_slice %496 {offsets = [3, 0, 0], sizes = [1, 8, 8], strides = [1, 1, 1]} : vector<8x8x8xf32> to vector<1x8x8xf32>
    %619 = vector.shape_cast %618 : vector<1x8x8xf32> to vector<8x8xf32>
    %620 = vector.extract_strided_slice %496 {offsets = [4, 0, 0], sizes = [1, 8, 8], strides = [1, 1, 1]} : vector<8x8x8xf32> to vector<1x8x8xf32>
    %621 = vector.shape_cast %620 : vector<1x8x8xf32> to vector<8x8xf32>
    %622 = vector.extract_strided_slice %496 {offsets = [5, 0, 0], sizes = [1, 8, 8], strides = [1, 1, 1]} : vector<8x8x8xf32> to vector<1x8x8xf32>
    %623 = vector.shape_cast %622 : vector<1x8x8xf32> to vector<8x8xf32>
    %624 = vector.extract_strided_slice %496 {offsets = [6, 0, 0], sizes = [1, 8, 8], strides = [1, 1, 1]} : vector<8x8x8xf32> to vector<1x8x8xf32>
    %625 = vector.shape_cast %624 : vector<1x8x8xf32> to vector<8x8xf32>
    %626 = vector.extract_strided_slice %496 {offsets = [7, 0, 0], sizes = [1, 8, 8], strides = [1, 1, 1]} : vector<8x8x8xf32> to vector<1x8x8xf32>
    %627 = vector.shape_cast %626 : vector<1x8x8xf32> to vector<8x8xf32>
    %628 = tpu.concatenate %597, %599, %601, %603, %605, %607, %609, %611, %613, %615, %617, %619, %621, %623, %625, %627 in 1 : vector<8x8xf32>, vector<8x8xf32>, vector<8x8xf32>, vector<8x8xf32>, vector<8x8xf32>, vector<8x8xf32>, vector<8x8xf32>, vector<8x8xf32>, vector<8x8xf32>, vector<8x8xf32>, vector<8x8xf32>, vector<8x8xf32>, vector<8x8xf32>, vector<8x8xf32>, vector<8x8xf32>, vector<8x8xf32> -> vector<8x128xf32>
    %c1_127 = arith.constant 1 : index
    %c0_128 = arith.constant 0 : index
    %c0_129 = arith.constant 0 : index
    %629 = vector.load %arg12[%c1_127, %c0_128, %c0_129] : memref<2x8x128xf32, #tpu.memory_space<vmem>>, vector<1x8x128xf32>
    %630 = vector.shape_cast %629 : vector<1x8x128xf32> to vector<8x128xf32>
    %631 = vector.shape_cast %628 : vector<8x128xf32> to vector<1x8x128xf32>
    tpu.vector_store %arg12[%c1_127, %c0_128, %c0_129], %631 {strides = array<i32>} : memref<2x8x128xf32, #tpu.memory_space<vmem>>, vector<1x8x128xf32>,
    %c0_130 = arith.constant 0 : index
    %c0_131 = arith.constant 0 : index
    %632 = vector.load %arg11[%c0_130, %c0_131] : memref<16x32xf32, #tpu.memory_space<vmem>>, vector<16x32xf32>
    tpu.vector_store %arg11[%c0_130, %c0_131], %595 {strides = array<i32>} : memref<16x32xf32, #tpu.memory_space<vmem>>, vector<16x32xf32>,
    return
  }
}

</mosaic_0001>

<llo_original>
// kernel: decoder_forward.1
$region0: #{decoder_forward.1}
  #allocation0 [shape = 'u32[]', space=smem, size = 0x4, offset = 0x4, fixed_abs, tag = 'smem constant byte address 0x4 - core index']
  #allocation1 [shape = 'u32[72,128]{1,0:T(1,128)}', space=vmem, size = 0x9000, scoped, tag = 'internal scratch']
  %s0 = inlined_call_operand.vmem [shape: f32[16,32], index: 0, kind: input, shape index: {}]
  %s1 = inlined_call_operand.vmem [shape: f32[16,32], index: 1, kind: input, shape index: {}]
  %s2 = inlined_call_operand.vmem [shape: f32[2,2,8,8], index: 2, kind: input, shape index: {}]
  %s3 = inlined_call_operand.vmem [shape: f32[2,2,8,8], index: 3, kind: input, shape index: {}]
  %s4 = inlined_call_operand.vmem [shape: f32[2,32,96], index: 4, kind: input, shape index: {}]
  %s5 = inlined_call_operand.vmem [shape: f32[2,32,32], index: 5, kind: input, shape index: {}]
  %s6 = inlined_call_operand.vmem [shape: f32[32,128], index: 6, kind: input, shape index: {}]
  %s7 = inlined_call_operand.vmem [shape: f32[4,32,32], index: 7, kind: input, shape index: {}]
  %s8 = inlined_call_operand.vmem [shape: f32[2,32,64], index: 8, kind: input, shape index: {}]
  %s9 = inlined_call_operand.vmem [shape: f32[2,64,32], index: 9, kind: input, shape index: {}]
  %s10 = inlined_call_operand.vmem [shape: f32[2,13,128], index: 10, kind: input, shape index: {}]
  %s11 = inlined_call_operand.hbm [shape: f32[16,32], index: 11, kind: output, shape index: {0}]
  %s12 = inlined_call_operand.vmem [shape: f32[2,8,128], index: 12, kind: output, shape index: {1}]
  %13 = xla_tuple %s11, %s12
  %s14 = sld [smem:[#allocation0]]
  $region62: #{decoder_forward.1} parent=0
    _
  %s16 = ssub.s32 1, %s14
  %s17 = scalar_select 0, %s16, %s14
  $region1: #{decoder_forward.1} parent=0
    #allocation2 [shape = 'u8[8192]{0}', space=vmem, size = 0x2000, scoped, tag = 'output window, operand 0, single buffered']
    #allocation3 [shape = 's32[1]{0}', space=sflag, size = 0x4, scoped, tag = 'scoped memory for decoder_forward.1']
    %18 = vsyncpa [#allocation3], 0
    // Predicated region
    $region2: #{decoder_forward.1} parent=1 // pred_check
      _
    $region3: #{decoder_forward.1} parent=1 // pred_check_branch
      %20 = sbr.rel (0) target = $region5
    $region4: #{decoder_forward.1} parent=1 // pred_region
      _
    $region5: #{decoder_forward.1} parent=1 // pred_fallthru
      _
    // Predicated region
    $region6: #{decoder_forward.1} parent=1 // pred_check
      _
    $region7: #{decoder_forward.1} parent=1 // pred_check_branch
      %22 = sbr.rel (0) target = $region9
    $region8: #{decoder_forward.1} parent=1 // pred_region
      _
    $region9: #{decoder_forward.1} parent=1 // pred_fallthru
      _
    // Predicated region
    $region10: #{decoder_forward.1} parent=1 // pred_check
      _
    $region11: #{decoder_forward.1} parent=1 // pred_check_branch
      %24 = sbr.rel (0) target = $region13
    $region12: #{decoder_forward.1} parent=1 // pred_region
      _
    $region13: #{decoder_forward.1} parent=1 // pred_fallthru
      _
    // Predicated region
    $region14: #{decoder_forward.1} parent=1 // pred_check
      _
    $region15: #{decoder_forward.1} parent=1 // pred_check_branch
      %26 = sbr.rel (0) target = $region17
    $region16: #{decoder_forward.1} parent=1 // pred_region
      _
    $region17: #{decoder_forward.1} parent=1 // pred_fallthru
      _
    // Predicated region
    $region18: #{decoder_forward.1} parent=1 // pred_check
      _
    $region19: #{decoder_forward.1} parent=1 // pred_check_branch
      %28 = sbr.rel (0) target = $region21
    $region20: #{decoder_forward.1} parent=1 // pred_region
      _
    $region21: #{decoder_forward.1} parent=1 // pred_fallthru
      _
    // Predicated region
    $region22: #{decoder_forward.1} parent=1 // pred_check
      _
    $region23: #{decoder_forward.1} parent=1 // pred_check_branch
      %30 = sbr.rel (0) target = $region25
    $region24: #{decoder_forward.1} parent=1 // pred_region
      _
    $region25: #{decoder_forward.1} parent=1 // pred_fallthru
      _
    // Predicated region
    $region26: #{decoder_forward.1} parent=1 // pred_check
      _
    $region27: #{decoder_forward.1} parent=1 // pred_check_branch
      %32 = sbr.rel (0) target = $region29
    $region28: #{decoder_forward.1} parent=1 // pred_region
      _
    $region29: #{decoder_forward.1} parent=1 // pred_fallthru
      _
    // Predicated region
    $region30: #{decoder_forward.1} parent=1 // pred_check
      _
    $region31: #{decoder_forward.1} parent=1 // pred_check_branch
      %34 = sbr.rel (0) target = $region33
    $region32: #{decoder_forward.1} parent=1 // pred_region
      _
    $region33: #{decoder_forward.1} parent=1 // pred_fallthru
      _
    // Predicated region
    $region34: #{decoder_forward.1} parent=1 // pred_check
      _
    $region35: #{decoder_forward.1} parent=1 // pred_check_branch
      %36 = sbr.rel (0) target = $region37
    $region36: #{decoder_forward.1} parent=1 // pred_region
      _
    $region37: #{decoder_forward.1} parent=1 // pred_fallthru
      _
    // Predicated region
    $region38: #{decoder_forward.1} parent=1 // pred_check
      _
    $region39: #{decoder_forward.1} parent=1 // pred_check_branch
      %38 = sbr.rel (0) target = $region41
    $region40: #{decoder_forward.1} parent=1 // pred_region
      _
    $region41: #{decoder_forward.1} parent=1 // pred_fallthru
      _
    // Predicated region
    $region42: #{decoder_forward.1} parent=1 // pred_check
      _
    $region43: #{decoder_forward.1} parent=1 // pred_check_branch
      %40 = sbr.rel (0) target = $region45
    $region44: #{decoder_forward.1} parent=1 // pred_region
      _
    $region45: #{decoder_forward.1} parent=1 // pred_fallthru
      _
    %v41 = vld [vmem:[%s0] sm:$0xff]
    %v42 = vld [vmem:[%s0 + $0x8] sm:$0xff]
    %v43 = vld [vmem:[%s1] sm:$0xff]
    %v44 = vld [vmem:[%s1 + $0x8] sm:$0xff]
    %v45 = vld [vmem:[%s2] sm:$0xff]
    %v46 = vld [vmem:[%s2 + $0x8] sm:$0xff]
    %s47 = scalar_lea.vmem %s2, 16
    %v48 = vld [vmem:[%s47] sm:$0xff]
    %v49 = vld [vmem:[%s47 + $0x8] sm:$0xff]
    %v50 = vld [vmem:[%s3] sm:$0xff]
    %v51 = vld [vmem:[%s3 + $0x8] sm:$0xff]
    %s52 = scalar_lea.vmem %s3, 16
    %v53 = vld [vmem:[%s52] sm:$0xff]
    %v54 = vld [vmem:[%s52 + $0x8] sm:$0xff]
    %v55 = vld [vmem:[%s6] sm:$0xff]
    %v56 = vld [vmem:[%s6 + $0x8] sm:$0xff]
    %v57 = vld [vmem:[%s6 + $0x10] sm:$0xff]
    %v58 = vld [vmem:[%s6 + $0x18] sm:$0xff]
    %vm59 = vcmask 261120
    %v61 = vsel %vm59, %v43, 0
    %v64 = vsel %vm59, %v44, 0
    %66 = vmatpush.msra.mxu0 0.0
    %67 = vmatpush.msra.mxu0 0.0
    %68 = vmatpush.msra.mxu0 0.0
    %69 = vmatpush.msra.mxu0 0.0
    %70 = vmatpush.msra.mxu0 0.0
    %71 = vmatpush.msra.mxu0 0.0
    %72 = vmatpush.msra.mxu0 0.0
    %73 = vmatpush.msra.mxu0 0.0
    %74 = vmatpush.msra.mxu0 0.0
    %75 = vmatpush.msra.mxu0 0.0
    %76 = vmatpush.msra.mxu0 0.0
    %77 = vmatpush.msra.mxu0 0.0
    %78 = vmatpush.msra.mxu0 %v58
    %79 = vmatpush.msra.mxu0 %v57
    %80 = vmatpush.msra.mxu0 %v56
    %81 = vmatpush.msra.mxu0 %v55
    %82 = vmatmul.f32.gmra.mxu0 %v61
    %v83 = vpop.f32.mrf.mxu0
    %v84 = vadd.f32 0.0, %v83
    %85 = vmatmul.f32.gmra.mxu0 %v64
    %v86 = vpop.f32.mrf.mxu0
    %v87 = vadd.f32 0.0, %v86
    %88 = vdwg.mxu0
    %v89 = vld [vmem:[%s10] sm:$0xff]
    %v90 = vld [vmem:[%s10 + $0x8] sm:$0x1f]
    %v91 = vld [vmem:[%s4] sm:$0xff]
    %v92 = vld [vmem:[%s4 + $0x8] sm:$0xff]
    %v93 = vld [vmem:[%s4 + $0x10] sm:$0xff]
    %v94 = vld [vmem:[%s4 + $0x18] sm:$0xff]
    %v95 = vperm.slane %v90, 0
    %v97 = vsel %vm59, %v41, 0
    %v100 = vsel %vm59, %v42, 0
    %102 = vmatpush.msra.mxu0 0.0
    %103 = vmatpush.msra.mxu0 0.0
    %104 = vmatpush.msra.mxu0 0.0
    %105 = vmatpush.msra.mxu0 0.0
    %106 = vmatpush.msra.mxu0 0.0
    %107 = vmatpush.msra.mxu0 0.0
    %108 = vmatpush.msra.mxu0 0.0
    %109 = vmatpush.msra.mxu0 0.0
    %110 = vmatpush.msra.mxu0 0.0
    %111 = vmatpush.msra.mxu0 0.0
    %112 = vmatpush.msra.mxu0 0.0
    %113 = vmatpush.msra.mxu0 0.0
    %114 = vmatpush.msra.mxu0 %v94
    %115 = vmatpush.msra.mxu0 %v93
    %116 = vmatpush.msra.mxu0 %v92
    %117 = vmatpush.msra.mxu0 %v91
    %118 = vmatmul.f32.gmra.mxu0 %v97
    %v119 = vpop.f32.mrf.mxu0
    %v120 = vadd.f32 %v95, %v119
    %121 = vmatmul.f32.gmra.mxu0 %v100
    %v122 = vpop.f32.mrf.mxu0
    %v123 = vadd.f32 %v95, %v122
    %124 = vdwg.mxu0
    %127 = vrot.lane.b32.xlu0 %v120, 120
    %v128 = vpop.permute.xlu0 %127
    %129 = vrot.lane.b32.xlu0 %v123, 120
    %v130 = vpop.permute.xlu0 %129
    %131 = vrot.lane.b32.xlu0 %v120, 112
    %v132 = vpop.permute.xlu0 %131
    %133 = vrot.lane.b32.xlu0 %v123, 112
    %v134 = vpop.permute.xlu0 %133
    %135 = vrot.lane.b32.xlu0 %v120, 104
    %v136 = vpop.permute.xlu0 %135
    %137 = vrot.lane.b32.xlu0 %v123, 104
    %v138 = vpop.permute.xlu0 %137
    %139 = vrot.lane.b32.xlu0 %v120, 96
    %v140 = vpop.permute.xlu0 %139
    %vm141 = vcmask 64512
    %v142 = vsel %vm141, %v120, 0
    %v144 = vsel %vm141, %v140, 0
    %146 = vmatpush.xpose.msra.mxu0 0.0
    %147 = vmatpush.xpose.msra.mxu0 0.0
    %148 = vmatpush.xpose.msra.mxu0 0.0
    %149 = vmatpush.xpose.msra.mxu0 0.0
    %150 = vmatpush.xpose.msra.mxu0 0.0
    %151 = vmatpush.xpose.msra.mxu0 0.0
    %152 = vmatpush.xpose.msra.mxu0 0.0
    %153 = vmatpush.xpose.msra.mxu0 0.0
    %154 = vmatpush.xpose.msra.mxu0 0.0
    %155 = vmatpush.xpose.msra.mxu0 0.0
    %156 = vmatpush.xpose.msra.mxu0 0.0
    %157 = vmatpush.xpose.msra.mxu0 0.0
    %158 = vmatpush.xpose.msra.mxu0 0.0
    %159 = vmatpush.xpose.msra.mxu0 0.0
    %160 = vmatpush.xpose.msra.mxu0 0.0
    %161 = vmatpush.xpose.msra.mxu0 %v144
    %162 = vmatmul.f32.gmra.mxu0 %v142
    %v163 = vpop.f32.mrf.mxu0
    %v164 = vadd.f32 0.0, %v163
    %165 = vdwg.mxu0
    %166 = vrot.lane.b32.xlu0 %v123, 96
    %v167 = vpop.permute.xlu0 %166
    %v168 = vsel %vm141, %v123, 0
    %v170 = vsel %vm141, %v167, 0
    %172 = vmatpush.xpose.msra.mxu0 0.0
    %173 = vmatpush.xpose.msra.mxu0 0.0
    %174 = vmatpush.xpose.msra.mxu0 0.0
    %175 = vmatpush.xpose.msra.mxu0 0.0
    %176 = vmatpush.xpose.msra.mxu0 0.0
    %177 = vmatpush.xpose.msra.mxu0 0.0
    %178 = vmatpush.xpose.msra.mxu0 0.0
    %179 = vmatpush.xpose.msra.mxu0 0.0
    %180 = vmatpush.xpose.msra.mxu0 0.0
    %181 = vmatpush.xpose.msra.mxu0 0.0
    %182 = vmatpush.xpose.msra.mxu0 0.0
    %183 = vmatpush.xpose.msra.mxu0 0.0
    %184 = vmatpush.xpose.msra.mxu0 0.0
    %185 = vmatpush.xpose.msra.mxu0 0.0
    %186 = vmatpush.xpose.msra.mxu0 0.0
    %187 = vmatpush.xpose.msra.mxu0 %v170
    %188 = vmatmul.f32.gmra.mxu0 %v168
    %v189 = vpop.f32.mrf.mxu0
    %v190 = vadd.f32 0.0, %v189
    %191 = vdwg.mxu0
    %192 = vrot.lane.b32.xlu0 %v128, 96
    %v193 = vpop.permute.xlu0 %192
    %v194 = vsel %vm141, %v128, 0
    %v196 = vsel %vm141, %v193, 0
    %198 = vmatpush.xpose.msra.mxu0 0.0
    %199 = vmatpush.xpose.msra.mxu0 0.0
    %200 = vmatpush.xpose.msra.mxu0 0.0
    %201 = vmatpush.xpose.msra.mxu0 0.0
    %202 = vmatpush.xpose.msra.mxu0 0.0
    %203 = vmatpush.xpose.msra.mxu0 0.0
    %204 = vmatpush.xpose.msra.mxu0 0.0
    %205 = vmatpush.xpose.msra.mxu0 0.0
    %206 = vmatpush.xpose.msra.mxu0 0.0
    %207 = vmatpush.xpose.msra.mxu0 0.0
    %208 = vmatpush.xpose.msra.mxu0 0.0
    %209 = vmatpush.xpose.msra.mxu0 0.0
    %210 = vmatpush.xpose.msra.mxu0 0.0
    %211 = vmatpush.xpose.msra.mxu0 0.0
    %212 = vmatpush.xpose.msra.mxu0 0.0
    %213 = vmatpush.xpose.msra.mxu0 %v196
    %214 = vmatmul.f32.gmra.mxu0 %v194
    %v215 = vpop.f32.mrf.mxu0
    %v216 = vadd.f32 0.0, %v215
    %217 = vdwg.mxu0
    %218 = vrot.lane.b32.xlu0 %v130, 96
    %v219 = vpop.permute.xlu0 %218
    %v220 = vsel %vm141, %v130, 0
    %v222 = vsel %vm141, %v219, 0
    %224 = vmatpush.xpose.msra.mxu0 0.0
    %225 = vmatpush.xpose.msra.mxu0 0.0
    %226 = vmatpush.xpose.msra.mxu0 0.0
    %227 = vmatpush.xpose.msra.mxu0 0.0
    %228 = vmatpush.xpose.msra.mxu0 0.0
    %229 = vmatpush.xpose.msra.mxu0 0.0
    %230 = vmatpush.xpose.msra.mxu0 0.0
    %231 = vmatpush.xpose.msra.mxu0 0.0
    %232 = vmatpush.xpose.msra.mxu0 0.0
    %233 = vmatpush.xpose.msra.mxu0 0.0
    %234 = vmatpush.xpose.msra.mxu0 0.0
    %235 = vmatpush.xpose.msra.mxu0 0.0
    %236 = vmatpush.xpose.msra.mxu0 0.0
    %237 = vmatpush.xpose.msra.mxu0 0.0
    %238 = vmatpush.xpose.msra.mxu0 0.0
    %239 = vmatpush.xpose.msra.mxu0 %v222
    %240 = vmatmul.f32.gmra.mxu0 %v220
    %v241 = vpop.f32.mrf.mxu0
    %v242 = vadd.f32 0.0, %v241
    %243 = vdwg.mxu0
    %244 = vrot.lane.b32.xlu0 %v132, 96
    %v245 = vpop.permute.xlu0 %244
    %v246 = vsel %vm141, %v132, 0
    %v248 = vsel %vm141, %v245, 0
    %250 = vmatpush.xpose.msra.mxu0 0.0
    %251 = vmatpush.xpose.msra.mxu0 0.0
    %252 = vmatpush.xpose.msra.mxu0 0.0
    %253 = vmatpush.xpose.msra.mxu0 0.0
    %254 = vmatpush.xpose.msra.mxu0 0.0
    %255 = vmatpush.xpose.msra.mxu0 0.0
    %256 = vmatpush.xpose.msra.mxu0 0.0
    %257 = vmatpush.xpose.msra.mxu0 0.0
    %258 = vmatpush.xpose.msra.mxu0 0.0
    %259 = vmatpush.xpose.msra.mxu0 0.0
    %260 = vmatpush.xpose.msra.mxu0 0.0
    %261 = vmatpush.xpose.msra.mxu0 0.0
    %262 = vmatpush.xpose.msra.mxu0 0.0
    %263 = vmatpush.xpose.msra.mxu0 0.0
    %264 = vmatpush.xpose.msra.mxu0 0.0
    %265 = vmatpush.xpose.msra.mxu0 %v248
    %266 = vmatmul.f32.gmra.mxu0 %v246
    %v267 = vpop.f32.mrf.mxu0
    %v268 = vadd.f32 0.0, %v267
    %269 = vdwg.mxu0
    %270 = vrot.lane.b32.xlu0 %v134, 96
    %v271 = vpop.permute.xlu0 %270
    %v272 = vsel %vm141, %v134, 0
    %v274 = vsel %vm141, %v271, 0
    %276 = vmatpush.xpose.msra.mxu0 0.0
    %277 = vmatpush.xpose.msra.mxu0 0.0
    %278 = vmatpush.xpose.msra.mxu0 0.0
    %279 = vmatpush.xpose.msra.mxu0 0.0
    %280 = vmatpush.xpose.msra.mxu0 0.0
    %281 = vmatpush.xpose.msra.mxu0 0.0
    %282 = vmatpush.xpose.msra.mxu0 0.0
    %283 = vmatpush.xpose.msra.mxu0 0.0
    %284 = vmatpush.xpose.msra.mxu0 0.0
    %285 = vmatpush.xpose.msra.mxu0 0.0
    %286 = vmatpush.xpose.msra.mxu0 0.0
    %287 = vmatpush.xpose.msra.mxu0 0.0
    %288 = vmatpush.xpose.msra.mxu0 0.0
    %289 = vmatpush.xpose.msra.mxu0 0.0
    %290 = vmatpush.xpose.msra.mxu0 0.0
    %291 = vmatpush.xpose.msra.mxu0 %v274
    %292 = vmatmul.f32.gmra.mxu0 %v272
    %v293 = vpop.f32.mrf.mxu0
    %v294 = vadd.f32 0.0, %v293
    %295 = vdwg.mxu0
    %296 = vrot.lane.b32.xlu0 %v136, 96
    %v297 = vpop.permute.xlu0 %296
    %v298 = vsel %vm141, %v136, 0
    %v300 = vsel %vm141, %v297, 0
    %302 = vmatpush.xpose.msra.mxu0 0.0
    %303 = vmatpush.xpose.msra.mxu0 0.0
    %304 = vmatpush.xpose.msra.mxu0 0.0
    %305 = vmatpush.xpose.msra.mxu0 0.0
    %306 = vmatpush.xpose.msra.mxu0 0.0
    %307 = vmatpush.xpose.msra.mxu0 0.0
    %308 = vmatpush.xpose.msra.mxu0 0.0
    %309 = vmatpush.xpose.msra.mxu0 0.0
    %310 = vmatpush.xpose.msra.mxu0 0.0
    %311 = vmatpush.xpose.msra.mxu0 0.0
    %312 = vmatpush.xpose.msra.mxu0 0.0
    %313 = vmatpush.xpose.msra.mxu0 0.0
    %314 = vmatpush.xpose.msra.mxu0 0.0
    %315 = vmatpush.xpose.msra.mxu0 0.0
    %316 = vmatpush.xpose.msra.mxu0 0.0
    %317 = vmatpush.xpose.msra.mxu0 %v300
    %318 = vmatmul.f32.gmra.mxu0 %v298
    %v319 = vpop.f32.mrf.mxu0
    %v320 = vadd.f32 0.0, %v319
    %321 = vdwg.mxu0
    %322 = vrot.lane.b32.xlu0 %v138, 96
    %v323 = vpop.permute.xlu0 %322
    %v324 = vsel %vm141, %v138, 0
    %v326 = vsel %vm141, %v323, 0
    %328 = vmatpush.xpose.msra.mxu0 0.0
    %329 = vmatpush.xpose.msra.mxu0 0.0
    %330 = vmatpush.xpose.msra.mxu0 0.0
    %331 = vmatpush.xpose.msra.mxu0 0.0
    %332 = vmatpush.xpose.msra.mxu0 0.0
    %333 = vmatpush.xpose.msra.mxu0 0.0
    %334 = vmatpush.xpose.msra.mxu0 0.0
    %335 = vmatpush.xpose.msra.mxu0 0.0
    %336 = vmatpush.xpose.msra.mxu0 0.0
    %337 = vmatpush.xpose.msra.mxu0 0.0
    %338 = vmatpush.xpose.msra.mxu0 0.0
    %339 = vmatpush.xpose.msra.mxu0 0.0
    %340 = vmatpush.xpose.msra.mxu0 0.0
    %341 = vmatpush.xpose.msra.mxu0 0.0
    %342 = vmatpush.xpose.msra.mxu0 0.0
    %343 = vmatpush.xpose.msra.mxu0 %v326
    %344 = vmatmul.f32.gmra.mxu0 %v324
    %v345 = vpop.f32.mrf.mxu0
    %v346 = vadd.f32 0.0, %v345
    %347 = vdwg.mxu0
    %v348 = vmul.f32 %v164, 0.35355338
    %v349 = vmul.f32 %v190, 0.35355338
    %v350 = vmul.f32 %v216, 0.35355338
    %v351 = vmul.f32 %v242, 0.35355338
    %v352 = vmul.f32 %v268, 0.35355338
    %v353 = vmul.f32 %v294, 0.35355338
    %v354 = vmul.f32 %v320, 0.35355338
    %v355 = vmul.f32 %v346, 0.35355338
    %v356 = vmul.f32 %v348, %v45
    %v357 = vmul.f32 %v349, %v46
    %v358 = vmul.f32 %v350, %v45
    %v359 = vmul.f32 %v351, %v46
    %v360 = vmul.f32 %v352, %v45
    %v361 = vmul.f32 %v353, %v46
    %v362 = vmul.f32 %v354, %v45
    %v363 = vmul.f32 %v355, %v46
    %v364 = vadd.f32 %v356, %v48
    %v365 = vadd.f32 %v357, %v49
    %v366 = vadd.f32 %v358, %v48
    %v367 = vadd.f32 %v359, %v49
    %v368 = vadd.f32 %v360, %v48
    %v369 = vadd.f32 %v361, %v49
    %v370 = vadd.f32 %v362, %v48
    %v371 = vadd.f32 %v363, %v49
    %v372 = vsel %vm141, %v364, -inf
    %373 = vmax.xlane.f32.xlu0 %v372
    %v374 = vpop.xlane.xlu0 %373
    %v375 = vsel %vm141, %v365, -inf
    %376 = vmax.xlane.f32.xlu0 %v375
    %v377 = vpop.xlane.xlu0 %376
    %v378 = vsel %vm141, %v366, -inf
    %379 = vmax.xlane.f32.xlu0 %v378
    %v380 = vpop.xlane.xlu0 %379
    %v381 = vsel %vm141, %v367, -inf
    %382 = vmax.xlane.f32.xlu0 %v381
    %v383 = vpop.xlane.xlu0 %382
    %v384 = vsel %vm141, %v368, -inf
    %385 = vmax.xlane.f32.xlu0 %v384
    %v386 = vpop.xlane.xlu0 %385
    %v387 = vsel %vm141, %v369, -inf
    %388 = vmax.xlane.f32.xlu0 %v387
    %v389 = vpop.xlane.xlu0 %388
    %v390 = vsel %vm141, %v370, -inf
    %391 = vmax.xlane.f32.xlu0 %v390
    %v392 = vpop.xlane.xlu0 %391
    %v393 = vsel %vm141, %v371, -inf
    %394 = vmax.xlane.f32.xlu0 %v393
    %v395 = vpop.xlane.xlu0 %394
    %v396 = vsub.f32 %v364, %v374
    %v397 = vsub.f32 %v365, %v377
    %v398 = vsub.f32 %v366, %v380
    %v399 = vsub.f32 %v367, %v383
    %v400 = vsub.f32 %v368, %v386
    %v401 = vsub.f32 %v369, %v389
    %v402 = vsub.f32 %v370, %v392
    %v403 = vsub.f32 %v371, %v395
    %v404 = vmul.f32 %v396, 1.442695
    %v405 = vpow.pop %v404
    %v406 = vmul.f32 %v397, 1.442695
    %v407 = vpow.pop %v406
    %v408 = vmul.f32 %v398, 1.442695
    %v409 = vpow.pop %v408
    %v410 = vmul.f32 %v399, 1.442695
    %v411 = vpow.pop %v410
    %v412 = vmul.f32 %v400, 1.442695
    %v413 = vpow.pop %v412
    %v414 = vmul.f32 %v401, 1.442695
    %v415 = vpow.pop %v414
    %v416 = vmul.f32 %v402, 1.442695
    %v417 = vpow.pop %v416
    %v418 = vmul.f32 %v403, 1.442695
    %v419 = vpow.pop %v418
    %v420 = vsel %vm141, %v405, 0.0
    %421 = vadd.xlane.f32.xlu0 %v420
    %v422 = vpop.xlane.xlu0 %421
    %v423 = vsel %vm141, %v407, 0.0
    %424 = vadd.xlane.f32.xlu0 %v423
    %v425 = vpop.xlane.xlu0 %424
    %v426 = vsel %vm141, %v409, 0.0
    %427 = vadd.xlane.f32.xlu0 %v426
    %v428 = vpop.xlane.xlu0 %427
    %v429 = vsel %vm141, %v411, 0.0
    %430 = vadd.xlane.f32.xlu0 %v429
    %v431 = vpop.xlane.xlu0 %430
    %v432 = vsel %vm141, %v413, 0.0
    %433 = vadd.xlane.f32.xlu0 %v432
    %v434 = vpop.xlane.xlu0 %433
    %v435 = vsel %vm141, %v415, 0.0
    %436 = vadd.xlane.f32.xlu0 %v435
    %v437 = vpop.xlane.xlu0 %436
    %v438 = vsel %vm141, %v417, 0.0
    %439 = vadd.xlane.f32.xlu0 %v438
    %v440 = vpop.xlane.xlu0 %439
    %v441 = vsel %vm141, %v419, 0.0
    %442 = vadd.xlane.f32.xlu0 %v441
    %v443 = vpop.xlane.xlu0 %442
    %v444 = vrcp.pop %v422
    %v445 = vmul.f32 %v422, %v444
    %v446 = vsub.f32 1.0, %v445
    %v447 = vmul.f32 %v444, %v446
    %v448 = vadd.f32 %v444, %v447
    %vm449 = vweird.f32 %v422
    %vm450 = vweird.f32 %v444
    %vm451 = vmor %vm449, %vm450
    %v452 = vsel %vm451, %v444, %v448
    %v453 = vand.u32 2147483647, %v422
    %vm454 = vcmp.eq.f32.partialorder %v453, 8.507059e+37
    %v455 = vand.u32 %v422, 2147483648
    %v456 = vor.u32 1.1754944e-38, %v455
    %v457 = vsel %vm454, %v456, %v452
    %v458 = vmul.f32 %v405, %v457
    %v459 = vrcp.pop %v425
    %v460 = vmul.f32 %v425, %v459
    %v461 = vsub.f32 1.0, %v460
    %v462 = vmul.f32 %v459, %v461
    %v463 = vadd.f32 %v459, %v462
    %vm464 = vweird.f32 %v425
    %vm465 = vweird.f32 %v459
    %vm466 = vmor %vm464, %vm465
    %v467 = vsel %vm466, %v459, %v463
    %v468 = vand.u32 2147483647, %v425
    %vm469 = vcmp.eq.f32.partialorder %v468, 8.507059e+37
    %v470 = vand.u32 %v425, 2147483648
    %v471 = vor.u32 1.1754944e-38, %v470
    %v472 = vsel %vm469, %v471, %v467
    %v473 = vmul.f32 %v407, %v472
    %v474 = vrcp.pop %v428
    %v475 = vmul.f32 %v428, %v474
    %v476 = vsub.f32 1.0, %v475
    %v477 = vmul.f32 %v474, %v476
    %v478 = vadd.f32 %v474, %v477
    %vm479 = vweird.f32 %v428
    %vm480 = vweird.f32 %v474
    %vm481 = vmor %vm479, %vm480
    %v482 = vsel %vm481, %v474, %v478
    %v483 = vand.u32 2147483647, %v428
    %vm484 = vcmp.eq.f32.partialorder %v483, 8.507059e+37
    %v485 = vand.u32 %v428, 2147483648
    %v486 = vor.u32 1.1754944e-38, %v485
    %v487 = vsel %vm484, %v486, %v482
    %v488 = vmul.f32 %v409, %v487
    %v489 = vrcp.pop %v431
    %v490 = vmul.f32 %v431, %v489
    %v491 = vsub.f32 1.0, %v490
    %v492 = vmul.f32 %v489, %v491
    %v493 = vadd.f32 %v489, %v492
    %vm494 = vweird.f32 %v431
    %vm495 = vweird.f32 %v489
    %vm496 = vmor %vm494, %vm495
    %v497 = vsel %vm496, %v489, %v493
    %v498 = vand.u32 2147483647, %v431
    %vm499 = vcmp.eq.f32.partialorder %v498, 8.507059e+37
    %v500 = vand.u32 %v431, 2147483648
    %v501 = vor.u32 1.1754944e-38, %v500
    %v502 = vsel %vm499, %v501, %v497
    %v503 = vmul.f32 %v411, %v502
    %v504 = vrcp.pop %v434
    %v505 = vmul.f32 %v434, %v504
    %v506 = vsub.f32 1.0, %v505
    %v507 = vmul.f32 %v504, %v506
    %v508 = vadd.f32 %v504, %v507
    %vm509 = vweird.f32 %v434
    %vm510 = vweird.f32 %v504
    %vm511 = vmor %vm509, %vm510
    %v512 = vsel %vm511, %v504, %v508
    %v513 = vand.u32 2147483647, %v434
    %vm514 = vcmp.eq.f32.partialorder %v513, 8.507059e+37
    %v515 = vand.u32 %v434, 2147483648
    %v516 = vor.u32 1.1754944e-38, %v515
    %v517 = vsel %vm514, %v516, %v512
    %v518 = vmul.f32 %v413, %v517
    %v519 = vrcp.pop %v437
    %v520 = vmul.f32 %v437, %v519
    %v521 = vsub.f32 1.0, %v520
    %v522 = vmul.f32 %v519, %v521
    %v523 = vadd.f32 %v519, %v522
    %vm524 = vweird.f32 %v437
    %vm525 = vweird.f32 %v519
    %vm526 = vmor %vm524, %vm525
    %v527 = vsel %vm526, %v519, %v523
    %v528 = vand.u32 2147483647, %v437
    %vm529 = vcmp.eq.f32.partialorder %v528, 8.507059e+37
    %v530 = vand.u32 %v437, 2147483648
    %v531 = vor.u32 1.1754944e-38, %v530
    %v532 = vsel %vm529, %v531, %v527
    %v533 = vmul.f32 %v415, %v532
    %v534 = vrcp.pop %v440
    %v535 = vmul.f32 %v440, %v534
    %v536 = vsub.f32 1.0, %v535
    %v537 = vmul.f32 %v534, %v536
    %v538 = vadd.f32 %v534, %v537
    %vm539 = vweird.f32 %v440
    %vm540 = vweird.f32 %v534
    %vm541 = vmor %vm539, %vm540
    %v542 = vsel %vm541, %v534, %v538
    %v543 = vand.u32 2147483647, %v440
    %vm544 = vcmp.eq.f32.partialorder %v543, 8.507059e+37
    %v545 = vand.u32 %v440, 2147483648
    %v546 = vor.u32 1.1754944e-38, %v545
    %v547 = vsel %vm544, %v546, %v542
    %v548 = vmul.f32 %v417, %v547
    %v549 = vrcp.pop %v443
    %v550 = vmul.f32 %v443, %v549
    %v551 = vsub.f32 1.0, %v550
    %v552 = vmul.f32 %v549, %v551
    %v553 = vadd.f32 %v549, %v552
    %vm554 = vweird.f32 %v443
    %vm555 = vweird.f32 %v549
    %vm556 = vmor %vm554, %vm555
    %v557 = vsel %vm556, %v549, %v553
    %v558 = vand.u32 2147483647, %v443
    %vm559 = vcmp.eq.f32.partialorder %v558, 8.507059e+37
    %v560 = vand.u32 %v443, 2147483648
    %v561 = vor.u32 1.1754944e-38, %v560
    %v562 = vsel %vm559, %v561, %v557
    %v563 = vmul.f32 %v419, %v562
    %564 = vrot.lane.b32.xlu0 %v120, 64
    %v565 = vpop.permute.xlu0 %564
    %v568 = vsel %vm141, %v458, 0
    %570 = vmatpush.msra.mxu0 0.0
    %571 = vmatpush.msra.mxu0 0.0
    %572 = vmatpush.msra.mxu0 0.0
    %573 = vmatpush.msra.mxu0 0.0
    %574 = vmatpush.msra.mxu0 0.0
    %575 = vmatpush.msra.mxu0 0.0
    %576 = vmatpush.msra.mxu0 0.0
    %577 = vmatpush.msra.mxu0 0.0
    %578 = vmatpush.msra.mxu0 0.0
    %579 = vmatpush.msra.mxu0 0.0
    %580 = vmatpush.msra.mxu0 0.0
    %581 = vmatpush.msra.mxu0 0.0
    %582 = vmatpush.msra.mxu0 0.0
    %583 = vmatpush.msra.mxu0 0.0
    %584 = vmatpush.msra.mxu0 0.0
    %585 = vmatpush.msra.mxu0 %v565
    %586 = vmatmul.f32.gmra.mxu0 %v568
    %v587 = vpop.f32.mrf.mxu0
    %v588 = vadd.f32 0.0, %v587
    %589 = vdwg.mxu0
    %590 = vrot.lane.b32.xlu0 %v123, 64
    %v591 = vpop.permute.xlu0 %590
    %v594 = vsel %vm141, %v473, 0
    %596 = vmatpush.msra.mxu0 0.0
    %597 = vmatpush.msra.mxu0 0.0
    %598 = vmatpush.msra.mxu0 0.0
    %599 = vmatpush.msra.mxu0 0.0
    %600 = vmatpush.msra.mxu0 0.0
    %601 = vmatpush.msra.mxu0 0.0
    %602 = vmatpush.msra.mxu0 0.0
    %603 = vmatpush.msra.mxu0 0.0
    %604 = vmatpush.msra.mxu0 0.0
    %605 = vmatpush.msra.mxu0 0.0
    %606 = vmatpush.msra.mxu0 0.0
    %607 = vmatpush.msra.mxu0 0.0
    %608 = vmatpush.msra.mxu0 0.0
    %609 = vmatpush.msra.mxu0 0.0
    %610 = vmatpush.msra.mxu0 0.0
    %611 = vmatpush.msra.mxu0 %v591
    %612 = vmatmul.f32.gmra.mxu0 %v594
    %v613 = vpop.f32.mrf.mxu0
    %v614 = vadd.f32 0.0, %v613
    %615 = vdwg.mxu0
    %616 = vrot.lane.b32.xlu0 %v128, 64
    %v617 = vpop.permute.xlu0 %616
    %v620 = vsel %vm141, %v488, 0
    %622 = vmatpush.msra.mxu0 0.0
    %623 = vmatpush.msra.mxu0 0.0
    %624 = vmatpush.msra.mxu0 0.0
    %625 = vmatpush.msra.mxu0 0.0
    %626 = vmatpush.msra.mxu0 0.0
    %627 = vmatpush.msra.mxu0 0.0
    %628 = vmatpush.msra.mxu0 0.0
    %629 = vmatpush.msra.mxu0 0.0
    %630 = vmatpush.msra.mxu0 0.0
    %631 = vmatpush.msra.mxu0 0.0
    %632 = vmatpush.msra.mxu0 0.0
    %633 = vmatpush.msra.mxu0 0.0
    %634 = vmatpush.msra.mxu0 0.0
    %635 = vmatpush.msra.mxu0 0.0
    %636 = vmatpush.msra.mxu0 0.0
    %637 = vmatpush.msra.mxu0 %v617
    %638 = vmatmul.f32.gmra.mxu0 %v620
    %v639 = vpop.f32.mrf.mxu0
    %v640 = vadd.f32 0.0, %v639
    %641 = vdwg.mxu0
    %642 = vrot.lane.b32.xlu0 %v130, 64
    %v643 = vpop.permute.xlu0 %642
    %v646 = vsel %vm141, %v503, 0
    %648 = vmatpush.msra.mxu0 0.0
    %649 = vmatpush.msra.mxu0 0.0
    %650 = vmatpush.msra.mxu0 0.0
    %651 = vmatpush.msra.mxu0 0.0
    %652 = vmatpush.msra.mxu0 0.0
    %653 = vmatpush.msra.mxu0 0.0
    %654 = vmatpush.msra.mxu0 0.0
    %655 = vmatpush.msra.mxu0 0.0
    %656 = vmatpush.msra.mxu0 0.0
    %657 = vmatpush.msra.mxu0 0.0
    %658 = vmatpush.msra.mxu0 0.0
    %659 = vmatpush.msra.mxu0 0.0
    %660 = vmatpush.msra.mxu0 0.0
    %661 = vmatpush.msra.mxu0 0.0
    %662 = vmatpush.msra.mxu0 0.0
    %663 = vmatpush.msra.mxu0 %v643
    %664 = vmatmul.f32.gmra.mxu0 %v646
    %v665 = vpop.f32.mrf.mxu0
    %v666 = vadd.f32 0.0, %v665
    %667 = vdwg.mxu0
    %668 = vrot.lane.b32.xlu0 %v132, 64
    %v669 = vpop.permute.xlu0 %668
    %v672 = vsel %vm141, %v518, 0
    %674 = vmatpush.msra.mxu0 0.0
    %675 = vmatpush.msra.mxu0 0.0
    %676 = vmatpush.msra.mxu0 0.0
    %677 = vmatpush.msra.mxu0 0.0
    %678 = vmatpush.msra.mxu0 0.0
    %679 = vmatpush.msra.mxu0 0.0
    %680 = vmatpush.msra.mxu0 0.0
    %681 = vmatpush.msra.mxu0 0.0
    %682 = vmatpush.msra.mxu0 0.0
    %683 = vmatpush.msra.mxu0 0.0
    %684 = vmatpush.msra.mxu0 0.0
    %685 = vmatpush.msra.mxu0 0.0
    %686 = vmatpush.msra.mxu0 0.0
    %687 = vmatpush.msra.mxu0 0.0
    %688 = vmatpush.msra.mxu0 0.0
    %689 = vmatpush.msra.mxu0 %v669
    %690 = vmatmul.f32.gmra.mxu0 %v672
    %v691 = vpop.f32.mrf.mxu0
    %v692 = vadd.f32 0.0, %v691
    %693 = vdwg.mxu0
    %694 = vrot.lane.b32.xlu0 %v134, 64
    %v695 = vpop.permute.xlu0 %694
    %v698 = vsel %vm141, %v533, 0
    %700 = vmatpush.msra.mxu0 0.0
    %701 = vmatpush.msra.mxu0 0.0
    %702 = vmatpush.msra.mxu0 0.0
    %703 = vmatpush.msra.mxu0 0.0
    %704 = vmatpush.msra.mxu0 0.0
    %705 = vmatpush.msra.mxu0 0.0
    %706 = vmatpush.msra.mxu0 0.0
    %707 = vmatpush.msra.mxu0 0.0
    %708 = vmatpush.msra.mxu0 0.0
    %709 = vmatpush.msra.mxu0 0.0
    %710 = vmatpush.msra.mxu0 0.0
    %711 = vmatpush.msra.mxu0 0.0
    %712 = vmatpush.msra.mxu0 0.0
    %713 = vmatpush.msra.mxu0 0.0
    %714 = vmatpush.msra.mxu0 0.0
    %715 = vmatpush.msra.mxu0 %v695
    %716 = vmatmul.f32.gmra.mxu0 %v698
    %v717 = vpop.f32.mrf.mxu0
    %v718 = vadd.f32 0.0, %v717
    %719 = vdwg.mxu0
    %720 = vrot.lane.b32.xlu0 %v136, 64
    %v721 = vpop.permute.xlu0 %720
    %v724 = vsel %vm141, %v548, 0
    %726 = vmatpush.msra.mxu0 0.0
    %727 = vmatpush.msra.mxu0 0.0
    %728 = vmatpush.msra.mxu0 0.0
    %729 = vmatpush.msra.mxu0 0.0
    %730 = vmatpush.msra.mxu0 0.0
    %731 = vmatpush.msra.mxu0 0.0
    %732 = vmatpush.msra.mxu0 0.0
    %733 = vmatpush.msra.mxu0 0.0
    %734 = vmatpush.msra.mxu0 0.0
    %735 = vmatpush.msra.mxu0 0.0
    %736 = vmatpush.msra.mxu0 0.0
    %737 = vmatpush.msra.mxu0 0.0
    %738 = vmatpush.msra.mxu0 0.0
    %739 = vmatpush.msra.mxu0 0.0
    %740 = vmatpush.msra.mxu0 0.0
    %741 = vmatpush.msra.mxu0 %v721
    %742 = vmatmul.f32.gmra.mxu0 %v724
    %v743 = vpop.f32.mrf.mxu0
    %v744 = vadd.f32 0.0, %v743
    %745 = vdwg.mxu0
    %746 = vrot.lane.b32.xlu0 %v138, 64
    %v747 = vpop.permute.xlu0 %746
    %v750 = vsel %vm141, %v563, 0
    %752 = vmatpush.msra.mxu0 0.0
    %753 = vmatpush.msra.mxu0 0.0
    %754 = vmatpush.msra.mxu0 0.0
    %755 = vmatpush.msra.mxu0 0.0
    %756 = vmatpush.msra.mxu0 0.0
    %757 = vmatpush.msra.mxu0 0.0
    %758 = vmatpush.msra.mxu0 0.0
    %759 = vmatpush.msra.mxu0 0.0
    %760 = vmatpush.msra.mxu0 0.0
    %761 = vmatpush.msra.mxu0 0.0
    %762 = vmatpush.msra.mxu0 0.0
    %763 = vmatpush.msra.mxu0 0.0
    %764 = vmatpush.msra.mxu0 0.0
    %765 = vmatpush.msra.mxu0 0.0
    %766 = vmatpush.msra.mxu0 0.0
    %767 = vmatpush.msra.mxu0 %v747
    %768 = vmatmul.f32.gmra.mxu0 %v750
    %v769 = vpop.f32.mrf.mxu0
    %v770 = vadd.f32 0.0, %v769
    %771 = vdwg.mxu0
    %774 = vrot.lane.b32.xlu0 %v640, 8
    %v775 = vpop.permute.xlu0 %774
    %776 = vrot.lane.b32.xlu0 %v666, 8
    %v777 = vpop.permute.xlu0 %776
    %782 = vrot.lane.b32.xlu0 %v692, 16
    %v783 = vpop.permute.xlu0 %782
    %784 = vrot.lane.b32.xlu0 %v718, 16
    %v785 = vpop.permute.xlu0 %784
    %790 = vrot.lane.b32.xlu0 %v744, 24
    %v791 = vpop.permute.xlu0 %790
    %792 = vrot.lane.b32.xlu0 %v770, 24
    %v793 = vpop.permute.xlu0 %792
    %v796 = vsel %vm141, %v588, %v775
    %v797 = vsel %vm141, %v614, %v777
    %vm798 = vcmask 130048
    %v799 = vsel %vm798, %v796, %v783
    %v800 = vsel %vm798, %v797, %v785
    %vm801 = vcmask 195584
    %v802 = vsel %vm801, %v799, %v791
    %v803 = vsel %vm801, %v800, %v793
    %v804 = vld [vmem:[%s7] sm:$0xff]
    %v805 = vld [vmem:[%s7 + $0x8] sm:$0xff]
    %v806 = vld [vmem:[%s7 + $0x10] sm:$0xff]
    %v807 = vld [vmem:[%s7 + $0x18] sm:$0xff]
    %v808 = vperm.slane %v89, 6
    %v810 = vsel %vm59, %v802, 0
    %v813 = vsel %vm59, %v803, 0
    %815 = vmatpush.msra.mxu0 0.0
    %816 = vmatpush.msra.mxu0 0.0
    %817 = vmatpush.msra.mxu0 0.0
    %818 = vmatpush.msra.mxu0 0.0
    %819 = vmatpush.msra.mxu0 0.0
    %820 = vmatpush.msra.mxu0 0.0
    %821 = vmatpush.msra.mxu0 0.0
    %822 = vmatpush.msra.mxu0 0.0
    %823 = vmatpush.msra.mxu0 0.0
    %824 = vmatpush.msra.mxu0 0.0
    %825 = vmatpush.msra.mxu0 0.0
    %826 = vmatpush.msra.mxu0 0.0
    %827 = vmatpush.msra.mxu0 %v807
    %828 = vmatpush.msra.mxu0 %v806
    %829 = vmatpush.msra.mxu0 %v805
    %830 = vmatpush.msra.mxu0 %v804
    %831 = vmatmul.f32.gmra.mxu0 %v810
    %v832 = vpop.f32.mrf.mxu0
    %v833 = vadd.f32 %v808, %v832
    %834 = vmatmul.f32.gmra.mxu0 %v813
    %v835 = vpop.f32.mrf.mxu0
    %v836 = vadd.f32 %v808, %v835
    %837 = vdwg.mxu0
    %v838 = vadd.f32 %v833, %v41
    %v839 = vadd.f32 %v836, %v42
    %v840 = vsel %vm59, %v838, 0.0
    %841 = vadd.xlane.f32.xlu0 %v840
    %v842 = vpop.xlane.xlu0 %841
    %v843 = vsel %vm59, %v839, 0.0
    %844 = vadd.xlane.f32.xlu0 %v843
    %v845 = vpop.xlane.xlu0 %844
    %v846 = vrcp.pop 32.0
    %v847 = vmul.f32 32.0, %v846
    %v848 = vsub.f32 1.0, %v847
    %v849 = vmul.f32 %v846, %v848
    %v850 = vadd.f32 %v846, %v849
    %vm851 = vweird.f32 %v846
    %v852 = vsel %vm851, %v846, %v850
    %v853 = vmul.f32 %v842, %v852
    %v854 = vmul.f32 %v845, %v852
    %v855 = vsub.f32 %v838, %v853
    %v856 = vsub.f32 %v839, %v854
    %v857 = vmul.f32 %v855, %v855
    %v858 = vmul.f32 %v856, %v856
    %v859 = vsel %vm59, %v857, 0.0
    %860 = vadd.xlane.f32.xlu0 %v859
    %v861 = vpop.xlane.xlu0 %860
    %v862 = vsel %vm59, %v858, 0.0
    %863 = vadd.xlane.f32.xlu0 %v862
    %v864 = vpop.xlane.xlu0 %863
    %v865 = vmul.f32 %v861, %v852
    %v866 = vmul.f32 %v864, %v852
    %v867 = vadd.f32 %v865, 1e-05
    %v868 = vadd.f32 %v866, 1e-05
    %v869 = vrsqrt.pop %v867
    %v870 = vmul.f32 %v869, %v867
    %v871 = vmul.f32 %v870, %v869
    %v872 = vmul.f32 0.5, %v871
    %v873 = vsub.f32 1.5, %v872
    %v874 = vmul.f32 %v869, %v873
    %vm875 = vweird.f32 %v867
    %vm876 = vweird.f32 %v869
    %vm877 = vmor %vm875, %vm876
    %v878 = vsel %vm877, %v869, %v874
    %v879 = vrsqrt.pop %v868
    %v880 = vmul.f32 %v879, %v868
    %v881 = vmul.f32 %v880, %v879
    %v882 = vmul.f32 0.5, %v881
    %v883 = vsub.f32 1.5, %v882
    %v884 = vmul.f32 %v879, %v883
    %vm885 = vweird.f32 %v868
    %vm886 = vweird.f32 %v879
    %vm887 = vmor %vm885, %vm886
    %v888 = vsel %vm887, %v879, %v884
    %v889 = vmul.f32 %v855, %v878
    %v890 = vmul.f32 %v856, %v888
    %v891 = vperm.slane %v89, 0
    %v892 = vmul.f32 %v889, %v891
    %v893 = vmul.f32 %v890, %v891
    %v894 = vperm.slane %v89, 1
    %v895 = vadd.f32 %v892, %v894
    %v896 = vadd.f32 %v893, %v894
    %v897 = vld [vmem:[%s5] sm:$0xff]
    %v898 = vld [vmem:[%s5 + $0x8] sm:$0xff]
    %v899 = vld [vmem:[%s5 + $0x10] sm:$0xff]
    %v900 = vld [vmem:[%s5 + $0x18] sm:$0xff]
    %v901 = vperm.slane %v90, 1
    %v903 = vsel %vm59, %v895, 0
    %v906 = vsel %vm59, %v896, 0
    %908 = vmatpush.msra.mxu0 0.0
    %909 = vmatpush.msra.mxu0 0.0
    %910 = vmatpush.msra.mxu0 0.0
    %911 = vmatpush.msra.mxu0 0.0
    %912 = vmatpush.msra.mxu0 0.0
    %913 = vmatpush.msra.mxu0 0.0
    %914 = vmatpush.msra.mxu0 0.0
    %915 = vmatpush.msra.mxu0 0.0
    %916 = vmatpush.msra.mxu0 0.0
    %917 = vmatpush.msra.mxu0 0.0
    %918 = vmatpush.msra.mxu0 0.0
    %919 = vmatpush.msra.mxu0 0.0
    %920 = vmatpush.msra.mxu0 %v900
    %921 = vmatpush.msra.mxu0 %v899
    %922 = vmatpush.msra.mxu0 %v898
    %923 = vmatpush.msra.mxu0 %v897
    %924 = vmatmul.f32.gmra.mxu0 %v903
    %v925 = vpop.f32.mrf.mxu0
    %v926 = vadd.f32 %v901, %v925
    %927 = vmatmul.f32.gmra.mxu0 %v906
    %v928 = vpop.f32.mrf.mxu0
    %v929 = vadd.f32 %v901, %v928
    %930 = vdwg.mxu0
    %v931 = vperm.slane %v90, 4
    %v932 = vadd.f32 %v84, %v931
    %v933 = vadd.f32 %v87, %v931
    %936 = vrot.lane.b32.xlu0 %v926, 120
    %v937 = vpop.permute.xlu0 %936
    %938 = vrot.lane.b32.xlu0 %v929, 120
    %v939 = vpop.permute.xlu0 %938
    %940 = vrot.lane.b32.xlu0 %v926, 112
    %v941 = vpop.permute.xlu0 %940
    %942 = vrot.lane.b32.xlu0 %v929, 112
    %v943 = vpop.permute.xlu0 %942
    %944 = vrot.lane.b32.xlu0 %v926, 104
    %v945 = vpop.permute.xlu0 %944
    %946 = vrot.lane.b32.xlu0 %v929, 104
    %v947 = vpop.permute.xlu0 %946
    %950 = vrot.lane.b32.xlu0 %v932, 120
    %v951 = vpop.permute.xlu0 %950
    %952 = vrot.lane.b32.xlu0 %v933, 120
    %v953 = vpop.permute.xlu0 %952
    %954 = vrot.lane.b32.xlu0 %v932, 112
    %v955 = vpop.permute.xlu0 %954
    %956 = vrot.lane.b32.xlu0 %v933, 112
    %v957 = vpop.permute.xlu0 %956
    %958 = vrot.lane.b32.xlu0 %v932, 104
    %v959 = vpop.permute.xlu0 %958
    %960 = vrot.lane.b32.xlu0 %v933, 104
    %v961 = vpop.permute.xlu0 %960
    %v962 = vsel %vm141, %v926, 0
    %v964 = vsel %vm141, %v932, 0
    %966 = vmatpush.xpose.msra.mxu0 0.0
    %967 = vmatpush.xpose.msra.mxu0 0.0
    %968 = vmatpush.xpose.msra.mxu0 0.0
    %969 = vmatpush.xpose.msra.mxu0 0.0
    %970 = vmatpush.xpose.msra.mxu0 0.0
    %971 = vmatpush.xpose.msra.mxu0 0.0
    %972 = vmatpush.xpose.msra.mxu0 0.0
    %973 = vmatpush.xpose.msra.mxu0 0.0
    %974 = vmatpush.xpose.msra.mxu0 0.0
    %975 = vmatpush.xpose.msra.mxu0 0.0
    %976 = vmatpush.xpose.msra.mxu0 0.0
    %977 = vmatpush.xpose.msra.mxu0 0.0
    %978 = vmatpush.xpose.msra.mxu0 0.0
    %979 = vmatpush.xpose.msra.mxu0 0.0
    %980 = vmatpush.xpose.msra.mxu0 0.0
    %981 = vmatpush.xpose.msra.mxu0 %v964
    %982 = vmatmul.f32.gmra.mxu0 %v962
    %v983 = vpop.f32.mrf.mxu0
    %v984 = vadd.f32 0.0, %v983
    %985 = vdwg.mxu0
    %v986 = vsel %vm141, %v929, 0
    %v988 = vsel %vm141, %v933, 0
    %990 = vmatpush.xpose.msra.mxu0 0.0
    %991 = vmatpush.xpose.msra.mxu0 0.0
    %992 = vmatpush.xpose.msra.mxu0 0.0
    %993 = vmatpush.xpose.msra.mxu0 0.0
    %994 = vmatpush.xpose.msra.mxu0 0.0
    %995 = vmatpush.xpose.msra.mxu0 0.0
    %996 = vmatpush.xpose.msra.mxu0 0.0
    %997 = vmatpush.xpose.msra.mxu0 0.0
    %998 = vmatpush.xpose.msra.mxu0 0.0
    %999 = vmatpush.xpose.msra.mxu0 0.0
    %1000 = vmatpush.xpose.msra.mxu0 0.0
    %1001 = vmatpush.xpose.msra.mxu0 0.0
    %1002 = vmatpush.xpose.msra.mxu0 0.0
    %1003 = vmatpush.xpose.msra.mxu0 0.0
    %1004 = vmatpush.xpose.msra.mxu0 0.0
    %1005 = vmatpush.xpose.msra.mxu0 %v988
    %1006 = vmatmul.f32.gmra.mxu0 %v986
    %v1007 = vpop.f32.mrf.mxu0
    %v1008 = vadd.f32 0.0, %v1007
    %1009 = vdwg.mxu0
    %v1010 = vsel %vm141, %v937, 0
    %v1012 = vsel %vm141, %v951, 0
    %1014 = vmatpush.xpose.msra.mxu0 0.0
    %1015 = vmatpush.xpose.msra.mxu0 0.0
    %1016 = vmatpush.xpose.msra.mxu0 0.0
    %1017 = vmatpush.xpose.msra.mxu0 0.0
    %1018 = vmatpush.xpose.msra.mxu0 0.0
    %1019 = vmatpush.xpose.msra.mxu0 0.0
    %1020 = vmatpush.xpose.msra.mxu0 0.0
    %1021 = vmatpush.xpose.msra.mxu0 0.0
    %1022 = vmatpush.xpose.msra.mxu0 0.0
    %1023 = vmatpush.xpose.msra.mxu0 0.0
    %1024 = vmatpush.xpose.msra.mxu0 0.0
    %1025 = vmatpush.xpose.msra.mxu0 0.0
    %1026 = vmatpush.xpose.msra.mxu0 0.0
    %1027 = vmatpush.xpose.msra.mxu0 0.0
    %1028 = vmatpush.xpose.msra.mxu0 0.0
    %1029 = vmatpush.xpose.msra.mxu0 %v1012
    %1030 = vmatmul.f32.gmra.mxu0 %v1010
    %v1031 = vpop.f32.mrf.mxu0
    %v1032 = vadd.f32 0.0, %v1031
    %1033 = vdwg.mxu0
    %v1034 = vsel %vm141, %v939, 0
    %v1036 = vsel %vm141, %v953, 0
    %1038 = vmatpush.xpose.msra.mxu0 0.0
    %1039 = vmatpush.xpose.msra.mxu0 0.0
    %1040 = vmatpush.xpose.msra.mxu0 0.0
    %1041 = vmatpush.xpose.msra.mxu0 0.0
    %1042 = vmatpush.xpose.msra.mxu0 0.0
    %1043 = vmatpush.xpose.msra.mxu0 0.0
    %1044 = vmatpush.xpose.msra.mxu0 0.0
    %1045 = vmatpush.xpose.msra.mxu0 0.0
    %1046 = vmatpush.xpose.msra.mxu0 0.0
    %1047 = vmatpush.xpose.msra.mxu0 0.0
    %1048 = vmatpush.xpose.msra.mxu0 0.0
    %1049 = vmatpush.xpose.msra.mxu0 0.0
    %1050 = vmatpush.xpose.msra.mxu0 0.0
    %1051 = vmatpush.xpose.msra.mxu0 0.0
    %1052 = vmatpush.xpose.msra.mxu0 0.0
    %1053 = vmatpush.xpose.msra.mxu0 %v1036
    %1054 = vmatmul.f32.gmra.mxu0 %v1034
    %v1055 = vpop.f32.mrf.mxu0
    %v1056 = vadd.f32 0.0, %v1055
    %1057 = vdwg.mxu0
    %v1058 = vsel %vm141, %v941, 0
    %v1060 = vsel %vm141, %v955, 0
    %1062 = vmatpush.xpose.msra.mxu0 0.0
    %1063 = vmatpush.xpose.msra.mxu0 0.0
    %1064 = vmatpush.xpose.msra.mxu0 0.0
    %1065 = vmatpush.xpose.msra.mxu0 0.0
    %1066 = vmatpush.xpose.msra.mxu0 0.0
    %1067 = vmatpush.xpose.msra.mxu0 0.0
    %1068 = vmatpush.xpose.msra.mxu0 0.0
    %1069 = vmatpush.xpose.msra.mxu0 0.0
    %1070 = vmatpush.xpose.msra.mxu0 0.0
    %1071 = vmatpush.xpose.msra.mxu0 0.0
    %1072 = vmatpush.xpose.msra.mxu0 0.0
    %1073 = vmatpush.xpose.msra.mxu0 0.0
    %1074 = vmatpush.xpose.msra.mxu0 0.0
    %1075 = vmatpush.xpose.msra.mxu0 0.0
    %1076 = vmatpush.xpose.msra.mxu0 0.0
    %1077 = vmatpush.xpose.msra.mxu0 %v1060
    %1078 = vmatmul.f32.gmra.mxu0 %v1058
    %v1079 = vpop.f32.mrf.mxu0
    %v1080 = vadd.f32 0.0, %v1079
    %1081 = vdwg.mxu0
    %v1082 = vsel %vm141, %v943, 0
    %v1084 = vsel %vm141, %v957, 0
    %1086 = vmatpush.xpose.msra.mxu0 0.0
    %1087 = vmatpush.xpose.msra.mxu0 0.0
    %1088 = vmatpush.xpose.msra.mxu0 0.0
    %1089 = vmatpush.xpose.msra.mxu0 0.0
    %1090 = vmatpush.xpose.msra.mxu0 0.0
    %1091 = vmatpush.xpose.msra.mxu0 0.0
    %1092 = vmatpush.xpose.msra.mxu0 0.0
    %1093 = vmatpush.xpose.msra.mxu0 0.0
    %1094 = vmatpush.xpose.msra.mxu0 0.0
    %1095 = vmatpush.xpose.msra.mxu0 0.0
    %1096 = vmatpush.xpose.msra.mxu0 0.0
    %1097 = vmatpush.xpose.msra.mxu0 0.0
    %1098 = vmatpush.xpose.msra.mxu0 0.0
    %1099 = vmatpush.xpose.msra.mxu0 0.0
    %1100 = vmatpush.xpose.msra.mxu0 0.0
    %1101 = vmatpush.xpose.msra.mxu0 %v1084
    %1102 = vmatmul.f32.gmra.mxu0 %v1082
    %v1103 = vpop.f32.mrf.mxu0
    %v1104 = vadd.f32 0.0, %v1103
    %1105 = vdwg.mxu0
    %v1106 = vsel %vm141, %v945, 0
    %v1108 = vsel %vm141, %v959, 0
    %1110 = vmatpush.xpose.msra.mxu0 0.0
    %1111 = vmatpush.xpose.msra.mxu0 0.0
    %1112 = vmatpush.xpose.msra.mxu0 0.0
    %1113 = vmatpush.xpose.msra.mxu0 0.0
    %1114 = vmatpush.xpose.msra.mxu0 0.0
    %1115 = vmatpush.xpose.msra.mxu0 0.0
    %1116 = vmatpush.xpose.msra.mxu0 0.0
    %1117 = vmatpush.xpose.msra.mxu0 0.0
    %1118 = vmatpush.xpose.msra.mxu0 0.0
    %1119 = vmatpush.xpose.msra.mxu0 0.0
    %1120 = vmatpush.xpose.msra.mxu0 0.0
    %1121 = vmatpush.xpose.msra.mxu0 0.0
    %1122 = vmatpush.xpose.msra.mxu0 0.0
    %1123 = vmatpush.xpose.msra.mxu0 0.0
    %1124 = vmatpush.xpose.msra.mxu0 0.0
    %1125 = vmatpush.xpose.msra.mxu0 %v1108
    %1126 = vmatmul.f32.gmra.mxu0 %v1106
    %v1127 = vpop.f32.mrf.mxu0
    %v1128 = vadd.f32 0.0, %v1127
    %1129 = vdwg.mxu0
    %v1130 = vsel %vm141, %v947, 0
    %v1132 = vsel %vm141, %v961, 0
    %1134 = vmatpush.xpose.msra.mxu0 0.0
    %1135 = vmatpush.xpose.msra.mxu0 0.0
    %1136 = vmatpush.xpose.msra.mxu0 0.0
    %1137 = vmatpush.xpose.msra.mxu0 0.0
    %1138 = vmatpush.xpose.msra.mxu0 0.0
    %1139 = vmatpush.xpose.msra.mxu0 0.0
    %1140 = vmatpush.xpose.msra.mxu0 0.0
    %1141 = vmatpush.xpose.msra.mxu0 0.0
    %1142 = vmatpush.xpose.msra.mxu0 0.0
    %1143 = vmatpush.xpose.msra.mxu0 0.0
    %1144 = vmatpush.xpose.msra.mxu0 0.0
    %1145 = vmatpush.xpose.msra.mxu0 0.0
    %1146 = vmatpush.xpose.msra.mxu0 0.0
    %1147 = vmatpush.xpose.msra.mxu0 0.0
    %1148 = vmatpush.xpose.msra.mxu0 0.0
    %1149 = vmatpush.xpose.msra.mxu0 %v1132
    %1150 = vmatmul.f32.gmra.mxu0 %v1130
    %v1151 = vpop.f32.mrf.mxu0
    %v1152 = vadd.f32 0.0, %v1151
    %1153 = vdwg.mxu0
    %v1154 = vmul.f32 %v984, 0.35355338
    %v1155 = vmul.f32 %v1008, 0.35355338
    %v1156 = vmul.f32 %v1032, 0.35355338
    %v1157 = vmul.f32 %v1056, 0.35355338
    %v1158 = vmul.f32 %v1080, 0.35355338
    %v1159 = vmul.f32 %v1104, 0.35355338
    %v1160 = vmul.f32 %v1128, 0.35355338
    %v1161 = vmul.f32 %v1152, 0.35355338
    %v1162 = vmul.f32 %v1154, %v50
    %v1163 = vmul.f32 %v1155, %v51
    %v1164 = vmul.f32 %v1156, %v50
    %v1165 = vmul.f32 %v1157, %v51
    %v1166 = vmul.f32 %v1158, %v50
    %v1167 = vmul.f32 %v1159, %v51
    %v1168 = vmul.f32 %v1160, %v50
    %v1169 = vmul.f32 %v1161, %v51
    %v1170 = vadd.f32 %v1162, %v53
    %v1171 = vadd.f32 %v1163, %v54
    %v1172 = vadd.f32 %v1164, %v53
    %v1173 = vadd.f32 %v1165, %v54
    %v1174 = vadd.f32 %v1166, %v53
    %v1175 = vadd.f32 %v1167, %v54
    %v1176 = vadd.f32 %v1168, %v53
    %v1177 = vadd.f32 %v1169, %v54
    %v1178 = vsel %vm141, %v1170, -inf
    %1179 = vmax.xlane.f32.xlu0 %v1178
    %v1180 = vpop.xlane.xlu0 %1179
    %v1181 = vsel %vm141, %v1171, -inf
    %1182 = vmax.xlane.f32.xlu0 %v1181
    %v1183 = vpop.xlane.xlu0 %1182
    %v1184 = vsel %vm141, %v1172, -inf
    %1185 = vmax.xlane.f32.xlu0 %v1184
    %v1186 = vpop.xlane.xlu0 %1185
    %v1187 = vsel %vm141, %v1173, -inf
    %1188 = vmax.xlane.f32.xlu0 %v1187
    %v1189 = vpop.xlane.xlu0 %1188
    %v1190 = vsel %vm141, %v1174, -inf
    %1191 = vmax.xlane.f32.xlu0 %v1190
    %v1192 = vpop.xlane.xlu0 %1191
    %v1193 = vsel %vm141, %v1175, -inf
    %1194 = vmax.xlane.f32.xlu0 %v1193
    %v1195 = vpop.xlane.xlu0 %1194
    %v1196 = vsel %vm141, %v1176, -inf
    %1197 = vmax.xlane.f32.xlu0 %v1196
    %v1198 = vpop.xlane.xlu0 %1197
    %v1199 = vsel %vm141, %v1177, -inf
    %1200 = vmax.xlane.f32.xlu0 %v1199
    %v1201 = vpop.xlane.xlu0 %1200
    %v1202 = vsub.f32 %v1170, %v1180
    %v1203 = vsub.f32 %v1171, %v1183
    %v1204 = vsub.f32 %v1172, %v1186
    %v1205 = vsub.f32 %v1173, %v1189
    %v1206 = vsub.f32 %v1174, %v1192
    %v1207 = vsub.f32 %v1175, %v1195
    %v1208 = vsub.f32 %v1176, %v1198
    %v1209 = vsub.f32 %v1177, %v1201
    %v1210 = vmul.f32 %v1202, 1.442695
    %v1211 = vpow.pop %v1210
    %v1212 = vmul.f32 %v1203, 1.442695
    %v1213 = vpow.pop %v1212
    %v1214 = vmul.f32 %v1204, 1.442695
    %v1215 = vpow.pop %v1214
    %v1216 = vmul.f32 %v1205, 1.442695
    %v1217 = vpow.pop %v1216
    %v1218 = vmul.f32 %v1206, 1.442695
    %v1219 = vpow.pop %v1218
    %v1220 = vmul.f32 %v1207, 1.442695
    %v1221 = vpow.pop %v1220
    %v1222 = vmul.f32 %v1208, 1.442695
    %v1223 = vpow.pop %v1222
    %v1224 = vmul.f32 %v1209, 1.442695
    %v1225 = vpow.pop %v1224
    %v1226 = vsel %vm141, %v1211, 0.0
    %1227 = vadd.xlane.f32.xlu0 %v1226
    %v1228 = vpop.xlane.xlu0 %1227
    %v1229 = vsel %vm141, %v1213, 0.0
    %1230 = vadd.xlane.f32.xlu0 %v1229
    %v1231 = vpop.xlane.xlu0 %1230
    %v1232 = vsel %vm141, %v1215, 0.0
    %1233 = vadd.xlane.f32.xlu0 %v1232
    %v1234 = vpop.xlane.xlu0 %1233
    %v1235 = vsel %vm141, %v1217, 0.0
    %1236 = vadd.xlane.f32.xlu0 %v1235
    %v1237 = vpop.xlane.xlu0 %1236
    %v1238 = vsel %vm141, %v1219, 0.0
    %1239 = vadd.xlane.f32.xlu0 %v1238
    %v1240 = vpop.xlane.xlu0 %1239
    %v1241 = vsel %vm141, %v1221, 0.0
    %1242 = vadd.xlane.f32.xlu0 %v1241
    %v1243 = vpop.xlane.xlu0 %1242
    %v1244 = vsel %vm141, %v1223, 0.0
    %1245 = vadd.xlane.f32.xlu0 %v1244
    %v1246 = vpop.xlane.xlu0 %1245
    %v1247 = vsel %vm141, %v1225, 0.0
    %1248 = vadd.xlane.f32.xlu0 %v1247
    %v1249 = vpop.xlane.xlu0 %1248
    %v1250 = vrcp.pop %v1228
    %v1251 = vmul.f32 %v1228, %v1250
    %v1252 = vsub.f32 1.0, %v1251
    %v1253 = vmul.f32 %v1250, %v1252
    %v1254 = vadd.f32 %v1250, %v1253
    %vm1255 = vweird.f32 %v1228
    %vm1256 = vweird.f32 %v1250
    %vm1257 = vmor %vm1255, %vm1256
    %v1258 = vsel %vm1257, %v1250, %v1254
    %v1259 = vand.u32 2147483647, %v1228
    %vm1260 = vcmp.eq.f32.partialorder %v1259, 8.507059e+37
    %v1261 = vand.u32 %v1228, 2147483648
    %v1262 = vor.u32 1.1754944e-38, %v1261
    %v1263 = vsel %vm1260, %v1262, %v1258
    %v1264 = vmul.f32 %v1211, %v1263
    %v1265 = vrcp.pop %v1231
    %v1266 = vmul.f32 %v1231, %v1265
    %v1267 = vsub.f32 1.0, %v1266
    %v1268 = vmul.f32 %v1265, %v1267
    %v1269 = vadd.f32 %v1265, %v1268
    %vm1270 = vweird.f32 %v1231
    %vm1271 = vweird.f32 %v1265
    %vm1272 = vmor %vm1270, %vm1271
    %v1273 = vsel %vm1272, %v1265, %v1269
    %v1274 = vand.u32 2147483647, %v1231
    %vm1275 = vcmp.eq.f32.partialorder %v1274, 8.507059e+37
    %v1276 = vand.u32 %v1231, 2147483648
    %v1277 = vor.u32 1.1754944e-38, %v1276
    %v1278 = vsel %vm1275, %v1277, %v1273
    %v1279 = vmul.f32 %v1213, %v1278
    %v1280 = vrcp.pop %v1234
    %v1281 = vmul.f32 %v1234, %v1280
    %v1282 = vsub.f32 1.0, %v1281
    %v1283 = vmul.f32 %v1280, %v1282
    %v1284 = vadd.f32 %v1280, %v1283
    %vm1285 = vweird.f32 %v1234
    %vm1286 = vweird.f32 %v1280
    %vm1287 = vmor %vm1285, %vm1286
    %v1288 = vsel %vm1287, %v1280, %v1284
    %v1289 = vand.u32 2147483647, %v1234
    %vm1290 = vcmp.eq.f32.partialorder %v1289, 8.507059e+37
    %v1291 = vand.u32 %v1234, 2147483648
    %v1292 = vor.u32 1.1754944e-38, %v1291
    %v1293 = vsel %vm1290, %v1292, %v1288
    %v1294 = vmul.f32 %v1215, %v1293
    %v1295 = vrcp.pop %v1237
    %v1296 = vmul.f32 %v1237, %v1295
    %v1297 = vsub.f32 1.0, %v1296
    %v1298 = vmul.f32 %v1295, %v1297
    %v1299 = vadd.f32 %v1295, %v1298
    %vm1300 = vweird.f32 %v1237
    %vm1301 = vweird.f32 %v1295
    %vm1302 = vmor %vm1300, %vm1301
    %v1303 = vsel %vm1302, %v1295, %v1299
    %v1304 = vand.u32 2147483647, %v1237
    %vm1305 = vcmp.eq.f32.partialorder %v1304, 8.507059e+37
    %v1306 = vand.u32 %v1237, 2147483648
    %v1307 = vor.u32 1.1754944e-38, %v1306
    %v1308 = vsel %vm1305, %v1307, %v1303
    %v1309 = vmul.f32 %v1217, %v1308
    %v1310 = vrcp.pop %v1240
    %v1311 = vmul.f32 %v1240, %v1310
    %v1312 = vsub.f32 1.0, %v1311
    %v1313 = vmul.f32 %v1310, %v1312
    %v1314 = vadd.f32 %v1310, %v1313
    %vm1315 = vweird.f32 %v1240
    %vm1316 = vweird.f32 %v1310
    %vm1317 = vmor %vm1315, %vm1316
    %v1318 = vsel %vm1317, %v1310, %v1314
    %v1319 = vand.u32 2147483647, %v1240
    %vm1320 = vcmp.eq.f32.partialorder %v1319, 8.507059e+37
    %v1321 = vand.u32 %v1240, 2147483648
    %v1322 = vor.u32 1.1754944e-38, %v1321
    %v1323 = vsel %vm1320, %v1322, %v1318
    %v1324 = vmul.f32 %v1219, %v1323
    %v1325 = vrcp.pop %v1243
    %v1326 = vmul.f32 %v1243, %v1325
    %v1327 = vsub.f32 1.0, %v1326
    %v1328 = vmul.f32 %v1325, %v1327
    %v1329 = vadd.f32 %v1325, %v1328
    %vm1330 = vweird.f32 %v1243
    %vm1331 = vweird.f32 %v1325
    %vm1332 = vmor %vm1330, %vm1331
    %v1333 = vsel %vm1332, %v1325, %v1329
    %v1334 = vand.u32 2147483647, %v1243
    %vm1335 = vcmp.eq.f32.partialorder %v1334, 8.507059e+37
    %v1336 = vand.u32 %v1243, 2147483648
    %v1337 = vor.u32 1.1754944e-38, %v1336
    %v1338 = vsel %vm1335, %v1337, %v1333
    %v1339 = vmul.f32 %v1221, %v1338
    %v1340 = vrcp.pop %v1246
    %v1341 = vmul.f32 %v1246, %v1340
    %v1342 = vsub.f32 1.0, %v1341
    %v1343 = vmul.f32 %v1340, %v1342
    %v1344 = vadd.f32 %v1340, %v1343
    %vm1345 = vweird.f32 %v1246
    %vm1346 = vweird.f32 %v1340
    %vm1347 = vmor %vm1345, %vm1346
    %v1348 = vsel %vm1347, %v1340, %v1344
    %v1349 = vand.u32 2147483647, %v1246
    %vm1350 = vcmp.eq.f32.partialorder %v1349, 8.507059e+37
    %v1351 = vand.u32 %v1246, 2147483648
    %v1352 = vor.u32 1.1754944e-38, %v1351
    %v1353 = vsel %vm1350, %v1352, %v1348
    %v1354 = vmul.f32 %v1223, %v1353
    %v1355 = vrcp.pop %v1249
    %v1356 = vmul.f32 %v1249, %v1355
    %v1357 = vsub.f32 1.0, %v1356
    %v1358 = vmul.f32 %v1355, %v1357
    %v1359 = vadd.f32 %v1355, %v1358
    %vm1360 = vweird.f32 %v1249
    %vm1361 = vweird.f32 %v1355
    %vm1362 = vmor %vm1360, %vm1361
    %v1363 = vsel %vm1362, %v1355, %v1359
    %v1364 = vand.u32 2147483647, %v1249
    %vm1365 = vcmp.eq.f32.partialorder %v1364, 8.507059e+37
    %v1366 = vand.u32 %v1249, 2147483648
    %v1367 = vor.u32 1.1754944e-38, %v1366
    %v1368 = vsel %vm1365, %v1367, %v1363
    %v1369 = vmul.f32 %v1225, %v1368
    %1370 = vrot.lane.b32.xlu0 %v932, 96
    %v1371 = vpop.permute.xlu0 %1370
    %v1374 = vsel %vm141, %v1264, 0
    %1376 = vmatpush.msra.mxu0 0.0
    %1377 = vmatpush.msra.mxu0 0.0
    %1378 = vmatpush.msra.mxu0 0.0
    %1379 = vmatpush.msra.mxu0 0.0
    %1380 = vmatpush.msra.mxu0 0.0
    %1381 = vmatpush.msra.mxu0 0.0
    %1382 = vmatpush.msra.mxu0 0.0
    %1383 = vmatpush.msra.mxu0 0.0
    %1384 = vmatpush.msra.mxu0 0.0
    %1385 = vmatpush.msra.mxu0 0.0
    %1386 = vmatpush.msra.mxu0 0.0
    %1387 = vmatpush.msra.mxu0 0.0
    %1388 = vmatpush.msra.mxu0 0.0
    %1389 = vmatpush.msra.mxu0 0.0
    %1390 = vmatpush.msra.mxu0 0.0
    %1391 = vmatpush.msra.mxu0 %v1371
    %1392 = vmatmul.f32.gmra.mxu0 %v1374
    %v1393 = vpop.f32.mrf.mxu0
    %v1394 = vadd.f32 0.0, %v1393
    %1395 = vdwg.mxu0
    %1396 = vrot.lane.b32.xlu0 %v933, 96
    %v1397 = vpop.permute.xlu0 %1396
    %v1400 = vsel %vm141, %v1279, 0
    %1402 = vmatpush.msra.mxu0 0.0
    %1403 = vmatpush.msra.mxu0 0.0
    %1404 = vmatpush.msra.mxu0 0.0
    %1405 = vmatpush.msra.mxu0 0.0
    %1406 = vmatpush.msra.mxu0 0.0
    %1407 = vmatpush.msra.mxu0 0.0
    %1408 = vmatpush.msra.mxu0 0.0
    %1409 = vmatpush.msra.mxu0 0.0
    %1410 = vmatpush.msra.mxu0 0.0
    %1411 = vmatpush.msra.mxu0 0.0
    %1412 = vmatpush.msra.mxu0 0.0
    %1413 = vmatpush.msra.mxu0 0.0
    %1414 = vmatpush.msra.mxu0 0.0
    %1415 = vmatpush.msra.mxu0 0.0
    %1416 = vmatpush.msra.mxu0 0.0
    %1417 = vmatpush.msra.mxu0 %v1397
    %1418 = vmatmul.f32.gmra.mxu0 %v1400
    %v1419 = vpop.f32.mrf.mxu0
    %v1420 = vadd.f32 0.0, %v1419
    %1421 = vdwg.mxu0
    %1422 = vrot.lane.b32.xlu0 %v951, 96
    %v1423 = vpop.permute.xlu0 %1422
    %v1426 = vsel %vm141, %v1294, 0
    %1428 = vmatpush.msra.mxu0 0.0
    %1429 = vmatpush.msra.mxu0 0.0
    %1430 = vmatpush.msra.mxu0 0.0
    %1431 = vmatpush.msra.mxu0 0.0
    %1432 = vmatpush.msra.mxu0 0.0
    %1433 = vmatpush.msra.mxu0 0.0
    %1434 = vmatpush.msra.mxu0 0.0
    %1435 = vmatpush.msra.mxu0 0.0
    %1436 = vmatpush.msra.mxu0 0.0
    %1437 = vmatpush.msra.mxu0 0.0
    %1438 = vmatpush.msra.mxu0 0.0
    %1439 = vmatpush.msra.mxu0 0.0
    %1440 = vmatpush.msra.mxu0 0.0
    %1441 = vmatpush.msra.mxu0 0.0
    %1442 = vmatpush.msra.mxu0 0.0
    %1443 = vmatpush.msra.mxu0 %v1423
    %1444 = vmatmul.f32.gmra.mxu0 %v1426
    %v1445 = vpop.f32.mrf.mxu0
    %v1446 = vadd.f32 0.0, %v1445
    %1447 = vdwg.mxu0
    %1448 = vrot.lane.b32.xlu0 %v953, 96
    %v1449 = vpop.permute.xlu0 %1448
    %v1452 = vsel %vm141, %v1309, 0
    %1454 = vmatpush.msra.mxu0 0.0
    %1455 = vmatpush.msra.mxu0 0.0
    %1456 = vmatpush.msra.mxu0 0.0
    %1457 = vmatpush.msra.mxu0 0.0
    %1458 = vmatpush.msra.mxu0 0.0
    %1459 = vmatpush.msra.mxu0 0.0
    %1460 = vmatpush.msra.mxu0 0.0
    %1461 = vmatpush.msra.mxu0 0.0
    %1462 = vmatpush.msra.mxu0 0.0
    %1463 = vmatpush.msra.mxu0 0.0
    %1464 = vmatpush.msra.mxu0 0.0
    %1465 = vmatpush.msra.mxu0 0.0
    %1466 = vmatpush.msra.mxu0 0.0
    %1467 = vmatpush.msra.mxu0 0.0
    %1468 = vmatpush.msra.mxu0 0.0
    %1469 = vmatpush.msra.mxu0 %v1449
    %1470 = vmatmul.f32.gmra.mxu0 %v1452
    %v1471 = vpop.f32.mrf.mxu0
    %v1472 = vadd.f32 0.0, %v1471
    %1473 = vdwg.mxu0
    %1474 = vrot.lane.b32.xlu0 %v955, 96
    %v1475 = vpop.permute.xlu0 %1474
    %v1478 = vsel %vm141, %v1324, 0
    %1480 = vmatpush.msra.mxu0 0.0
    %1481 = vmatpush.msra.mxu0 0.0
    %1482 = vmatpush.msra.mxu0 0.0
    %1483 = vmatpush.msra.mxu0 0.0
    %1484 = vmatpush.msra.mxu0 0.0
    %1485 = vmatpush.msra.mxu0 0.0
    %1486 = vmatpush.msra.mxu0 0.0
    %1487 = vmatpush.msra.mxu0 0.0
    %1488 = vmatpush.msra.mxu0 0.0
    %1489 = vmatpush.msra.mxu0 0.0
    %1490 = vmatpush.msra.mxu0 0.0
    %1491 = vmatpush.msra.mxu0 0.0
    %1492 = vmatpush.msra.mxu0 0.0
    %1493 = vmatpush.msra.mxu0 0.0
    %1494 = vmatpush.msra.mxu0 0.0
    %1495 = vmatpush.msra.mxu0 %v1475
    %1496 = vmatmul.f32.gmra.mxu0 %v1478
    %v1497 = vpop.f32.mrf.mxu0
    %v1498 = vadd.f32 0.0, %v1497
    %1499 = vdwg.mxu0
    %1500 = vrot.lane.b32.xlu0 %v957, 96
    %v1501 = vpop.permute.xlu0 %1500
    %v1504 = vsel %vm141, %v1339, 0
    %1506 = vmatpush.msra.mxu0 0.0
    %1507 = vmatpush.msra.mxu0 0.0
    %1508 = vmatpush.msra.mxu0 0.0
    %1509 = vmatpush.msra.mxu0 0.0
    %1510 = vmatpush.msra.mxu0 0.0
    %1511 = vmatpush.msra.mxu0 0.0
    %1512 = vmatpush.msra.mxu0 0.0
    %1513 = vmatpush.msra.mxu0 0.0
    %1514 = vmatpush.msra.mxu0 0.0
    %1515 = vmatpush.msra.mxu0 0.0
    %1516 = vmatpush.msra.mxu0 0.0
    %1517 = vmatpush.msra.mxu0 0.0
    %1518 = vmatpush.msra.mxu0 0.0
    %1519 = vmatpush.msra.mxu0 0.0
    %1520 = vmatpush.msra.mxu0 0.0
    %1521 = vmatpush.msra.mxu0 %v1501
    %1522 = vmatmul.f32.gmra.mxu0 %v1504
    %v1523 = vpop.f32.mrf.mxu0
    %v1524 = vadd.f32 0.0, %v1523
    %1525 = vdwg.mxu0
    %1526 = vrot.lane.b32.xlu0 %v959, 96
    %v1527 = vpop.permute.xlu0 %1526
    %v1530 = vsel %vm141, %v1354, 0
    %1532 = vmatpush.msra.mxu0 0.0
    %1533 = vmatpush.msra.mxu0 0.0
    %1534 = vmatpush.msra.mxu0 0.0
    %1535 = vmatpush.msra.mxu0 0.0
    %1536 = vmatpush.msra.mxu0 0.0
    %1537 = vmatpush.msra.mxu0 0.0
    %1538 = vmatpush.msra.mxu0 0.0
    %1539 = vmatpush.msra.mxu0 0.0
    %1540 = vmatpush.msra.mxu0 0.0
    %1541 = vmatpush.msra.mxu0 0.0
    %1542 = vmatpush.msra.mxu0 0.0
    %1543 = vmatpush.msra.mxu0 0.0
    %1544 = vmatpush.msra.mxu0 0.0
    %1545 = vmatpush.msra.mxu0 0.0
    %1546 = vmatpush.msra.mxu0 0.0
    %1547 = vmatpush.msra.mxu0 %v1527
    %1548 = vmatmul.f32.gmra.mxu0 %v1530
    %v1549 = vpop.f32.mrf.mxu0
    %v1550 = vadd.f32 0.0, %v1549
    %1551 = vdwg.mxu0
    %1552 = vrot.lane.b32.xlu0 %v961, 96
    %v1553 = vpop.permute.xlu0 %1552
    %v1556 = vsel %vm141, %v1369, 0
    %1558 = vmatpush.msra.mxu0 0.0
    %1559 = vmatpush.msra.mxu0 0.0
    %1560 = vmatpush.msra.mxu0 0.0
    %1561 = vmatpush.msra.mxu0 0.0
    %1562 = vmatpush.msra.mxu0 0.0
    %1563 = vmatpush.msra.mxu0 0.0
    %1564 = vmatpush.msra.mxu0 0.0
    %1565 = vmatpush.msra.mxu0 0.0
    %1566 = vmatpush.msra.mxu0 0.0
    %1567 = vmatpush.msra.mxu0 0.0
    %1568 = vmatpush.msra.mxu0 0.0
    %1569 = vmatpush.msra.mxu0 0.0
    %1570 = vmatpush.msra.mxu0 0.0
    %1571 = vmatpush.msra.mxu0 0.0
    %1572 = vmatpush.msra.mxu0 0.0
    %1573 = vmatpush.msra.mxu0 %v1553
    %1574 = vmatmul.f32.gmra.mxu0 %v1556
    %v1575 = vpop.f32.mrf.mxu0
    %v1576 = vadd.f32 0.0, %v1575
    %1577 = vdwg.mxu0
    %1580 = vrot.lane.b32.xlu0 %v1446, 8
    %v1581 = vpop.permute.xlu0 %1580
    %1582 = vrot.lane.b32.xlu0 %v1472, 8
    %v1583 = vpop.permute.xlu0 %1582
    %1588 = vrot.lane.b32.xlu0 %v1498, 16
    %v1589 = vpop.permute.xlu0 %1588
    %1590 = vrot.lane.b32.xlu0 %v1524, 16
    %v1591 = vpop.permute.xlu0 %1590
    %1596 = vrot.lane.b32.xlu0 %v1550, 24
    %v1597 = vpop.permute.xlu0 %1596
    %1598 = vrot.lane.b32.xlu0 %v1576, 24
    %v1599 = vpop.permute.xlu0 %1598
    %v1602 = vsel %vm141, %v1394, %v1581
    %v1603 = vsel %vm141, %v1420, %v1583
    %v1604 = vsel %vm798, %v1602, %v1589
    %v1605 = vsel %vm798, %v1603, %v1591
    %v1606 = vsel %vm801, %v1604, %v1597
    %v1607 = vsel %vm801, %v1605, %v1599
    %s1608 = scalar_lea.vmem %s7, 32
    %v1609 = vld [vmem:[%s1608] sm:$0xff]
    %v1610 = vld [vmem:[%s1608 + $0x8] sm:$0xff]
    %v1611 = vld [vmem:[%s1608 + $0x10] sm:$0xff]
    %v1612 = vld [vmem:[%s1608 + $0x18] sm:$0xff]
    %v1613 = vperm.slane %v89, 7
    %v1615 = vsel %vm59, %v1606, 0
    %v1618 = vsel %vm59, %v1607, 0
    %1620 = vmatpush.msra.mxu0 0.0
    %1621 = vmatpush.msra.mxu0 0.0
    %1622 = vmatpush.msra.mxu0 0.0
    %1623 = vmatpush.msra.mxu0 0.0
    %1624 = vmatpush.msra.mxu0 0.0
    %1625 = vmatpush.msra.mxu0 0.0
    %1626 = vmatpush.msra.mxu0 0.0
    %1627 = vmatpush.msra.mxu0 0.0
    %1628 = vmatpush.msra.mxu0 0.0
    %1629 = vmatpush.msra.mxu0 0.0
    %1630 = vmatpush.msra.mxu0 0.0
    %1631 = vmatpush.msra.mxu0 0.0
    %1632 = vmatpush.msra.mxu0 %v1612
    %1633 = vmatpush.msra.mxu0 %v1611
    %1634 = vmatpush.msra.mxu0 %v1610
    %1635 = vmatpush.msra.mxu0 %v1609
    %1636 = vmatmul.f32.gmra.mxu0 %v1615
    %v1637 = vpop.f32.mrf.mxu0
    %v1638 = vadd.f32 %v1613, %v1637
    %1639 = vmatmul.f32.gmra.mxu0 %v1618
    %v1640 = vpop.f32.mrf.mxu0
    %v1641 = vadd.f32 %v1613, %v1640
    %1642 = vdwg.mxu0
    %v1643 = vadd.f32 %v1638, %v895
    %v1644 = vadd.f32 %v1641, %v896
    %v1645 = vsel %vm59, %v1643, 0.0
    %1646 = vadd.xlane.f32.xlu0 %v1645
    %v1647 = vpop.xlane.xlu0 %1646
    %v1648 = vsel %vm59, %v1644, 0.0
    %1649 = vadd.xlane.f32.xlu0 %v1648
    %v1650 = vpop.xlane.xlu0 %1649
    %v1651 = vmul.f32 %v1647, %v852
    %v1652 = vmul.f32 %v1650, %v852
    %v1653 = vsub.f32 %v1643, %v1651
    %v1654 = vsub.f32 %v1644, %v1652
    %v1655 = vmul.f32 %v1653, %v1653
    %v1656 = vmul.f32 %v1654, %v1654
    %v1657 = vsel %vm59, %v1655, 0.0
    %1658 = vadd.xlane.f32.xlu0 %v1657
    %v1659 = vpop.xlane.xlu0 %1658
    %v1660 = vsel %vm59, %v1656, 0.0
    %1661 = vadd.xlane.f32.xlu0 %v1660
    %v1662 = vpop.xlane.xlu0 %1661
    %v1663 = vmul.f32 %v1659, %v852
    %v1664 = vmul.f32 %v1662, %v852
    %v1665 = vadd.f32 %v1663, 1e-05
    %v1666 = vadd.f32 %v1664, 1e-05
    %v1667 = vrsqrt.pop %v1665
    %v1668 = vmul.f32 %v1667, %v1665
    %v1669 = vmul.f32 %v1668, %v1667
    %v1670 = vmul.f32 0.5, %v1669
    %v1671 = vsub.f32 1.5, %v1670
    %v1672 = vmul.f32 %v1667, %v1671
    %vm1673 = vweird.f32 %v1665
    %vm1674 = vweird.f32 %v1667
    %vm1675 = vmor %vm1673, %vm1674
    %v1676 = vsel %vm1675, %v1667, %v1672
    %v1677 = vrsqrt.pop %v1666
    %v1678 = vmul.f32 %v1677, %v1666
    %v1679 = vmul.f32 %v1678, %v1677
    %v1680 = vmul.f32 0.5, %v1679
    %v1681 = vsub.f32 1.5, %v1680
    %v1682 = vmul.f32 %v1677, %v1681
    %vm1683 = vweird.f32 %v1666
    %vm1684 = vweird.f32 %v1677
    %vm1685 = vmor %vm1683, %vm1684
    %v1686 = vsel %vm1685, %v1677, %v1682
    %v1687 = vmul.f32 %v1653, %v1676
    %v1688 = vmul.f32 %v1654, %v1686
    %v1689 = vperm.slane %v89, 2
    %v1690 = vmul.f32 %v1687, %v1689
    %v1691 = vmul.f32 %v1688, %v1689
    %v1692 = vperm.slane %v89, 3
    %v1693 = vadd.f32 %v1690, %v1692
    %v1694 = vadd.f32 %v1691, %v1692
    %v1695 = vld [vmem:[%s8] sm:$0xff]
    %v1696 = vld [vmem:[%s8 + $0x8] sm:$0xff]
    %v1697 = vld [vmem:[%s8 + $0x10] sm:$0xff]
    %v1698 = vld [vmem:[%s8 + $0x18] sm:$0xff]
    %v1699 = vperm.slane %v90, 2
    %v1701 = vsel %vm59, %v1693, 0
    %v1704 = vsel %vm59, %v1694, 0
    %1706 = vmatpush.msra.mxu0 0.0
    %1707 = vmatpush.msra.mxu0 0.0
    %1708 = vmatpush.msra.mxu0 0.0
    %1709 = vmatpush.msra.mxu0 0.0
    %1710 = vmatpush.msra.mxu0 0.0
    %1711 = vmatpush.msra.mxu0 0.0
    %1712 = vmatpush.msra.mxu0 0.0
    %1713 = vmatpush.msra.mxu0 0.0
    %1714 = vmatpush.msra.mxu0 0.0
    %1715 = vmatpush.msra.mxu0 0.0
    %1716 = vmatpush.msra.mxu0 0.0
    %1717 = vmatpush.msra.mxu0 0.0
    %1718 = vmatpush.msra.mxu0 %v1698
    %1719 = vmatpush.msra.mxu0 %v1697
    %1720 = vmatpush.msra.mxu0 %v1696
    %1721 = vmatpush.msra.mxu0 %v1695
    %1722 = vmatmul.f32.gmra.mxu0 %v1701
    %v1723 = vpop.f32.mrf.mxu0
    %v1724 = vadd.f32 %v1699, %v1723
    %1725 = vmatmul.f32.gmra.mxu0 %v1704
    %v1726 = vpop.f32.mrf.mxu0
    %v1727 = vadd.f32 %v1699, %v1726
    %1728 = vdwg.mxu0
    %v1729 = vmax.f32 %v1724, 0.0
    %v1730 = vmax.f32 %v1727, 0.0
    %v1731 = vld [vmem:[%s9] sm:$0xff]
    %v1732 = vld [vmem:[%s9 + $0x8] sm:$0xff]
    %v1733 = vld [vmem:[%s9 + $0x10] sm:$0xff]
    %v1734 = vld [vmem:[%s9 + $0x18] sm:$0xff]
    %v1735 = vld [vmem:[%s9 + $0x20] sm:$0xff]
    %v1736 = vld [vmem:[%s9 + $0x28] sm:$0xff]
    %v1737 = vld [vmem:[%s9 + $0x30] sm:$0xff]
    %v1738 = vld [vmem:[%s9 + $0x38] sm:$0xff]
    %v1739 = vperm.slane %v90, 3
    %vm1740 = vcmask 523264
    %v1742 = vsel %vm1740, %v1729, 0
    %v1745 = vsel %vm1740, %v1730, 0
    %1747 = vmatpush.msra.mxu0 0.0
    %1748 = vmatpush.msra.mxu0 0.0
    %1749 = vmatpush.msra.mxu0 0.0
    %1750 = vmatpush.msra.mxu0 0.0
    %1751 = vmatpush.msra.mxu0 0.0
    %1752 = vmatpush.msra.mxu0 0.0
    %1753 = vmatpush.msra.mxu0 0.0
    %1754 = vmatpush.msra.mxu0 0.0
    %1755 = vmatpush.msra.mxu0 %v1738
    %1756 = vmatpush.msra.mxu0 %v1737
    %1757 = vmatpush.msra.mxu0 %v1736
    %1758 = vmatpush.msra.mxu0 %v1735
    %1759 = vmatpush.msra.mxu0 %v1734
    %1760 = vmatpush.msra.mxu0 %v1733
    %1761 = vmatpush.msra.mxu0 %v1732
    %1762 = vmatpush.msra.mxu0 %v1731
    %1763 = vmatmul.f32.gmra.mxu0 %v1742
    %v1764 = vpop.f32.mrf.mxu0
    %v1765 = vadd.f32 %v1739, %v1764
    %1766 = vmatmul.f32.gmra.mxu0 %v1745
    %v1767 = vpop.f32.mrf.mxu0
    %v1768 = vadd.f32 %v1739, %v1767
    %1769 = vdwg.mxu0
    %v1770 = vadd.f32 %v1765, %v1693
    %v1771 = vadd.f32 %v1768, %v1694
    %v1772 = vsel %vm59, %v1770, 0.0
    %1773 = vadd.xlane.f32.xlu0 %v1772
    %v1774 = vpop.xlane.xlu0 %1773
    %v1775 = vsel %vm59, %v1771, 0.0
    %1776 = vadd.xlane.f32.xlu0 %v1775
    %v1777 = vpop.xlane.xlu0 %1776
    %v1778 = vmul.f32 %v1774, %v852
    %v1779 = vmul.f32 %v1777, %v852
    %v1780 = vsub.f32 %v1770, %v1778
    %v1781 = vsub.f32 %v1771, %v1779
    %v1782 = vmul.f32 %v1780, %v1780
    %v1783 = vmul.f32 %v1781, %v1781
    %v1784 = vsel %vm59, %v1782, 0.0
    %1785 = vadd.xlane.f32.xlu0 %v1784
    %v1786 = vpop.xlane.xlu0 %1785
    %v1787 = vsel %vm59, %v1783, 0.0
    %1788 = vadd.xlane.f32.xlu0 %v1787
    %v1789 = vpop.xlane.xlu0 %1788
    %v1790 = vmul.f32 %v1786, %v852
    %v1791 = vmul.f32 %v1789, %v852
    %v1792 = vadd.f32 %v1790, 1e-05
    %v1793 = vadd.f32 %v1791, 1e-05
    %v1794 = vrsqrt.pop %v1792
    %v1795 = vmul.f32 %v1794, %v1792
    %v1796 = vmul.f32 %v1795, %v1794
    %v1797 = vmul.f32 0.5, %v1796
    %v1798 = vsub.f32 1.5, %v1797
    %v1799 = vmul.f32 %v1794, %v1798
    %vm1800 = vweird.f32 %v1792
    %vm1801 = vweird.f32 %v1794
    %vm1802 = vmor %vm1800, %vm1801
    %v1803 = vsel %vm1802, %v1794, %v1799
    %v1804 = vrsqrt.pop %v1793
    %v1805 = vmul.f32 %v1804, %v1793
    %v1806 = vmul.f32 %v1805, %v1804
    %v1807 = vmul.f32 0.5, %v1806
    %v1808 = vsub.f32 1.5, %v1807
    %v1809 = vmul.f32 %v1804, %v1808
    %vm1810 = vweird.f32 %v1793
    %vm1811 = vweird.f32 %v1804
    %vm1812 = vmor %vm1810, %vm1811
    %v1813 = vsel %vm1812, %v1804, %v1809
    %v1814 = vmul.f32 %v1780, %v1803
    %v1815 = vmul.f32 %v1781, %v1813
    %v1816 = vperm.slane %v89, 4
    %v1817 = vmul.f32 %v1814, %v1816
    %v1818 = vmul.f32 %v1815, %v1816
    %v1819 = vperm.slane %v89, 5
    %v1820 = vadd.f32 %v1817, %v1819
    %v1821 = vadd.f32 %v1818, %v1819
    %1822 = vrot.lane.b32.xlu0 %v473, 8
    %v1823 = vpop.permute.xlu0 %1822
    %1825 = vrot.lane.b32.xlu0 %v488, 16
    %v1826 = vpop.permute.xlu0 %1825
    %1828 = vrot.lane.b32.xlu0 %v503, 24
    %v1829 = vpop.permute.xlu0 %1828
    %1831 = vrot.lane.b32.xlu0 %v518, 32
    %v1832 = vpop.permute.xlu0 %1831
    %1834 = vrot.lane.b32.xlu0 %v533, 40
    %v1835 = vpop.permute.xlu0 %1834
    %1837 = vrot.lane.b32.xlu0 %v548, 48
    %v1838 = vpop.permute.xlu0 %1837
    %1840 = vrot.lane.b32.xlu0 %v563, 56
    %v1841 = vpop.permute.xlu0 %1840
    %1843 = vrot.lane.b32.xlu0 %v1264, 64
    %v1844 = vpop.permute.xlu0 %1843
    %1846 = vrot.lane.b32.xlu0 %v1279, 72
    %v1847 = vpop.permute.xlu0 %1846
    %1849 = vrot.lane.b32.xlu0 %v1294, 80
    %v1850 = vpop.permute.xlu0 %1849
    %1852 = vrot.lane.b32.xlu0 %v1309, 88
    %v1853 = vpop.permute.xlu0 %1852
    %1855 = vrot.lane.b32.xlu0 %v1324, 96
    %v1856 = vpop.permute.xlu0 %1855
    %1858 = vrot.lane.b32.xlu0 %v1339, 104
    %v1859 = vpop.permute.xlu0 %1858
    %1861 = vrot.lane.b32.xlu0 %v1354, 112
    %v1862 = vpop.permute.xlu0 %1861
    %1864 = vrot.lane.b32.xlu0 %v1369, 120
    %v1865 = vpop.permute.xlu0 %1864
    %v1867 = vsel %vm141, %v458, %v1823
    %v1868 = vsel %vm798, %v1867, %v1826
    %v1869 = vsel %vm801, %v1868, %v1829
    %v1870 = vsel %vm59, %v1869, %v1832
    %vm1871 = vcmask 326656
    %v1872 = vsel %vm1871, %v1870, %v1835
    %vm1873 = vcmask 392192
    %v1874 = vsel %vm1873, %v1872, %v1838
    %vm1875 = vcmask 457728
    %v1876 = vsel %vm1875, %v1874, %v1841
    %v1877 = vsel %vm1740, %v1876, %v1844
    %vm1878 = vcmask 588800
    %v1879 = vsel %vm1878, %v1877, %v1847
    %vm1880 = vcmask 654336
    %v1881 = vsel %vm1880, %v1879, %v1850
    %vm1882 = vcmask 719872
    %v1883 = vsel %vm1882, %v1881, %v1853
    %vm1884 = vcmask 785408
    %v1885 = vsel %vm1884, %v1883, %v1856
    %vm1886 = vcmask 850944
    %v1887 = vsel %vm1886, %v1885, %v1859
    %vm1888 = vcmask 916480
    %v1889 = vsel %vm1888, %v1887, %v1862
    %vm1890 = vcmask 982016
    %v1891 = vsel %vm1890, %v1889, %v1865
    %1892 = vst [vmem:[%s12] sm:$0xff] %v1891
    %s1893 = scalar_lea.vmem %s10, 16
    %v1894 = vld [vmem:[%s1893] sm:$0xff]
    %v1895 = vld [vmem:[%s1893 + $0x8] sm:$0x1f]
    %s1896 = scalar_lea.vmem %s4, 32
    %v1897 = vld [vmem:[%s1896] sm:$0xff]
    %v1898 = vld [vmem:[%s1896 + $0x8] sm:$0xff]
    %v1899 = vld [vmem:[%s1896 + $0x10] sm:$0xff]
    %v1900 = vld [vmem:[%s1896 + $0x18] sm:$0xff]
    %v1901 = vperm.slane %v1895, 0
    %v1903 = vsel %vm59, %v1820, 0
    %v1906 = vsel %vm59, %v1821, 0
    %1908 = vmatpush.msra.mxu0 0.0
    %1909 = vmatpush.msra.mxu0 0.0
    %1910 = vmatpush.msra.mxu0 0.0
    %1911 = vmatpush.msra.mxu0 0.0
    %1912 = vmatpush.msra.mxu0 0.0
    %1913 = vmatpush.msra.mxu0 0.0
    %1914 = vmatpush.msra.mxu0 0.0
    %1915 = vmatpush.msra.mxu0 0.0
    %1916 = vmatpush.msra.mxu0 0.0
    %1917 = vmatpush.msra.mxu0 0.0
    %1918 = vmatpush.msra.mxu0 0.0
    %1919 = vmatpush.msra.mxu0 0.0
    %1920 = vmatpush.msra.mxu0 %v1900
    %1921 = vmatpush.msra.mxu0 %v1899
    %1922 = vmatpush.msra.mxu0 %v1898
    %1923 = vmatpush.msra.mxu0 %v1897
    %1924 = vmatmul.f32.gmra.mxu0 %v1903
    %v1925 = vpop.f32.mrf.mxu0
    %v1926 = vadd.f32 %v1901, %v1925
    %1927 = vmatmul.f32.gmra.mxu0 %v1906
    %v1928 = vpop.f32.mrf.mxu0
    %v1929 = vadd.f32 %v1901, %v1928
    %1930 = vdwg.mxu0
    %1933 = vrot.lane.b32.xlu0 %v1926, 120
    %v1934 = vpop.permute.xlu0 %1933
    %1935 = vrot.lane.b32.xlu0 %v1929, 120
    %v1936 = vpop.permute.xlu0 %1935
    %1937 = vrot.lane.b32.xlu0 %v1926, 112
    %v1938 = vpop.permute.xlu0 %1937
    %1939 = vrot.lane.b32.xlu0 %v1929, 112
    %v1940 = vpop.permute.xlu0 %1939
    %1941 = vrot.lane.b32.xlu0 %v1926, 104
    %v1942 = vpop.permute.xlu0 %1941
    %1943 = vrot.lane.b32.xlu0 %v1929, 104
    %v1944 = vpop.permute.xlu0 %1943
    %1945 = vrot.lane.b32.xlu0 %v1926, 96
    %v1946 = vpop.permute.xlu0 %1945
    %v1947 = vsel %vm141, %v1926, 0
    %v1949 = vsel %vm141, %v1946, 0
    %1951 = vmatpush.xpose.msra.mxu0 0.0
    %1952 = vmatpush.xpose.msra.mxu0 0.0
    %1953 = vmatpush.xpose.msra.mxu0 0.0
    %1954 = vmatpush.xpose.msra.mxu0 0.0
    %1955 = vmatpush.xpose.msra.mxu0 0.0
    %1956 = vmatpush.xpose.msra.mxu0 0.0
    %1957 = vmatpush.xpose.msra.mxu0 0.0
    %1958 = vmatpush.xpose.msra.mxu0 0.0
    %1959 = vmatpush.xpose.msra.mxu0 0.0
    %1960 = vmatpush.xpose.msra.mxu0 0.0
    %1961 = vmatpush.xpose.msra.mxu0 0.0
    %1962 = vmatpush.xpose.msra.mxu0 0.0
    %1963 = vmatpush.xpose.msra.mxu0 0.0
    %1964 = vmatpush.xpose.msra.mxu0 0.0
    %1965 = vmatpush.xpose.msra.mxu0 0.0
    %1966 = vmatpush.xpose.msra.mxu0 %v1949
    %1967 = vmatmul.f32.gmra.mxu0 %v1947
    %v1968 = vpop.f32.mrf.mxu0
    %v1969 = vadd.f32 0.0, %v1968
    %1970 = vdwg.mxu0
    %1971 = vrot.lane.b32.xlu0 %v1929, 96
    %v1972 = vpop.permute.xlu0 %1971
    %v1973 = vsel %vm141, %v1929, 0
    %v1975 = vsel %vm141, %v1972, 0
    %1977 = vmatpush.xpose.msra.mxu0 0.0
    %1978 = vmatpush.xpose.msra.mxu0 0.0
    %1979 = vmatpush.xpose.msra.mxu0 0.0
    %1980 = vmatpush.xpose.msra.mxu0 0.0
    %1981 = vmatpush.xpose.msra.mxu0 0.0
    %1982 = vmatpush.xpose.msra.mxu0 0.0
    %1983 = vmatpush.xpose.msra.mxu0 0.0
    %1984 = vmatpush.xpose.msra.mxu0 0.0
    %1985 = vmatpush.xpose.msra.mxu0 0.0
    %1986 = vmatpush.xpose.msra.mxu0 0.0
    %1987 = vmatpush.xpose.msra.mxu0 0.0
    %1988 = vmatpush.xpose.msra.mxu0 0.0
    %1989 = vmatpush.xpose.msra.mxu0 0.0
    %1990 = vmatpush.xpose.msra.mxu0 0.0
    %1991 = vmatpush.xpose.msra.mxu0 0.0
    %1992 = vmatpush.xpose.msra.mxu0 %v1975
    %1993 = vmatmul.f32.gmra.mxu0 %v1973
    %v1994 = vpop.f32.mrf.mxu0
    %v1995 = vadd.f32 0.0, %v1994
    %1996 = vdwg.mxu0
    %1997 = vrot.lane.b32.xlu0 %v1934, 96
    %v1998 = vpop.permute.xlu0 %1997
    %v1999 = vsel %vm141, %v1934, 0
    %v2001 = vsel %vm141, %v1998, 0
    %2003 = vmatpush.xpose.msra.mxu0 0.0
    %2004 = vmatpush.xpose.msra.mxu0 0.0
    %2005 = vmatpush.xpose.msra.mxu0 0.0
    %2006 = vmatpush.xpose.msra.mxu0 0.0
    %2007 = vmatpush.xpose.msra.mxu0 0.0
    %2008 = vmatpush.xpose.msra.mxu0 0.0
    %2009 = vmatpush.xpose.msra.mxu0 0.0
    %2010 = vmatpush.xpose.msra.mxu0 0.0
    %2011 = vmatpush.xpose.msra.mxu0 0.0
    %2012 = vmatpush.xpose.msra.mxu0 0.0
    %2013 = vmatpush.xpose.msra.mxu0 0.0
    %2014 = vmatpush.xpose.msra.mxu0 0.0
    %2015 = vmatpush.xpose.msra.mxu0 0.0
    %2016 = vmatpush.xpose.msra.mxu0 0.0
    %2017 = vmatpush.xpose.msra.mxu0 0.0
    %2018 = vmatpush.xpose.msra.mxu0 %v2001
    %2019 = vmatmul.f32.gmra.mxu0 %v1999
    %v2020 = vpop.f32.mrf.mxu0
    %v2021 = vadd.f32 0.0, %v2020
    %2022 = vdwg.mxu0
    %2023 = vrot.lane.b32.xlu0 %v1936, 96
    %v2024 = vpop.permute.xlu0 %2023
    %v2025 = vsel %vm141, %v1936, 0
    %v2027 = vsel %vm141, %v2024, 0
    %2029 = vmatpush.xpose.msra.mxu0 0.0
    %2030 = vmatpush.xpose.msra.mxu0 0.0
    %2031 = vmatpush.xpose.msra.mxu0 0.0
    %2032 = vmatpush.xpose.msra.mxu0 0.0
    %2033 = vmatpush.xpose.msra.mxu0 0.0
    %2034 = vmatpush.xpose.msra.mxu0 0.0
    %2035 = vmatpush.xpose.msra.mxu0 0.0
    %2036 = vmatpush.xpose.msra.mxu0 0.0
    %2037 = vmatpush.xpose.msra.mxu0 0.0
    %2038 = vmatpush.xpose.msra.mxu0 0.0
    %2039 = vmatpush.xpose.msra.mxu0 0.0
    %2040 = vmatpush.xpose.msra.mxu0 0.0
    %2041 = vmatpush.xpose.msra.mxu0 0.0
    %2042 = vmatpush.xpose.msra.mxu0 0.0
    %2043 = vmatpush.xpose.msra.mxu0 0.0
    %2044 = vmatpush.xpose.msra.mxu0 %v2027
    %2045 = vmatmul.f32.gmra.mxu0 %v2025
    %v2046 = vpop.f32.mrf.mxu0
    %v2047 = vadd.f32 0.0, %v2046
    %2048 = vdwg.mxu0
    %2049 = vrot.lane.b32.xlu0 %v1938, 96
    %v2050 = vpop.permute.xlu0 %2049
    %v2051 = vsel %vm141, %v1938, 0
    %v2053 = vsel %vm141, %v2050, 0
    %2055 = vmatpush.xpose.msra.mxu0 0.0
    %2056 = vmatpush.xpose.msra.mxu0 0.0
    %2057 = vmatpush.xpose.msra.mxu0 0.0
    %2058 = vmatpush.xpose.msra.mxu0 0.0
    %2059 = vmatpush.xpose.msra.mxu0 0.0
    %2060 = vmatpush.xpose.msra.mxu0 0.0
    %2061 = vmatpush.xpose.msra.mxu0 0.0
    %2062 = vmatpush.xpose.msra.mxu0 0.0
    %2063 = vmatpush.xpose.msra.mxu0 0.0
    %2064 = vmatpush.xpose.msra.mxu0 0.0
    %2065 = vmatpush.xpose.msra.mxu0 0.0
    %2066 = vmatpush.xpose.msra.mxu0 0.0
    %2067 = vmatpush.xpose.msra.mxu0 0.0
    %2068 = vmatpush.xpose.msra.mxu0 0.0
    %2069 = vmatpush.xpose.msra.mxu0 0.0
    %2070 = vmatpush.xpose.msra.mxu0 %v2053
    %2071 = vmatmul.f32.gmra.mxu0 %v2051
    %v2072 = vpop.f32.mrf.mxu0
    %v2073 = vadd.f32 0.0, %v2072
    %2074 = vdwg.mxu0
    %2075 = vrot.lane.b32.xlu0 %v1940, 96
    %v2076 = vpop.permute.xlu0 %2075
    %v2077 = vsel %vm141, %v1940, 0
    %v2079 = vsel %vm141, %v2076, 0
    %2081 = vmatpush.xpose.msra.mxu0 0.0
    %2082 = vmatpush.xpose.msra.mxu0 0.0
    %2083 = vmatpush.xpose.msra.mxu0 0.0
    %2084 = vmatpush.xpose.msra.mxu0 0.0
    %2085 = vmatpush.xpose.msra.mxu0 0.0
    %2086 = vmatpush.xpose.msra.mxu0 0.0
    %2087 = vmatpush.xpose.msra.mxu0 0.0
    %2088 = vmatpush.xpose.msra.mxu0 0.0
    %2089 = vmatpush.xpose.msra.mxu0 0.0
    %2090 = vmatpush.xpose.msra.mxu0 0.0
    %2091 = vmatpush.xpose.msra.mxu0 0.0
    %2092 = vmatpush.xpose.msra.mxu0 0.0
    %2093 = vmatpush.xpose.msra.mxu0 0.0
    %2094 = vmatpush.xpose.msra.mxu0 0.0
    %2095 = vmatpush.xpose.msra.mxu0 0.0
    %2096 = vmatpush.xpose.msra.mxu0 %v2079
    %2097 = vmatmul.f32.gmra.mxu0 %v2077
    %v2098 = vpop.f32.mrf.mxu0
    %v2099 = vadd.f32 0.0, %v2098
    %2100 = vdwg.mxu0
    %2101 = vrot.lane.b32.xlu0 %v1942, 96
    %v2102 = vpop.permute.xlu0 %2101
    %v2103 = vsel %vm141, %v1942, 0
    %v2105 = vsel %vm141, %v2102, 0
    %2107 = vmatpush.xpose.msra.mxu0 0.0
    %2108 = vmatpush.xpose.msra.mxu0 0.0
    %2109 = vmatpush.xpose.msra.mxu0 0.0
    %2110 = vmatpush.xpose.msra.mxu0 0.0
    %2111 = vmatpush.xpose.msra.mxu0 0.0
    %2112 = vmatpush.xpose.msra.mxu0 0.0
    %2113 = vmatpush.xpose.msra.mxu0 0.0
    %2114 = vmatpush.xpose.msra.mxu0 0.0
    %2115 = vmatpush.xpose.msra.mxu0 0.0
    %2116 = vmatpush.xpose.msra.mxu0 0.0
    %2117 = vmatpush.xpose.msra.mxu0 0.0
    %2118 = vmatpush.xpose.msra.mxu0 0.0
    %2119 = vmatpush.xpose.msra.mxu0 0.0
    %2120 = vmatpush.xpose.msra.mxu0 0.0
    %2121 = vmatpush.xpose.msra.mxu0 0.0
    %2122 = vmatpush.xpose.msra.mxu0 %v2105
    %2123 = vmatmul.f32.gmra.mxu0 %v2103
    %v2124 = vpop.f32.mrf.mxu0
    %v2125 = vadd.f32 0.0, %v2124
    %2126 = vdwg.mxu0
    %2127 = vrot.lane.b32.xlu0 %v1944, 96
    %v2128 = vpop.permute.xlu0 %2127
    %v2129 = vsel %vm141, %v1944, 0
    %v2131 = vsel %vm141, %v2128, 0
    %2133 = vmatpush.xpose.msra.mxu0 0.0
    %2134 = vmatpush.xpose.msra.mxu0 0.0
    %2135 = vmatpush.xpose.msra.mxu0 0.0
    %2136 = vmatpush.xpose.msra.mxu0 0.0
    %2137 = vmatpush.xpose.msra.mxu0 0.0
    %2138 = vmatpush.xpose.msra.mxu0 0.0
    %2139 = vmatpush.xpose.msra.mxu0 0.0
    %2140 = vmatpush.xpose.msra.mxu0 0.0
    %2141 = vmatpush.xpose.msra.mxu0 0.0
    %2142 = vmatpush.xpose.msra.mxu0 0.0
    %2143 = vmatpush.xpose.msra.mxu0 0.0
    %2144 = vmatpush.xpose.msra.mxu0 0.0
    %2145 = vmatpush.xpose.msra.mxu0 0.0
    %2146 = vmatpush.xpose.msra.mxu0 0.0
    %2147 = vmatpush.xpose.msra.mxu0 0.0
    %2148 = vmatpush.xpose.msra.mxu0 %v2131
    %2149 = vmatmul.f32.gmra.mxu0 %v2129
    %v2150 = vpop.f32.mrf.mxu0
    %v2151 = vadd.f32 0.0, %v2150
    %2152 = vdwg.mxu0
    %v2153 = vmul.f32 %v1969, 0.35355338
    %v2154 = vmul.f32 %v1995, 0.35355338
    %v2155 = vmul.f32 %v2021, 0.35355338
    %v2156 = vmul.f32 %v2047, 0.35355338
    %v2157 = vmul.f32 %v2073, 0.35355338
    %v2158 = vmul.f32 %v2099, 0.35355338
    %v2159 = vmul.f32 %v2125, 0.35355338
    %v2160 = vmul.f32 %v2151, 0.35355338
    %v2161 = vmul.f32 %v2153, %v45
    %v2162 = vmul.f32 %v2154, %v46
    %v2163 = vmul.f32 %v2155, %v45
    %v2164 = vmul.f32 %v2156, %v46
    %v2165 = vmul.f32 %v2157, %v45
    %v2166 = vmul.f32 %v2158, %v46
    %v2167 = vmul.f32 %v2159, %v45
    %v2168 = vmul.f32 %v2160, %v46
    %v2169 = vadd.f32 %v2161, %v48
    %v2170 = vadd.f32 %v2162, %v49
    %v2171 = vadd.f32 %v2163, %v48
    %v2172 = vadd.f32 %v2164, %v49
    %v2173 = vadd.f32 %v2165, %v48
    %v2174 = vadd.f32 %v2166, %v49
    %v2175 = vadd.f32 %v2167, %v48
    %v2176 = vadd.f32 %v2168, %v49
    %v2177 = vsel %vm141, %v2169, -inf
    %2178 = vmax.xlane.f32.xlu0 %v2177
    %v2179 = vpop.xlane.xlu0 %2178
    %v2180 = vsel %vm141, %v2170, -inf
    %2181 = vmax.xlane.f32.xlu0 %v2180
    %v2182 = vpop.xlane.xlu0 %2181
    %v2183 = vsel %vm141, %v2171, -inf
    %2184 = vmax.xlane.f32.xlu0 %v2183
    %v2185 = vpop.xlane.xlu0 %2184
    %v2186 = vsel %vm141, %v2172, -inf
    %2187 = vmax.xlane.f32.xlu0 %v2186
    %v2188 = vpop.xlane.xlu0 %2187
    %v2189 = vsel %vm141, %v2173, -inf
    %2190 = vmax.xlane.f32.xlu0 %v2189
    %v2191 = vpop.xlane.xlu0 %2190
    %v2192 = vsel %vm141, %v2174, -inf
    %2193 = vmax.xlane.f32.xlu0 %v2192
    %v2194 = vpop.xlane.xlu0 %2193
    %v2195 = vsel %vm141, %v2175, -inf
    %2196 = vmax.xlane.f32.xlu0 %v2195
    %v2197 = vpop.xlane.xlu0 %2196
    %v2198 = vsel %vm141, %v2176, -inf
    %2199 = vmax.xlane.f32.xlu0 %v2198
    %v2200 = vpop.xlane.xlu0 %2199
    %v2201 = vsub.f32 %v2169, %v2179
    %v2202 = vsub.f32 %v2170, %v2182
    %v2203 = vsub.f32 %v2171, %v2185
    %v2204 = vsub.f32 %v2172, %v2188
    %v2205 = vsub.f32 %v2173, %v2191
    %v2206 = vsub.f32 %v2174, %v2194
    %v2207 = vsub.f32 %v2175, %v2197
    %v2208 = vsub.f32 %v2176, %v2200
    %v2209 = vmul.f32 %v2201, 1.442695
    %v2210 = vpow.pop %v2209
    %v2211 = vmul.f32 %v2202, 1.442695
    %v2212 = vpow.pop %v2211
    %v2213 = vmul.f32 %v2203, 1.442695
    %v2214 = vpow.pop %v2213
    %v2215 = vmul.f32 %v2204, 1.442695
    %v2216 = vpow.pop %v2215
    %v2217 = vmul.f32 %v2205, 1.442695
    %v2218 = vpow.pop %v2217
    %v2219 = vmul.f32 %v2206, 1.442695
    %v2220 = vpow.pop %v2219
    %v2221 = vmul.f32 %v2207, 1.442695
    %v2222 = vpow.pop %v2221
    %v2223 = vmul.f32 %v2208, 1.442695
    %v2224 = vpow.pop %v2223
    %v2225 = vsel %vm141, %v2210, 0.0
    %2226 = vadd.xlane.f32.xlu0 %v2225
    %v2227 = vpop.xlane.xlu0 %2226
    %v2228 = vsel %vm141, %v2212, 0.0
    %2229 = vadd.xlane.f32.xlu0 %v2228
    %v2230 = vpop.xlane.xlu0 %2229
    %v2231 = vsel %vm141, %v2214, 0.0
    %2232 = vadd.xlane.f32.xlu0 %v2231
    %v2233 = vpop.xlane.xlu0 %2232
    %v2234 = vsel %vm141, %v2216, 0.0
    %2235 = vadd.xlane.f32.xlu0 %v2234
    %v2236 = vpop.xlane.xlu0 %2235
    %v2237 = vsel %vm141, %v2218, 0.0
    %2238 = vadd.xlane.f32.xlu0 %v2237
    %v2239 = vpop.xlane.xlu0 %2238
    %v2240 = vsel %vm141, %v2220, 0.0
    %2241 = vadd.xlane.f32.xlu0 %v2240
    %v2242 = vpop.xlane.xlu0 %2241
    %v2243 = vsel %vm141, %v2222, 0.0
    %2244 = vadd.xlane.f32.xlu0 %v2243
    %v2245 = vpop.xlane.xlu0 %2244
    %v2246 = vsel %vm141, %v2224, 0.0
    %2247 = vadd.xlane.f32.xlu0 %v2246
    %v2248 = vpop.xlane.xlu0 %2247
    %v2249 = vrcp.pop %v2227
    %v2250 = vmul.f32 %v2227, %v2249
    %v2251 = vsub.f32 1.0, %v2250
    %v2252 = vmul.f32 %v2249, %v2251
    %v2253 = vadd.f32 %v2249, %v2252
    %vm2254 = vweird.f32 %v2227
    %vm2255 = vweird.f32 %v2249
    %vm2256 = vmor %vm2254, %vm2255
    %v2257 = vsel %vm2256, %v2249, %v2253
    %v2258 = vand.u32 2147483647, %v2227
    %vm2259 = vcmp.eq.f32.partialorder %v2258, 8.507059e+37
    %v2260 = vand.u32 %v2227, 2147483648
    %v2261 = vor.u32 1.1754944e-38, %v2260
    %v2262 = vsel %vm2259, %v2261, %v2257
    %v2263 = vmul.f32 %v2210, %v2262
    %v2264 = vrcp.pop %v2230
    %v2265 = vmul.f32 %v2230, %v2264
    %v2266 = vsub.f32 1.0, %v2265
    %v2267 = vmul.f32 %v2264, %v2266
    %v2268 = vadd.f32 %v2264, %v2267
    %vm2269 = vweird.f32 %v2230
    %vm2270 = vweird.f32 %v2264
    %vm2271 = vmor %vm2269, %vm2270
    %v2272 = vsel %vm2271, %v2264, %v2268
    %v2273 = vand.u32 2147483647, %v2230
    %vm2274 = vcmp.eq.f32.partialorder %v2273, 8.507059e+37
    %v2275 = vand.u32 %v2230, 2147483648
    %v2276 = vor.u32 1.1754944e-38, %v2275
    %v2277 = vsel %vm2274, %v2276, %v2272
    %v2278 = vmul.f32 %v2212, %v2277
    %v2279 = vrcp.pop %v2233
    %v2280 = vmul.f32 %v2233, %v2279
    %v2281 = vsub.f32 1.0, %v2280
    %v2282 = vmul.f32 %v2279, %v2281
    %v2283 = vadd.f32 %v2279, %v2282
    %vm2284 = vweird.f32 %v2233
    %vm2285 = vweird.f32 %v2279
    %vm2286 = vmor %vm2284, %vm2285
    %v2287 = vsel %vm2286, %v2279, %v2283
    %v2288 = vand.u32 2147483647, %v2233
    %vm2289 = vcmp.eq.f32.partialorder %v2288, 8.507059e+37
    %v2290 = vand.u32 %v2233, 2147483648
    %v2291 = vor.u32 1.1754944e-38, %v2290
    %v2292 = vsel %vm2289, %v2291, %v2287
    %v2293 = vmul.f32 %v2214, %v2292
    %v2294 = vrcp.pop %v2236
    %v2295 = vmul.f32 %v2236, %v2294
    %v2296 = vsub.f32 1.0, %v2295
    %v2297 = vmul.f32 %v2294, %v2296
    %v2298 = vadd.f32 %v2294, %v2297
    %vm2299 = vweird.f32 %v2236
    %vm2300 = vweird.f32 %v2294
    %vm2301 = vmor %vm2299, %vm2300
    %v2302 = vsel %vm2301, %v2294, %v2298
    %v2303 = vand.u32 2147483647, %v2236
    %vm2304 = vcmp.eq.f32.partialorder %v2303, 8.507059e+37
    %v2305 = vand.u32 %v2236, 2147483648
    %v2306 = vor.u32 1.1754944e-38, %v2305
    %v2307 = vsel %vm2304, %v2306, %v2302
    %v2308 = vmul.f32 %v2216, %v2307
    %v2309 = vrcp.pop %v2239
    %v2310 = vmul.f32 %v2239, %v2309
    %v2311 = vsub.f32 1.0, %v2310
    %v2312 = vmul.f32 %v2309, %v2311
    %v2313 = vadd.f32 %v2309, %v2312
    %vm2314 = vweird.f32 %v2239
    %vm2315 = vweird.f32 %v2309
    %vm2316 = vmor %vm2314, %vm2315
    %v2317 = vsel %vm2316, %v2309, %v2313
    %v2318 = vand.u32 2147483647, %v2239
    %vm2319 = vcmp.eq.f32.partialorder %v2318, 8.507059e+37
    %v2320 = vand.u32 %v2239, 2147483648
    %v2321 = vor.u32 1.1754944e-38, %v2320
    %v2322 = vsel %vm2319, %v2321, %v2317
    %v2323 = vmul.f32 %v2218, %v2322
    %v2324 = vrcp.pop %v2242
    %v2325 = vmul.f32 %v2242, %v2324
    %v2326 = vsub.f32 1.0, %v2325
    %v2327 = vmul.f32 %v2324, %v2326
    %v2328 = vadd.f32 %v2324, %v2327
    %vm2329 = vweird.f32 %v2242
    %vm2330 = vweird.f32 %v2324
    %vm2331 = vmor %vm2329, %vm2330
    %v2332 = vsel %vm2331, %v2324, %v2328
    %v2333 = vand.u32 2147483647, %v2242
    %vm2334 = vcmp.eq.f32.partialorder %v2333, 8.507059e+37
    %v2335 = vand.u32 %v2242, 2147483648
    %v2336 = vor.u32 1.1754944e-38, %v2335
    %v2337 = vsel %vm2334, %v2336, %v2332
    %v2338 = vmul.f32 %v2220, %v2337
    %v2339 = vrcp.pop %v2245
    %v2340 = vmul.f32 %v2245, %v2339
    %v2341 = vsub.f32 1.0, %v2340
    %v2342 = vmul.f32 %v2339, %v2341
    %v2343 = vadd.f32 %v2339, %v2342
    %vm2344 = vweird.f32 %v2245
    %vm2345 = vweird.f32 %v2339
    %vm2346 = vmor %vm2344, %vm2345
    %v2347 = vsel %vm2346, %v2339, %v2343
    %v2348 = vand.u32 2147483647, %v2245
    %vm2349 = vcmp.eq.f32.partialorder %v2348, 8.507059e+37
    %v2350 = vand.u32 %v2245, 2147483648
    %v2351 = vor.u32 1.1754944e-38, %v2350
    %v2352 = vsel %vm2349, %v2351, %v2347
    %v2353 = vmul.f32 %v2222, %v2352
    %v2354 = vrcp.pop %v2248
    %v2355 = vmul.f32 %v2248, %v2354
    %v2356 = vsub.f32 1.0, %v2355
    %v2357 = vmul.f32 %v2354, %v2356
    %v2358 = vadd.f32 %v2354, %v2357
    %vm2359 = vweird.f32 %v2248
    %vm2360 = vweird.f32 %v2354
    %vm2361 = vmor %vm2359, %vm2360
    %v2362 = vsel %vm2361, %v2354, %v2358
    %v2363 = vand.u32 2147483647, %v2248
    %vm2364 = vcmp.eq.f32.partialorder %v2363, 8.507059e+37
    %v2365 = vand.u32 %v2248, 2147483648
    %v2366 = vor.u32 1.1754944e-38, %v2365
    %v2367 = vsel %vm2364, %v2366, %v2362
    %v2368 = vmul.f32 %v2224, %v2367
    %2369 = vrot.lane.b32.xlu0 %v1926, 64
    %v2370 = vpop.permute.xlu0 %2369
    %v2373 = vsel %vm141, %v2263, 0
    %2375 = vmatpush.msra.mxu0 0.0
    %2376 = vmatpush.msra.mxu0 0.0
    %2377 = vmatpush.msra.mxu0 0.0
    %2378 = vmatpush.msra.mxu0 0.0
    %2379 = vmatpush.msra.mxu0 0.0
    %2380 = vmatpush.msra.mxu0 0.0
    %2381 = vmatpush.msra.mxu0 0.0
    %2382 = vmatpush.msra.mxu0 0.0
    %2383 = vmatpush.msra.mxu0 0.0
    %2384 = vmatpush.msra.mxu0 0.0
    %2385 = vmatpush.msra.mxu0 0.0
    %2386 = vmatpush.msra.mxu0 0.0
    %2387 = vmatpush.msra.mxu0 0.0
    %2388 = vmatpush.msra.mxu0 0.0
    %2389 = vmatpush.msra.mxu0 0.0
    %2390 = vmatpush.msra.mxu0 %v2370
    %2391 = vmatmul.f32.gmra.mxu0 %v2373
    %v2392 = vpop.f32.mrf.mxu0
    %v2393 = vadd.f32 0.0, %v2392
    %2394 = vdwg.mxu0
    %2395 = vrot.lane.b32.xlu0 %v1929, 64
    %v2396 = vpop.permute.xlu0 %2395
    %v2399 = vsel %vm141, %v2278, 0
    %2401 = vmatpush.msra.mxu0 0.0
    %2402 = vmatpush.msra.mxu0 0.0
    %2403 = vmatpush.msra.mxu0 0.0
    %2404 = vmatpush.msra.mxu0 0.0
    %2405 = vmatpush.msra.mxu0 0.0
    %2406 = vmatpush.msra.mxu0 0.0
    %2407 = vmatpush.msra.mxu0 0.0
    %2408 = vmatpush.msra.mxu0 0.0
    %2409 = vmatpush.msra.mxu0 0.0
    %2410 = vmatpush.msra.mxu0 0.0
    %2411 = vmatpush.msra.mxu0 0.0
    %2412 = vmatpush.msra.mxu0 0.0
    %2413 = vmatpush.msra.mxu0 0.0
    %2414 = vmatpush.msra.mxu0 0.0
    %2415 = vmatpush.msra.mxu0 0.0
    %2416 = vmatpush.msra.mxu0 %v2396
    %2417 = vmatmul.f32.gmra.mxu0 %v2399
    %v2418 = vpop.f32.mrf.mxu0
    %v2419 = vadd.f32 0.0, %v2418
    %2420 = vdwg.mxu0
    %2421 = vrot.lane.b32.xlu0 %v1934, 64
    %v2422 = vpop.permute.xlu0 %2421
    %v2425 = vsel %vm141, %v2293, 0
    %2427 = vmatpush.msra.mxu0 0.0
    %2428 = vmatpush.msra.mxu0 0.0
    %2429 = vmatpush.msra.mxu0 0.0
    %2430 = vmatpush.msra.mxu0 0.0
    %2431 = vmatpush.msra.mxu0 0.0
    %2432 = vmatpush.msra.mxu0 0.0
    %2433 = vmatpush.msra.mxu0 0.0
    %2434 = vmatpush.msra.mxu0 0.0
    %2435 = vmatpush.msra.mxu0 0.0
    %2436 = vmatpush.msra.mxu0 0.0
    %2437 = vmatpush.msra.mxu0 0.0
    %2438 = vmatpush.msra.mxu0 0.0
    %2439 = vmatpush.msra.mxu0 0.0
    %2440 = vmatpush.msra.mxu0 0.0
    %2441 = vmatpush.msra.mxu0 0.0
    %2442 = vmatpush.msra.mxu0 %v2422
    %2443 = vmatmul.f32.gmra.mxu0 %v2425
    %v2444 = vpop.f32.mrf.mxu0
    %v2445 = vadd.f32 0.0, %v2444
    %2446 = vdwg.mxu0
    %2447 = vrot.lane.b32.xlu0 %v1936, 64
    %v2448 = vpop.permute.xlu0 %2447
    %v2451 = vsel %vm141, %v2308, 0
    %2453 = vmatpush.msra.mxu0 0.0
    %2454 = vmatpush.msra.mxu0 0.0
    %2455 = vmatpush.msra.mxu0 0.0
    %2456 = vmatpush.msra.mxu0 0.0
    %2457 = vmatpush.msra.mxu0 0.0
    %2458 = vmatpush.msra.mxu0 0.0
    %2459 = vmatpush.msra.mxu0 0.0
    %2460 = vmatpush.msra.mxu0 0.0
    %2461 = vmatpush.msra.mxu0 0.0
    %2462 = vmatpush.msra.mxu0 0.0
    %2463 = vmatpush.msra.mxu0 0.0
    %2464 = vmatpush.msra.mxu0 0.0
    %2465 = vmatpush.msra.mxu0 0.0
    %2466 = vmatpush.msra.mxu0 0.0
    %2467 = vmatpush.msra.mxu0 0.0
    %2468 = vmatpush.msra.mxu0 %v2448
    %2469 = vmatmul.f32.gmra.mxu0 %v2451
    %v2470 = vpop.f32.mrf.mxu0
    %v2471 = vadd.f32 0.0, %v2470
    %2472 = vdwg.mxu0
    %2473 = vrot.lane.b32.xlu0 %v1938, 64
    %v2474 = vpop.permute.xlu0 %2473
    %v2477 = vsel %vm141, %v2323, 0
    %2479 = vmatpush.msra.mxu0 0.0
    %2480 = vmatpush.msra.mxu0 0.0
    %2481 = vmatpush.msra.mxu0 0.0
    %2482 = vmatpush.msra.mxu0 0.0
    %2483 = vmatpush.msra.mxu0 0.0
    %2484 = vmatpush.msra.mxu0 0.0
    %2485 = vmatpush.msra.mxu0 0.0
    %2486 = vmatpush.msra.mxu0 0.0
    %2487 = vmatpush.msra.mxu0 0.0
    %2488 = vmatpush.msra.mxu0 0.0
    %2489 = vmatpush.msra.mxu0 0.0
    %2490 = vmatpush.msra.mxu0 0.0
    %2491 = vmatpush.msra.mxu0 0.0
    %2492 = vmatpush.msra.mxu0 0.0
    %2493 = vmatpush.msra.mxu0 0.0
    %2494 = vmatpush.msra.mxu0 %v2474
    %2495 = vmatmul.f32.gmra.mxu0 %v2477
    %v2496 = vpop.f32.mrf.mxu0
    %v2497 = vadd.f32 0.0, %v2496
    %2498 = vdwg.mxu0
    %2499 = vrot.lane.b32.xlu0 %v1940, 64
    %v2500 = vpop.permute.xlu0 %2499
    %v2503 = vsel %vm141, %v2338, 0
    %2505 = vmatpush.msra.mxu0 0.0
    %2506 = vmatpush.msra.mxu0 0.0
    %2507 = vmatpush.msra.mxu0 0.0
    %2508 = vmatpush.msra.mxu0 0.0
    %2509 = vmatpush.msra.mxu0 0.0
    %2510 = vmatpush.msra.mxu0 0.0
    %2511 = vmatpush.msra.mxu0 0.0
    %2512 = vmatpush.msra.mxu0 0.0
    %2513 = vmatpush.msra.mxu0 0.0
    %2514 = vmatpush.msra.mxu0 0.0
    %2515 = vmatpush.msra.mxu0 0.0
    %2516 = vmatpush.msra.mxu0 0.0
    %2517 = vmatpush.msra.mxu0 0.0
    %2518 = vmatpush.msra.mxu0 0.0
    %2519 = vmatpush.msra.mxu0 0.0
    %2520 = vmatpush.msra.mxu0 %v2500
    %2521 = vmatmul.f32.gmra.mxu0 %v2503
    %v2522 = vpop.f32.mrf.mxu0
    %v2523 = vadd.f32 0.0, %v2522
    %2524 = vdwg.mxu0
    %2525 = vrot.lane.b32.xlu0 %v1942, 64
    %v2526 = vpop.permute.xlu0 %2525
    %v2529 = vsel %vm141, %v2353, 0
    %2531 = vmatpush.msra.mxu0 0.0
    %2532 = vmatpush.msra.mxu0 0.0
    %2533 = vmatpush.msra.mxu0 0.0
    %2534 = vmatpush.msra.mxu0 0.0
    %2535 = vmatpush.msra.mxu0 0.0
    %2536 = vmatpush.msra.mxu0 0.0
    %2537 = vmatpush.msra.mxu0 0.0
    %2538 = vmatpush.msra.mxu0 0.0
    %2539 = vmatpush.msra.mxu0 0.0
    %2540 = vmatpush.msra.mxu0 0.0
    %2541 = vmatpush.msra.mxu0 0.0
    %2542 = vmatpush.msra.mxu0 0.0
    %2543 = vmatpush.msra.mxu0 0.0
    %2544 = vmatpush.msra.mxu0 0.0
    %2545 = vmatpush.msra.mxu0 0.0
    %2546 = vmatpush.msra.mxu0 %v2526
    %2547 = vmatmul.f32.gmra.mxu0 %v2529
    %v2548 = vpop.f32.mrf.mxu0
    %v2549 = vadd.f32 0.0, %v2548
    %2550 = vdwg.mxu0
    %2551 = vrot.lane.b32.xlu0 %v1944, 64
    %v2552 = vpop.permute.xlu0 %2551
    %v2555 = vsel %vm141, %v2368, 0
    %2557 = vmatpush.msra.mxu0 0.0
    %2558 = vmatpush.msra.mxu0 0.0
    %2559 = vmatpush.msra.mxu0 0.0
    %2560 = vmatpush.msra.mxu0 0.0
    %2561 = vmatpush.msra.mxu0 0.0
    %2562 = vmatpush.msra.mxu0 0.0
    %2563 = vmatpush.msra.mxu0 0.0
    %2564 = vmatpush.msra.mxu0 0.0
    %2565 = vmatpush.msra.mxu0 0.0
    %2566 = vmatpush.msra.mxu0 0.0
    %2567 = vmatpush.msra.mxu0 0.0
    %2568 = vmatpush.msra.mxu0 0.0
    %2569 = vmatpush.msra.mxu0 0.0
    %2570 = vmatpush.msra.mxu0 0.0
    %2571 = vmatpush.msra.mxu0 0.0
    %2572 = vmatpush.msra.mxu0 %v2552
    %2573 = vmatmul.f32.gmra.mxu0 %v2555
    %v2574 = vpop.f32.mrf.mxu0
    %v2575 = vadd.f32 0.0, %v2574
    %2576 = vdwg.mxu0
    %2579 = vrot.lane.b32.xlu0 %v2445, 8
    %v2580 = vpop.permute.xlu0 %2579
    %2581 = vrot.lane.b32.xlu0 %v2471, 8
    %v2582 = vpop.permute.xlu0 %2581
    %2587 = vrot.lane.b32.xlu0 %v2497, 16
    %v2588 = vpop.permute.xlu0 %2587
    %2589 = vrot.lane.b32.xlu0 %v2523, 16
    %v2590 = vpop.permute.xlu0 %2589
    %2595 = vrot.lane.b32.xlu0 %v2549, 24
    %v2596 = vpop.permute.xlu0 %2595
    %2597 = vrot.lane.b32.xlu0 %v2575, 24
    %v2598 = vpop.permute.xlu0 %2597
    %v2601 = vsel %vm141, %v2393, %v2580
    %v2602 = vsel %vm141, %v2419, %v2582
    %v2603 = vsel %vm798, %v2601, %v2588
    %v2604 = vsel %vm798, %v2602, %v2590
    %v2605 = vsel %vm801, %v2603, %v2596
    %v2606 = vsel %vm801, %v2604, %v2598
    %s2607 = scalar_lea.vmem %s7, 64
    %v2608 = vld [vmem:[%s2607] sm:$0xff]
    %v2609 = vld [vmem:[%s2607 + $0x8] sm:$0xff]
    %v2610 = vld [vmem:[%s2607 + $0x10] sm:$0xff]
    %v2611 = vld [vmem:[%s2607 + $0x18] sm:$0xff]
    %v2612 = vperm.slane %v1894, 6
    %v2614 = vsel %vm59, %v2605, 0
    %v2617 = vsel %vm59, %v2606, 0
    %2619 = vmatpush.msra.mxu0 0.0
    %2620 = vmatpush.msra.mxu0 0.0
    %2621 = vmatpush.msra.mxu0 0.0
    %2622 = vmatpush.msra.mxu0 0.0
    %2623 = vmatpush.msra.mxu0 0.0
    %2624 = vmatpush.msra.mxu0 0.0
    %2625 = vmatpush.msra.mxu0 0.0
    %2626 = vmatpush.msra.mxu0 0.0
    %2627 = vmatpush.msra.mxu0 0.0
    %2628 = vmatpush.msra.mxu0 0.0
    %2629 = vmatpush.msra.mxu0 0.0
    %2630 = vmatpush.msra.mxu0 0.0
    %2631 = vmatpush.msra.mxu0 %v2611
    %2632 = vmatpush.msra.mxu0 %v2610
    %2633 = vmatpush.msra.mxu0 %v2609
    %2634 = vmatpush.msra.mxu0 %v2608
    %2635 = vmatmul.f32.gmra.mxu0 %v2614
    %v2636 = vpop.f32.mrf.mxu0
    %v2637 = vadd.f32 %v2612, %v2636
    %2638 = vmatmul.f32.gmra.mxu0 %v2617
    %v2639 = vpop.f32.mrf.mxu0
    %v2640 = vadd.f32 %v2612, %v2639
    %2641 = vdwg.mxu0
    %v2642 = vadd.f32 %v2637, %v1820
    %v2643 = vadd.f32 %v2640, %v1821
    %v2644 = vsel %vm59, %v2642, 0.0
    %2645 = vadd.xlane.f32.xlu0 %v2644
    %v2646 = vpop.xlane.xlu0 %2645
    %v2647 = vsel %vm59, %v2643, 0.0
    %2648 = vadd.xlane.f32.xlu0 %v2647
    %v2649 = vpop.xlane.xlu0 %2648
    %v2650 = vmul.f32 %v2646, %v852
    %v2651 = vmul.f32 %v2649, %v852
    %v2652 = vsub.f32 %v2642, %v2650
    %v2653 = vsub.f32 %v2643, %v2651
    %v2654 = vmul.f32 %v2652, %v2652
    %v2655 = vmul.f32 %v2653, %v2653
    %v2656 = vsel %vm59, %v2654, 0.0
    %2657 = vadd.xlane.f32.xlu0 %v2656
    %v2658 = vpop.xlane.xlu0 %2657
    %v2659 = vsel %vm59, %v2655, 0.0
    %2660 = vadd.xlane.f32.xlu0 %v2659
    %v2661 = vpop.xlane.xlu0 %2660
    %v2662 = vmul.f32 %v2658, %v852
    %v2663 = vmul.f32 %v2661, %v852
    %v2664 = vadd.f32 %v2662, 1e-05
    %v2665 = vadd.f32 %v2663, 1e-05
    %v2666 = vrsqrt.pop %v2664
    %v2667 = vmul.f32 %v2666, %v2664
    %v2668 = vmul.f32 %v2667, %v2666
    %v2669 = vmul.f32 0.5, %v2668
    %v2670 = vsub.f32 1.5, %v2669
    %v2671 = vmul.f32 %v2666, %v2670
    %vm2672 = vweird.f32 %v2664
    %vm2673 = vweird.f32 %v2666
    %vm2674 = vmor %vm2672, %vm2673
    %v2675 = vsel %vm2674, %v2666, %v2671
    %v2676 = vrsqrt.pop %v2665
    %v2677 = vmul.f32 %v2676, %v2665
    %v2678 = vmul.f32 %v2677, %v2676
    %v2679 = vmul.f32 0.5, %v2678
    %v2680 = vsub.f32 1.5, %v2679
    %v2681 = vmul.f32 %v2676, %v2680
    %vm2682 = vweird.f32 %v2665
    %vm2683 = vweird.f32 %v2676
    %vm2684 = vmor %vm2682, %vm2683
    %v2685 = vsel %vm2684, %v2676, %v2681
    %v2686 = vmul.f32 %v2652, %v2675
    %v2687 = vmul.f32 %v2653, %v2685
    %v2688 = vperm.slane %v1894, 0
    %v2689 = vmul.f32 %v2686, %v2688
    %v2690 = vmul.f32 %v2687, %v2688
    %v2691 = vperm.slane %v1894, 1
    %v2692 = vadd.f32 %v2689, %v2691
    %v2693 = vadd.f32 %v2690, %v2691
    %s2694 = scalar_lea.vmem %s5, 32
    %v2695 = vld [vmem:[%s2694] sm:$0xff]
    %v2696 = vld [vmem:[%s2694 + $0x8] sm:$0xff]
    %v2697 = vld [vmem:[%s2694 + $0x10] sm:$0xff]
    %v2698 = vld [vmem:[%s2694 + $0x18] sm:$0xff]
    %v2699 = vperm.slane %v1895, 1
    %v2701 = vsel %vm59, %v2692, 0
    %v2704 = vsel %vm59, %v2693, 0
    %2706 = vmatpush.msra.mxu0 0.0
    %2707 = vmatpush.msra.mxu0 0.0
    %2708 = vmatpush.msra.mxu0 0.0
    %2709 = vmatpush.msra.mxu0 0.0
    %2710 = vmatpush.msra.mxu0 0.0
    %2711 = vmatpush.msra.mxu0 0.0
    %2712 = vmatpush.msra.mxu0 0.0
    %2713 = vmatpush.msra.mxu0 0.0
    %2714 = vmatpush.msra.mxu0 0.0
    %2715 = vmatpush.msra.mxu0 0.0
    %2716 = vmatpush.msra.mxu0 0.0
    %2717 = vmatpush.msra.mxu0 0.0
    %2718 = vmatpush.msra.mxu0 %v2698
    %2719 = vmatpush.msra.mxu0 %v2697
    %2720 = vmatpush.msra.mxu0 %v2696
    %2721 = vmatpush.msra.mxu0 %v2695
    %2722 = vmatmul.f32.gmra.mxu0 %v2701
    %v2723 = vpop.f32.mrf.mxu0
    %v2724 = vadd.f32 %v2699, %v2723
    %2725 = vmatmul.f32.gmra.mxu0 %v2704
    %v2726 = vpop.f32.mrf.mxu0
    %v2727 = vadd.f32 %v2699, %v2726
    %2728 = vdwg.mxu0
    %v2729 = vperm.slane %v1895, 4
    %2731 = vrot.lane.b32.xlu0 %v2729, 64
    %v2732 = vpop.permute.xlu0 %2731
    %v2734 = vadd.f32 %v84, %v2732
    %v2735 = vadd.f32 %v87, %v2732
    %2738 = vrot.lane.b32.xlu0 %v2724, 120
    %v2739 = vpop.permute.xlu0 %2738
    %2740 = vrot.lane.b32.xlu0 %v2727, 120
    %v2741 = vpop.permute.xlu0 %2740
    %2742 = vrot.lane.b32.xlu0 %v2724, 112
    %v2743 = vpop.permute.xlu0 %2742
    %2744 = vrot.lane.b32.xlu0 %v2727, 112
    %v2745 = vpop.permute.xlu0 %2744
    %2746 = vrot.lane.b32.xlu0 %v2724, 104
    %v2747 = vpop.permute.xlu0 %2746
    %2748 = vrot.lane.b32.xlu0 %v2727, 104
    %v2749 = vpop.permute.xlu0 %2748
    %2752 = vrot.lane.b32.xlu0 %v2734, 120
    %v2753 = vpop.permute.xlu0 %2752
    %2754 = vrot.lane.b32.xlu0 %v2735, 120
    %v2755 = vpop.permute.xlu0 %2754
    %2756 = vrot.lane.b32.xlu0 %v2734, 112
    %v2757 = vpop.permute.xlu0 %2756
    %2758 = vrot.lane.b32.xlu0 %v2735, 112
    %v2759 = vpop.permute.xlu0 %2758
    %2760 = vrot.lane.b32.xlu0 %v2734, 104
    %v2761 = vpop.permute.xlu0 %2760
    %2762 = vrot.lane.b32.xlu0 %v2735, 104
    %v2763 = vpop.permute.xlu0 %2762
    %2764 = vrot.lane.b32.xlu0 %v2734, 64
    %v2765 = vpop.permute.xlu0 %2764
    %v2766 = vsel %vm141, %v2724, 0
    %v2768 = vsel %vm141, %v2765, 0
    %2770 = vmatpush.xpose.msra.mxu0 0.0
    %2771 = vmatpush.xpose.msra.mxu0 0.0
    %2772 = vmatpush.xpose.msra.mxu0 0.0
    %2773 = vmatpush.xpose.msra.mxu0 0.0
    %2774 = vmatpush.xpose.msra.mxu0 0.0
    %2775 = vmatpush.xpose.msra.mxu0 0.0
    %2776 = vmatpush.xpose.msra.mxu0 0.0
    %2777 = vmatpush.xpose.msra.mxu0 0.0
    %2778 = vmatpush.xpose.msra.mxu0 0.0
    %2779 = vmatpush.xpose.msra.mxu0 0.0
    %2780 = vmatpush.xpose.msra.mxu0 0.0
    %2781 = vmatpush.xpose.msra.mxu0 0.0
    %2782 = vmatpush.xpose.msra.mxu0 0.0
    %2783 = vmatpush.xpose.msra.mxu0 0.0
    %2784 = vmatpush.xpose.msra.mxu0 0.0
    %2785 = vmatpush.xpose.msra.mxu0 %v2768
    %2786 = vmatmul.f32.gmra.mxu0 %v2766
    %v2787 = vpop.f32.mrf.mxu0
    %v2788 = vadd.f32 0.0, %v2787
    %2789 = vdwg.mxu0
    %2790 = vrot.lane.b32.xlu0 %v2735, 64
    %v2791 = vpop.permute.xlu0 %2790
    %v2792 = vsel %vm141, %v2727, 0
    %v2794 = vsel %vm141, %v2791, 0
    %2796 = vmatpush.xpose.msra.mxu0 0.0
    %2797 = vmatpush.xpose.msra.mxu0 0.0
    %2798 = vmatpush.xpose.msra.mxu0 0.0
    %2799 = vmatpush.xpose.msra.mxu0 0.0
    %2800 = vmatpush.xpose.msra.mxu0 0.0
    %2801 = vmatpush.xpose.msra.mxu0 0.0
    %2802 = vmatpush.xpose.msra.mxu0 0.0
    %2803 = vmatpush.xpose.msra.mxu0 0.0
    %2804 = vmatpush.xpose.msra.mxu0 0.0
    %2805 = vmatpush.xpose.msra.mxu0 0.0
    %2806 = vmatpush.xpose.msra.mxu0 0.0
    %2807 = vmatpush.xpose.msra.mxu0 0.0
    %2808 = vmatpush.xpose.msra.mxu0 0.0
    %2809 = vmatpush.xpose.msra.mxu0 0.0
    %2810 = vmatpush.xpose.msra.mxu0 0.0
    %2811 = vmatpush.xpose.msra.mxu0 %v2794
    %2812 = vmatmul.f32.gmra.mxu0 %v2792
    %v2813 = vpop.f32.mrf.mxu0
    %v2814 = vadd.f32 0.0, %v2813
    %2815 = vdwg.mxu0
    %2816 = vrot.lane.b32.xlu0 %v2753, 64
    %v2817 = vpop.permute.xlu0 %2816
    %v2818 = vsel %vm141, %v2739, 0
    %v2820 = vsel %vm141, %v2817, 0
    %2822 = vmatpush.xpose.msra.mxu0 0.0
    %2823 = vmatpush.xpose.msra.mxu0 0.0
    %2824 = vmatpush.xpose.msra.mxu0 0.0
    %2825 = vmatpush.xpose.msra.mxu0 0.0
    %2826 = vmatpush.xpose.msra.mxu0 0.0
    %2827 = vmatpush.xpose.msra.mxu0 0.0
    %2828 = vmatpush.xpose.msra.mxu0 0.0
    %2829 = vmatpush.xpose.msra.mxu0 0.0
    %2830 = vmatpush.xpose.msra.mxu0 0.0
    %2831 = vmatpush.xpose.msra.mxu0 0.0
    %2832 = vmatpush.xpose.msra.mxu0 0.0
    %2833 = vmatpush.xpose.msra.mxu0 0.0
    %2834 = vmatpush.xpose.msra.mxu0 0.0
    %2835 = vmatpush.xpose.msra.mxu0 0.0
    %2836 = vmatpush.xpose.msra.mxu0 0.0
    %2837 = vmatpush.xpose.msra.mxu0 %v2820
    %2838 = vmatmul.f32.gmra.mxu0 %v2818
    %v2839 = vpop.f32.mrf.mxu0
    %v2840 = vadd.f32 0.0, %v2839
    %2841 = vdwg.mxu0
    %2842 = vrot.lane.b32.xlu0 %v2755, 64
    %v2843 = vpop.permute.xlu0 %2842
    %v2844 = vsel %vm141, %v2741, 0
    %v2846 = vsel %vm141, %v2843, 0
    %2848 = vmatpush.xpose.msra.mxu0 0.0
    %2849 = vmatpush.xpose.msra.mxu0 0.0
    %2850 = vmatpush.xpose.msra.mxu0 0.0
    %2851 = vmatpush.xpose.msra.mxu0 0.0
    %2852 = vmatpush.xpose.msra.mxu0 0.0
    %2853 = vmatpush.xpose.msra.mxu0 0.0
    %2854 = vmatpush.xpose.msra.mxu0 0.0
    %2855 = vmatpush.xpose.msra.mxu0 0.0
    %2856 = vmatpush.xpose.msra.mxu0 0.0
    %2857 = vmatpush.xpose.msra.mxu0 0.0
    %2858 = vmatpush.xpose.msra.mxu0 0.0
    %2859 = vmatpush.xpose.msra.mxu0 0.0
    %2860 = vmatpush.xpose.msra.mxu0 0.0
    %2861 = vmatpush.xpose.msra.mxu0 0.0
    %2862 = vmatpush.xpose.msra.mxu0 0.0
    %2863 = vmatpush.xpose.msra.mxu0 %v2846
    %2864 = vmatmul.f32.gmra.mxu0 %v2844
    %v2865 = vpop.f32.mrf.mxu0
    %v2866 = vadd.f32 0.0, %v2865
    %2867 = vdwg.mxu0
    %2868 = vrot.lane.b32.xlu0 %v2757, 64
    %v2869 = vpop.permute.xlu0 %2868
    %v2870 = vsel %vm141, %v2743, 0
    %v2872 = vsel %vm141, %v2869, 0
    %2874 = vmatpush.xpose.msra.mxu0 0.0
    %2875 = vmatpush.xpose.msra.mxu0 0.0
    %2876 = vmatpush.xpose.msra.mxu0 0.0
    %2877 = vmatpush.xpose.msra.mxu0 0.0
    %2878 = vmatpush.xpose.msra.mxu0 0.0
    %2879 = vmatpush.xpose.msra.mxu0 0.0
    %2880 = vmatpush.xpose.msra.mxu0 0.0
    %2881 = vmatpush.xpose.msra.mxu0 0.0
    %2882 = vmatpush.xpose.msra.mxu0 0.0
    %2883 = vmatpush.xpose.msra.mxu0 0.0
    %2884 = vmatpush.xpose.msra.mxu0 0.0
    %2885 = vmatpush.xpose.msra.mxu0 0.0
    %2886 = vmatpush.xpose.msra.mxu0 0.0
    %2887 = vmatpush.xpose.msra.mxu0 0.0
    %2888 = vmatpush.xpose.msra.mxu0 0.0
    %2889 = vmatpush.xpose.msra.mxu0 %v2872
    %2890 = vmatmul.f32.gmra.mxu0 %v2870
    %v2891 = vpop.f32.mrf.mxu0
    %v2892 = vadd.f32 0.0, %v2891
    %2893 = vdwg.mxu0
    %2894 = vrot.lane.b32.xlu0 %v2759, 64
    %v2895 = vpop.permute.xlu0 %2894
    %v2896 = vsel %vm141, %v2745, 0
    %v2898 = vsel %vm141, %v2895, 0
    %2900 = vmatpush.xpose.msra.mxu0 0.0
    %2901 = vmatpush.xpose.msra.mxu0 0.0
    %2902 = vmatpush.xpose.msra.mxu0 0.0
    %2903 = vmatpush.xpose.msra.mxu0 0.0
    %2904 = vmatpush.xpose.msra.mxu0 0.0
    %2905 = vmatpush.xpose.msra.mxu0 0.0
    %2906 = vmatpush.xpose.msra.mxu0 0.0
    %2907 = vmatpush.xpose.msra.mxu0 0.0
    %2908 = vmatpush.xpose.msra.mxu0 0.0
    %2909 = vmatpush.xpose.msra.mxu0 0.0
    %2910 = vmatpush.xpose.msra.mxu0 0.0
    %2911 = vmatpush.xpose.msra.mxu0 0.0
    %2912 = vmatpush.xpose.msra.mxu0 0.0
    %2913 = vmatpush.xpose.msra.mxu0 0.0
    %2914 = vmatpush.xpose.msra.mxu0 0.0
    %2915 = vmatpush.xpose.msra.mxu0 %v2898
    %2916 = vmatmul.f32.gmra.mxu0 %v2896
    %v2917 = vpop.f32.mrf.mxu0
    %v2918 = vadd.f32 0.0, %v2917
    %2919 = vdwg.mxu0
    %2920 = vrot.lane.b32.xlu0 %v2761, 64
    %v2921 = vpop.permute.xlu0 %2920
    %v2922 = vsel %vm141, %v2747, 0
    %v2924 = vsel %vm141, %v2921, 0
    %2926 = vmatpush.xpose.msra.mxu0 0.0
    %2927 = vmatpush.xpose.msra.mxu0 0.0
    %2928 = vmatpush.xpose.msra.mxu0 0.0
    %2929 = vmatpush.xpose.msra.mxu0 0.0
    %2930 = vmatpush.xpose.msra.mxu0 0.0
    %2931 = vmatpush.xpose.msra.mxu0 0.0
    %2932 = vmatpush.xpose.msra.mxu0 0.0
    %2933 = vmatpush.xpose.msra.mxu0 0.0
    %2934 = vmatpush.xpose.msra.mxu0 0.0
    %2935 = vmatpush.xpose.msra.mxu0 0.0
    %2936 = vmatpush.xpose.msra.mxu0 0.0
    %2937 = vmatpush.xpose.msra.mxu0 0.0
    %2938 = vmatpush.xpose.msra.mxu0 0.0
    %2939 = vmatpush.xpose.msra.mxu0 0.0
    %2940 = vmatpush.xpose.msra.mxu0 0.0
    %2941 = vmatpush.xpose.msra.mxu0 %v2924
    %2942 = vmatmul.f32.gmra.mxu0 %v2922
    %v2943 = vpop.f32.mrf.mxu0
    %v2944 = vadd.f32 0.0, %v2943
    %2945 = vdwg.mxu0
    %2946 = vrot.lane.b32.xlu0 %v2763, 64
    %v2947 = vpop.permute.xlu0 %2946
    %v2948 = vsel %vm141, %v2749, 0
    %v2950 = vsel %vm141, %v2947, 0
    %2952 = vmatpush.xpose.msra.mxu0 0.0
    %2953 = vmatpush.xpose.msra.mxu0 0.0
    %2954 = vmatpush.xpose.msra.mxu0 0.0
    %2955 = vmatpush.xpose.msra.mxu0 0.0
    %2956 = vmatpush.xpose.msra.mxu0 0.0
    %2957 = vmatpush.xpose.msra.mxu0 0.0
    %2958 = vmatpush.xpose.msra.mxu0 0.0
    %2959 = vmatpush.xpose.msra.mxu0 0.0
    %2960 = vmatpush.xpose.msra.mxu0 0.0
    %2961 = vmatpush.xpose.msra.mxu0 0.0
    %2962 = vmatpush.xpose.msra.mxu0 0.0
    %2963 = vmatpush.xpose.msra.mxu0 0.0
    %2964 = vmatpush.xpose.msra.mxu0 0.0
    %2965 = vmatpush.xpose.msra.mxu0 0.0
    %2966 = vmatpush.xpose.msra.mxu0 0.0
    %2967 = vmatpush.xpose.msra.mxu0 %v2950
    %2968 = vmatmul.f32.gmra.mxu0 %v2948
    %v2969 = vpop.f32.mrf.mxu0
    %v2970 = vadd.f32 0.0, %v2969
    %2971 = vdwg.mxu0
    %v2972 = vmul.f32 %v2788, 0.35355338
    %v2973 = vmul.f32 %v2814, 0.35355338
    %v2974 = vmul.f32 %v2840, 0.35355338
    %v2975 = vmul.f32 %v2866, 0.35355338
    %v2976 = vmul.f32 %v2892, 0.35355338
    %v2977 = vmul.f32 %v2918, 0.35355338
    %v2978 = vmul.f32 %v2944, 0.35355338
    %v2979 = vmul.f32 %v2970, 0.35355338
    %v2980 = vmul.f32 %v2972, %v50
    %v2981 = vmul.f32 %v2973, %v51
    %v2982 = vmul.f32 %v2974, %v50
    %v2983 = vmul.f32 %v2975, %v51
    %v2984 = vmul.f32 %v2976, %v50
    %v2985 = vmul.f32 %v2977, %v51
    %v2986 = vmul.f32 %v2978, %v50
    %v2987 = vmul.f32 %v2979, %v51
    %v2988 = vadd.f32 %v2980, %v53
    %v2989 = vadd.f32 %v2981, %v54
    %v2990 = vadd.f32 %v2982, %v53
    %v2991 = vadd.f32 %v2983, %v54
    %v2992 = vadd.f32 %v2984, %v53
    %v2993 = vadd.f32 %v2985, %v54
    %v2994 = vadd.f32 %v2986, %v53
    %v2995 = vadd.f32 %v2987, %v54
    %v2996 = vsel %vm141, %v2988, -inf
    %2997 = vmax.xlane.f32.xlu0 %v2996
    %v2998 = vpop.xlane.xlu0 %2997
    %v2999 = vsel %vm141, %v2989, -inf
    %3000 = vmax.xlane.f32.xlu0 %v2999
    %v3001 = vpop.xlane.xlu0 %3000
    %v3002 = vsel %vm141, %v2990, -inf
    %3003 = vmax.xlane.f32.xlu0 %v3002
    %v3004 = vpop.xlane.xlu0 %3003
    %v3005 = vsel %vm141, %v2991, -inf
    %3006 = vmax.xlane.f32.xlu0 %v3005
    %v3007 = vpop.xlane.xlu0 %3006
    %v3008 = vsel %vm141, %v2992, -inf
    %3009 = vmax.xlane.f32.xlu0 %v3008
    %v3010 = vpop.xlane.xlu0 %3009
    %v3011 = vsel %vm141, %v2993, -inf
    %3012 = vmax.xlane.f32.xlu0 %v3011
    %v3013 = vpop.xlane.xlu0 %3012
    %v3014 = vsel %vm141, %v2994, -inf
    %3015 = vmax.xlane.f32.xlu0 %v3014
    %v3016 = vpop.xlane.xlu0 %3015
    %v3017 = vsel %vm141, %v2995, -inf
    %3018 = vmax.xlane.f32.xlu0 %v3017
    %v3019 = vpop.xlane.xlu0 %3018
    %v3020 = vsub.f32 %v2988, %v2998
    %v3021 = vsub.f32 %v2989, %v3001
    %v3022 = vsub.f32 %v2990, %v3004
    %v3023 = vsub.f32 %v2991, %v3007
    %v3024 = vsub.f32 %v2992, %v3010
    %v3025 = vsub.f32 %v2993, %v3013
    %v3026 = vsub.f32 %v2994, %v3016
    %v3027 = vsub.f32 %v2995, %v3019
    %v3028 = vmul.f32 %v3020, 1.442695
    %v3029 = vpow.pop %v3028
    %v3030 = vmul.f32 %v3021, 1.442695
    %v3031 = vpow.pop %v3030
    %v3032 = vmul.f32 %v3022, 1.442695
    %v3033 = vpow.pop %v3032
    %v3034 = vmul.f32 %v3023, 1.442695
    %v3035 = vpow.pop %v3034
    %v3036 = vmul.f32 %v3024, 1.442695
    %v3037 = vpow.pop %v3036
    %v3038 = vmul.f32 %v3025, 1.442695
    %v3039 = vpow.pop %v3038
    %v3040 = vmul.f32 %v3026, 1.442695
    %v3041 = vpow.pop %v3040
    %v3042 = vmul.f32 %v3027, 1.442695
    %v3043 = vpow.pop %v3042
    %v3044 = vsel %vm141, %v3029, 0.0
    %3045 = vadd.xlane.f32.xlu0 %v3044
    %v3046 = vpop.xlane.xlu0 %3045
    %v3047 = vsel %vm141, %v3031, 0.0
    %3048 = vadd.xlane.f32.xlu0 %v3047
    %v3049 = vpop.xlane.xlu0 %3048
    %v3050 = vsel %vm141, %v3033, 0.0
    %3051 = vadd.xlane.f32.xlu0 %v3050
    %v3052 = vpop.xlane.xlu0 %3051
    %v3053 = vsel %vm141, %v3035, 0.0
    %3054 = vadd.xlane.f32.xlu0 %v3053
    %v3055 = vpop.xlane.xlu0 %3054
    %v3056 = vsel %vm141, %v3037, 0.0
    %3057 = vadd.xlane.f32.xlu0 %v3056
    %v3058 = vpop.xlane.xlu0 %3057
    %v3059 = vsel %vm141, %v3039, 0.0
    %3060 = vadd.xlane.f32.xlu0 %v3059
    %v3061 = vpop.xlane.xlu0 %3060
    %v3062 = vsel %vm141, %v3041, 0.0
    %3063 = vadd.xlane.f32.xlu0 %v3062
    %v3064 = vpop.xlane.xlu0 %3063
    %v3065 = vsel %vm141, %v3043, 0.0
    %3066 = vadd.xlane.f32.xlu0 %v3065
    %v3067 = vpop.xlane.xlu0 %3066
    %v3068 = vrcp.pop %v3046
    %v3069 = vmul.f32 %v3046, %v3068
    %v3070 = vsub.f32 1.0, %v3069
    %v3071 = vmul.f32 %v3068, %v3070
    %v3072 = vadd.f32 %v3068, %v3071
    %vm3073 = vweird.f32 %v3046
    %vm3074 = vweird.f32 %v3068
    %vm3075 = vmor %vm3073, %vm3074
    %v3076 = vsel %vm3075, %v3068, %v3072
    %v3077 = vand.u32 2147483647, %v3046
    %vm3078 = vcmp.eq.f32.partialorder %v3077, 8.507059e+37
    %v3079 = vand.u32 %v3046, 2147483648
    %v3080 = vor.u32 1.1754944e-38, %v3079
    %v3081 = vsel %vm3078, %v3080, %v3076
    %v3082 = vmul.f32 %v3029, %v3081
    %v3083 = vrcp.pop %v3049
    %v3084 = vmul.f32 %v3049, %v3083
    %v3085 = vsub.f32 1.0, %v3084
    %v3086 = vmul.f32 %v3083, %v3085
    %v3087 = vadd.f32 %v3083, %v3086
    %vm3088 = vweird.f32 %v3049
    %vm3089 = vweird.f32 %v3083
    %vm3090 = vmor %vm3088, %vm3089
    %v3091 = vsel %vm3090, %v3083, %v3087
    %v3092 = vand.u32 2147483647, %v3049
    %vm3093 = vcmp.eq.f32.partialorder %v3092, 8.507059e+37
    %v3094 = vand.u32 %v3049, 2147483648
    %v3095 = vor.u32 1.1754944e-38, %v3094
    %v3096 = vsel %vm3093, %v3095, %v3091
    %v3097 = vmul.f32 %v3031, %v3096
    %v3098 = vrcp.pop %v3052
    %v3099 = vmul.f32 %v3052, %v3098
    %v3100 = vsub.f32 1.0, %v3099
    %v3101 = vmul.f32 %v3098, %v3100
    %v3102 = vadd.f32 %v3098, %v3101
    %vm3103 = vweird.f32 %v3052
    %vm3104 = vweird.f32 %v3098
    %vm3105 = vmor %vm3103, %vm3104
    %v3106 = vsel %vm3105, %v3098, %v3102
    %v3107 = vand.u32 2147483647, %v3052
    %vm3108 = vcmp.eq.f32.partialorder %v3107, 8.507059e+37
    %v3109 = vand.u32 %v3052, 2147483648
    %v3110 = vor.u32 1.1754944e-38, %v3109
    %v3111 = vsel %vm3108, %v3110, %v3106
    %v3112 = vmul.f32 %v3033, %v3111
    %v3113 = vrcp.pop %v3055
    %v3114 = vmul.f32 %v3055, %v3113
    %v3115 = vsub.f32 1.0, %v3114
    %v3116 = vmul.f32 %v3113, %v3115
    %v3117 = vadd.f32 %v3113, %v3116
    %vm3118 = vweird.f32 %v3055
    %vm3119 = vweird.f32 %v3113
    %vm3120 = vmor %vm3118, %vm3119
    %v3121 = vsel %vm3120, %v3113, %v3117
    %v3122 = vand.u32 2147483647, %v3055
    %vm3123 = vcmp.eq.f32.partialorder %v3122, 8.507059e+37
    %v3124 = vand.u32 %v3055, 2147483648
    %v3125 = vor.u32 1.1754944e-38, %v3124
    %v3126 = vsel %vm3123, %v3125, %v3121
    %v3127 = vmul.f32 %v3035, %v3126
    %v3128 = vrcp.pop %v3058
    %v3129 = vmul.f32 %v3058, %v3128
    %v3130 = vsub.f32 1.0, %v3129
    %v3131 = vmul.f32 %v3128, %v3130
    %v3132 = vadd.f32 %v3128, %v3131
    %vm3133 = vweird.f32 %v3058
    %vm3134 = vweird.f32 %v3128
    %vm3135 = vmor %vm3133, %vm3134
    %v3136 = vsel %vm3135, %v3128, %v3132
    %v3137 = vand.u32 2147483647, %v3058
    %vm3138 = vcmp.eq.f32.partialorder %v3137, 8.507059e+37
    %v3139 = vand.u32 %v3058, 2147483648
    %v3140 = vor.u32 1.1754944e-38, %v3139
    %v3141 = vsel %vm3138, %v3140, %v3136
    %v3142 = vmul.f32 %v3037, %v3141
    %v3143 = vrcp.pop %v3061
    %v3144 = vmul.f32 %v3061, %v3143
    %v3145 = vsub.f32 1.0, %v3144
    %v3146 = vmul.f32 %v3143, %v3145
    %v3147 = vadd.f32 %v3143, %v3146
    %vm3148 = vweird.f32 %v3061
    %vm3149 = vweird.f32 %v3143
    %vm3150 = vmor %vm3148, %vm3149
    %v3151 = vsel %vm3150, %v3143, %v3147
    %v3152 = vand.u32 2147483647, %v3061
    %vm3153 = vcmp.eq.f32.partialorder %v3152, 8.507059e+37
    %v3154 = vand.u32 %v3061, 2147483648
    %v3155 = vor.u32 1.1754944e-38, %v3154
    %v3156 = vsel %vm3153, %v3155, %v3151
    %v3157 = vmul.f32 %v3039, %v3156
    %v3158 = vrcp.pop %v3064
    %v3159 = vmul.f32 %v3064, %v3158
    %v3160 = vsub.f32 1.0, %v3159
    %v3161 = vmul.f32 %v3158, %v3160
    %v3162 = vadd.f32 %v3158, %v3161
    %vm3163 = vweird.f32 %v3064
    %vm3164 = vweird.f32 %v3158
    %vm3165 = vmor %vm3163, %vm3164
    %v3166 = vsel %vm3165, %v3158, %v3162
    %v3167 = vand.u32 2147483647, %v3064
    %vm3168 = vcmp.eq.f32.partialorder %v3167, 8.507059e+37
    %v3169 = vand.u32 %v3064, 2147483648
    %v3170 = vor.u32 1.1754944e-38, %v3169
    %v3171 = vsel %vm3168, %v3170, %v3166
    %v3172 = vmul.f32 %v3041, %v3171
    %v3173 = vrcp.pop %v3067
    %v3174 = vmul.f32 %v3067, %v3173
    %v3175 = vsub.f32 1.0, %v3174
    %v3176 = vmul.f32 %v3173, %v3175
    %v3177 = vadd.f32 %v3173, %v3176
    %vm3178 = vweird.f32 %v3067
    %vm3179 = vweird.f32 %v3173
    %vm3180 = vmor %vm3178, %vm3179
    %v3181 = vsel %vm3180, %v3173, %v3177
    %v3182 = vand.u32 2147483647, %v3067
    %vm3183 = vcmp.eq.f32.partialorder %v3182, 8.507059e+37
    %v3184 = vand.u32 %v3067, 2147483648
    %v3185 = vor.u32 1.1754944e-38, %v3184
    %v3186 = vsel %vm3183, %v3185, %v3181
    %v3187 = vmul.f32 %v3043, %v3186
    %3188 = vrot.lane.b32.xlu0 %v2734, 32
    %v3189 = vpop.permute.xlu0 %3188
    %v3192 = vsel %vm141, %v3082, 0
    %3194 = vmatpush.msra.mxu0 0.0
    %3195 = vmatpush.msra.mxu0 0.0
    %3196 = vmatpush.msra.mxu0 0.0
    %3197 = vmatpush.msra.mxu0 0.0
    %3198 = vmatpush.msra.mxu0 0.0
    %3199 = vmatpush.msra.mxu0 0.0
    %3200 = vmatpush.msra.mxu0 0.0
    %3201 = vmatpush.msra.mxu0 0.0
    %3202 = vmatpush.msra.mxu0 0.0
    %3203 = vmatpush.msra.mxu0 0.0
    %3204 = vmatpush.msra.mxu0 0.0
    %3205 = vmatpush.msra.mxu0 0.0
    %3206 = vmatpush.msra.mxu0 0.0
    %3207 = vmatpush.msra.mxu0 0.0
    %3208 = vmatpush.msra.mxu0 0.0
    %3209 = vmatpush.msra.mxu0 %v3189
    %3210 = vmatmul.f32.gmra.mxu0 %v3192
    %v3211 = vpop.f32.mrf.mxu0
    %v3212 = vadd.f32 0.0, %v3211
    %3213 = vdwg.mxu0
    %3214 = vrot.lane.b32.xlu0 %v2735, 32
    %v3215 = vpop.permute.xlu0 %3214
    %v3218 = vsel %vm141, %v3097, 0
    %3220 = vmatpush.msra.mxu0 0.0
    %3221 = vmatpush.msra.mxu0 0.0
    %3222 = vmatpush.msra.mxu0 0.0
    %3223 = vmatpush.msra.mxu0 0.0
    %3224 = vmatpush.msra.mxu0 0.0
    %3225 = vmatpush.msra.mxu0 0.0
    %3226 = vmatpush.msra.mxu0 0.0
    %3227 = vmatpush.msra.mxu0 0.0
    %3228 = vmatpush.msra.mxu0 0.0
    %3229 = vmatpush.msra.mxu0 0.0
    %3230 = vmatpush.msra.mxu0 0.0
    %3231 = vmatpush.msra.mxu0 0.0
    %3232 = vmatpush.msra.mxu0 0.0
    %3233 = vmatpush.msra.mxu0 0.0
    %3234 = vmatpush.msra.mxu0 0.0
    %3235 = vmatpush.msra.mxu0 %v3215
    %3236 = vmatmul.f32.gmra.mxu0 %v3218
    %v3237 = vpop.f32.mrf.mxu0
    %v3238 = vadd.f32 0.0, %v3237
    %3239 = vdwg.mxu0
    %3240 = vrot.lane.b32.xlu0 %v2753, 32
    %v3241 = vpop.permute.xlu0 %3240
    %v3244 = vsel %vm141, %v3112, 0
    %3246 = vmatpush.msra.mxu0 0.0
    %3247 = vmatpush.msra.mxu0 0.0
    %3248 = vmatpush.msra.mxu0 0.0
    %3249 = vmatpush.msra.mxu0 0.0
    %3250 = vmatpush.msra.mxu0 0.0
    %3251 = vmatpush.msra.mxu0 0.0
    %3252 = vmatpush.msra.mxu0 0.0
    %3253 = vmatpush.msra.mxu0 0.0
    %3254 = vmatpush.msra.mxu0 0.0
    %3255 = vmatpush.msra.mxu0 0.0
    %3256 = vmatpush.msra.mxu0 0.0
    %3257 = vmatpush.msra.mxu0 0.0
    %3258 = vmatpush.msra.mxu0 0.0
    %3259 = vmatpush.msra.mxu0 0.0
    %3260 = vmatpush.msra.mxu0 0.0
    %3261 = vmatpush.msra.mxu0 %v3241
    %3262 = vmatmul.f32.gmra.mxu0 %v3244
    %v3263 = vpop.f32.mrf.mxu0
    %v3264 = vadd.f32 0.0, %v3263
    %3265 = vdwg.mxu0
    %3266 = vrot.lane.b32.xlu0 %v2755, 32
    %v3267 = vpop.permute.xlu0 %3266
    %v3270 = vsel %vm141, %v3127, 0
    %3272 = vmatpush.msra.mxu0 0.0
    %3273 = vmatpush.msra.mxu0 0.0
    %3274 = vmatpush.msra.mxu0 0.0
    %3275 = vmatpush.msra.mxu0 0.0
    %3276 = vmatpush.msra.mxu0 0.0
    %3277 = vmatpush.msra.mxu0 0.0
    %3278 = vmatpush.msra.mxu0 0.0
    %3279 = vmatpush.msra.mxu0 0.0
    %3280 = vmatpush.msra.mxu0 0.0
    %3281 = vmatpush.msra.mxu0 0.0
    %3282 = vmatpush.msra.mxu0 0.0
    %3283 = vmatpush.msra.mxu0 0.0
    %3284 = vmatpush.msra.mxu0 0.0
    %3285 = vmatpush.msra.mxu0 0.0
    %3286 = vmatpush.msra.mxu0 0.0
    %3287 = vmatpush.msra.mxu0 %v3267
    %3288 = vmatmul.f32.gmra.mxu0 %v3270
    %v3289 = vpop.f32.mrf.mxu0
    %v3290 = vadd.f32 0.0, %v3289
    %3291 = vdwg.mxu0
    %3292 = vrot.lane.b32.xlu0 %v2757, 32
    %v3293 = vpop.permute.xlu0 %3292
    %v3296 = vsel %vm141, %v3142, 0
    %3298 = vmatpush.msra.mxu0 0.0
    %3299 = vmatpush.msra.mxu0 0.0
    %3300 = vmatpush.msra.mxu0 0.0
    %3301 = vmatpush.msra.mxu0 0.0
    %3302 = vmatpush.msra.mxu0 0.0
    %3303 = vmatpush.msra.mxu0 0.0
    %3304 = vmatpush.msra.mxu0 0.0
    %3305 = vmatpush.msra.mxu0 0.0
    %3306 = vmatpush.msra.mxu0 0.0
    %3307 = vmatpush.msra.mxu0 0.0
    %3308 = vmatpush.msra.mxu0 0.0
    %3309 = vmatpush.msra.mxu0 0.0
    %3310 = vmatpush.msra.mxu0 0.0
    %3311 = vmatpush.msra.mxu0 0.0
    %3312 = vmatpush.msra.mxu0 0.0
    %3313 = vmatpush.msra.mxu0 %v3293
    %3314 = vmatmul.f32.gmra.mxu0 %v3296
    %v3315 = vpop.f32.mrf.mxu0
    %v3316 = vadd.f32 0.0, %v3315
    %3317 = vdwg.mxu0
    %3318 = vrot.lane.b32.xlu0 %v2759, 32
    %v3319 = vpop.permute.xlu0 %3318
    %v3322 = vsel %vm141, %v3157, 0
    %3324 = vmatpush.msra.mxu0 0.0
    %3325 = vmatpush.msra.mxu0 0.0
    %3326 = vmatpush.msra.mxu0 0.0
    %3327 = vmatpush.msra.mxu0 0.0
    %3328 = vmatpush.msra.mxu0 0.0
    %3329 = vmatpush.msra.mxu0 0.0
    %3330 = vmatpush.msra.mxu0 0.0
    %3331 = vmatpush.msra.mxu0 0.0
    %3332 = vmatpush.msra.mxu0 0.0
    %3333 = vmatpush.msra.mxu0 0.0
    %3334 = vmatpush.msra.mxu0 0.0
    %3335 = vmatpush.msra.mxu0 0.0
    %3336 = vmatpush.msra.mxu0 0.0
    %3337 = vmatpush.msra.mxu0 0.0
    %3338 = vmatpush.msra.mxu0 0.0
    %3339 = vmatpush.msra.mxu0 %v3319
    %3340 = vmatmul.f32.gmra.mxu0 %v3322
    %v3341 = vpop.f32.mrf.mxu0
    %v3342 = vadd.f32 0.0, %v3341
    %3343 = vdwg.mxu0
    %3344 = vrot.lane.b32.xlu0 %v2761, 32
    %v3345 = vpop.permute.xlu0 %3344
    %v3348 = vsel %vm141, %v3172, 0
    %3350 = vmatpush.msra.mxu0 0.0
    %3351 = vmatpush.msra.mxu0 0.0
    %3352 = vmatpush.msra.mxu0 0.0
    %3353 = vmatpush.msra.mxu0 0.0
    %3354 = vmatpush.msra.mxu0 0.0
    %3355 = vmatpush.msra.mxu0 0.0
    %3356 = vmatpush.msra.mxu0 0.0
    %3357 = vmatpush.msra.mxu0 0.0
    %3358 = vmatpush.msra.mxu0 0.0
    %3359 = vmatpush.msra.mxu0 0.0
    %3360 = vmatpush.msra.mxu0 0.0
    %3361 = vmatpush.msra.mxu0 0.0
    %3362 = vmatpush.msra.mxu0 0.0
    %3363 = vmatpush.msra.mxu0 0.0
    %3364 = vmatpush.msra.mxu0 0.0
    %3365 = vmatpush.msra.mxu0 %v3345
    %3366 = vmatmul.f32.gmra.mxu0 %v3348
    %v3367 = vpop.f32.mrf.mxu0
    %v3368 = vadd.f32 0.0, %v3367
    %3369 = vdwg.mxu0
    %3370 = vrot.lane.b32.xlu0 %v2763, 32
    %v3371 = vpop.permute.xlu0 %3370
    %v3374 = vsel %vm141, %v3187, 0
    %3376 = vmatpush.msra.mxu0 0.0
    %3377 = vmatpush.msra.mxu0 0.0
    %3378 = vmatpush.msra.mxu0 0.0
    %3379 = vmatpush.msra.mxu0 0.0
    %3380 = vmatpush.msra.mxu0 0.0
    %3381 = vmatpush.msra.mxu0 0.0
    %3382 = vmatpush.msra.mxu0 0.0
    %3383 = vmatpush.msra.mxu0 0.0
    %3384 = vmatpush.msra.mxu0 0.0
    %3385 = vmatpush.msra.mxu0 0.0
    %3386 = vmatpush.msra.mxu0 0.0
    %3387 = vmatpush.msra.mxu0 0.0
    %3388 = vmatpush.msra.mxu0 0.0
    %3389 = vmatpush.msra.mxu0 0.0
    %3390 = vmatpush.msra.mxu0 0.0
    %3391 = vmatpush.msra.mxu0 %v3371
    %3392 = vmatmul.f32.gmra.mxu0 %v3374
    %v3393 = vpop.f32.mrf.mxu0
    %v3394 = vadd.f32 0.0, %v3393
    %3395 = vdwg.mxu0
    %3398 = vrot.lane.b32.xlu0 %v3264, 8
    %v3399 = vpop.permute.xlu0 %3398
    %3400 = vrot.lane.b32.xlu0 %v3290, 8
    %v3401 = vpop.permute.xlu0 %3400
    %3406 = vrot.lane.b32.xlu0 %v3316, 16
    %v3407 = vpop.permute.xlu0 %3406
    %3408 = vrot.lane.b32.xlu0 %v3342, 16
    %v3409 = vpop.permute.xlu0 %3408
    %3414 = vrot.lane.b32.xlu0 %v3368, 24
    %v3415 = vpop.permute.xlu0 %3414
    %3416 = vrot.lane.b32.xlu0 %v3394, 24
    %v3417 = vpop.permute.xlu0 %3416
    %v3420 = vsel %vm141, %v3212, %v3399
    %v3421 = vsel %vm141, %v3238, %v3401
    %v3422 = vsel %vm798, %v3420, %v3407
    %v3423 = vsel %vm798, %v3421, %v3409
    %v3424 = vsel %vm801, %v3422, %v3415
    %v3425 = vsel %vm801, %v3423, %v3417
    %s3426 = scalar_lea.vmem %s7, 96
    %v3427 = vld [vmem:[%s3426] sm:$0xff]
    %v3428 = vld [vmem:[%s3426 + $0x8] sm:$0xff]
    %v3429 = vld [vmem:[%s3426 + $0x10] sm:$0xff]
    %v3430 = vld [vmem:[%s3426 + $0x18] sm:$0xff]
    %v3431 = vperm.slane %v1894, 7
    %v3433 = vsel %vm59, %v3424, 0
    %v3436 = vsel %vm59, %v3425, 0
    %3438 = vmatpush.msra.mxu0 0.0
    %3439 = vmatpush.msra.mxu0 0.0
    %3440 = vmatpush.msra.mxu0 0.0
    %3441 = vmatpush.msra.mxu0 0.0
    %3442 = vmatpush.msra.mxu0 0.0
    %3443 = vmatpush.msra.mxu0 0.0
    %3444 = vmatpush.msra.mxu0 0.0
    %3445 = vmatpush.msra.mxu0 0.0
    %3446 = vmatpush.msra.mxu0 0.0
    %3447 = vmatpush.msra.mxu0 0.0
    %3448 = vmatpush.msra.mxu0 0.0
    %3449 = vmatpush.msra.mxu0 0.0
    %3450 = vmatpush.msra.mxu0 %v3430
    %3451 = vmatpush.msra.mxu0 %v3429
    %3452 = vmatpush.msra.mxu0 %v3428
    %3453 = vmatpush.msra.mxu0 %v3427
    %3454 = vmatmul.f32.gmra.mxu0 %v3433
    %v3455 = vpop.f32.mrf.mxu0
    %v3456 = vadd.f32 %v3431, %v3455
    %3457 = vmatmul.f32.gmra.mxu0 %v3436
    %v3458 = vpop.f32.mrf.mxu0
    %v3459 = vadd.f32 %v3431, %v3458
    %3460 = vdwg.mxu0
    %v3461 = vadd.f32 %v3456, %v2692
    %v3462 = vadd.f32 %v3459, %v2693
    %v3463 = vsel %vm59, %v3461, 0.0
    %3464 = vadd.xlane.f32.xlu0 %v3463
    %v3465 = vpop.xlane.xlu0 %3464
    %v3466 = vsel %vm59, %v3462, 0.0
    %3467 = vadd.xlane.f32.xlu0 %v3466
    %v3468 = vpop.xlane.xlu0 %3467
    %v3469 = vmul.f32 %v3465, %v852
    %v3470 = vmul.f32 %v3468, %v852
    %v3471 = vsub.f32 %v3461, %v3469
    %v3472 = vsub.f32 %v3462, %v3470
    %v3473 = vmul.f32 %v3471, %v3471
    %v3474 = vmul.f32 %v3472, %v3472
    %v3475 = vsel %vm59, %v3473, 0.0
    %3476 = vadd.xlane.f32.xlu0 %v3475
    %v3477 = vpop.xlane.xlu0 %3476
    %v3478 = vsel %vm59, %v3474, 0.0
    %3479 = vadd.xlane.f32.xlu0 %v3478
    %v3480 = vpop.xlane.xlu0 %3479
    %v3481 = vmul.f32 %v3477, %v852
    %v3482 = vmul.f32 %v3480, %v852
    %v3483 = vadd.f32 %v3481, 1e-05
    %v3484 = vadd.f32 %v3482, 1e-05
    %v3485 = vrsqrt.pop %v3483
    %v3486 = vmul.f32 %v3485, %v3483
    %v3487 = vmul.f32 %v3486, %v3485
    %v3488 = vmul.f32 0.5, %v3487
    %v3489 = vsub.f32 1.5, %v3488
    %v3490 = vmul.f32 %v3485, %v3489
    %vm3491 = vweird.f32 %v3483
    %vm3492 = vweird.f32 %v3485
    %vm3493 = vmor %vm3491, %vm3492
    %v3494 = vsel %vm3493, %v3485, %v3490
    %v3495 = vrsqrt.pop %v3484
    %v3496 = vmul.f32 %v3495, %v3484
    %v3497 = vmul.f32 %v3496, %v3495
    %v3498 = vmul.f32 0.5, %v3497
    %v3499 = vsub.f32 1.5, %v3498
    %v3500 = vmul.f32 %v3495, %v3499
    %vm3501 = vweird.f32 %v3484
    %vm3502 = vweird.f32 %v3495
    %vm3503 = vmor %vm3501, %vm3502
    %v3504 = vsel %vm3503, %v3495, %v3500
    %v3505 = vmul.f32 %v3471, %v3494
    %v3506 = vmul.f32 %v3472, %v3504
    %v3507 = vperm.slane %v1894, 2
    %v3508 = vmul.f32 %v3505, %v3507
    %v3509 = vmul.f32 %v3506, %v3507
    %v3510 = vperm.slane %v1894, 3
    %v3511 = vadd.f32 %v3508, %v3510
    %v3512 = vadd.f32 %v3509, %v3510
    %s3513 = scalar_lea.vmem %s8, 32
    %v3514 = vld [vmem:[%s3513] sm:$0xff]
    %v3515 = vld [vmem:[%s3513 + $0x8] sm:$0xff]
    %v3516 = vld [vmem:[%s3513 + $0x10] sm:$0xff]
    %v3517 = vld [vmem:[%s3513 + $0x18] sm:$0xff]
    %v3518 = vperm.slane %v1895, 2
    %v3520 = vsel %vm59, %v3511, 0
    %v3523 = vsel %vm59, %v3512, 0
    %3525 = vmatpush.msra.mxu0 0.0
    %3526 = vmatpush.msra.mxu0 0.0
    %3527 = vmatpush.msra.mxu0 0.0
    %3528 = vmatpush.msra.mxu0 0.0
    %3529 = vmatpush.msra.mxu0 0.0
    %3530 = vmatpush.msra.mxu0 0.0
    %3531 = vmatpush.msra.mxu0 0.0
    %3532 = vmatpush.msra.mxu0 0.0
    %3533 = vmatpush.msra.mxu0 0.0
    %3534 = vmatpush.msra.mxu0 0.0
    %3535 = vmatpush.msra.mxu0 0.0
    %3536 = vmatpush.msra.mxu0 0.0
    %3537 = vmatpush.msra.mxu0 %v3517
    %3538 = vmatpush.msra.mxu0 %v3516
    %3539 = vmatpush.msra.mxu0 %v3515
    %3540 = vmatpush.msra.mxu0 %v3514
    %3541 = vmatmul.f32.gmra.mxu0 %v3520
    %v3542 = vpop.f32.mrf.mxu0
    %v3543 = vadd.f32 %v3518, %v3542
    %3544 = vmatmul.f32.gmra.mxu0 %v3523
    %v3545 = vpop.f32.mrf.mxu0
    %v3546 = vadd.f32 %v3518, %v3545
    %3547 = vdwg.mxu0
    %v3548 = vmax.f32 %v3543, 0.0
    %v3549 = vmax.f32 %v3546, 0.0
    %s3550 = scalar_lea.vmem %s9, 64
    %v3551 = vld [vmem:[%s3550] sm:$0xff]
    %v3552 = vld [vmem:[%s3550 + $0x8] sm:$0xff]
    %v3553 = vld [vmem:[%s3550 + $0x10] sm:$0xff]
    %v3554 = vld [vmem:[%s3550 + $0x18] sm:$0xff]
    %v3555 = vld [vmem:[%s3550 + $0x20] sm:$0xff]
    %v3556 = vld [vmem:[%s3550 + $0x28] sm:$0xff]
    %v3557 = vld [vmem:[%s3550 + $0x30] sm:$0xff]
    %v3558 = vld [vmem:[%s3550 + $0x38] sm:$0xff]
    %v3559 = vperm.slane %v1895, 3
    %v3561 = vsel %vm1740, %v3548, 0
    %v3564 = vsel %vm1740, %v3549, 0
    %3566 = vmatpush.msra.mxu0 0.0
    %3567 = vmatpush.msra.mxu0 0.0
    %3568 = vmatpush.msra.mxu0 0.0
    %3569 = vmatpush.msra.mxu0 0.0
    %3570 = vmatpush.msra.mxu0 0.0
    %3571 = vmatpush.msra.mxu0 0.0
    %3572 = vmatpush.msra.mxu0 0.0
    %3573 = vmatpush.msra.mxu0 0.0
    %3574 = vmatpush.msra.mxu0 %v3558
    %3575 = vmatpush.msra.mxu0 %v3557
    %3576 = vmatpush.msra.mxu0 %v3556
    %3577 = vmatpush.msra.mxu0 %v3555
    %3578 = vmatpush.msra.mxu0 %v3554
    %3579 = vmatpush.msra.mxu0 %v3553
    %3580 = vmatpush.msra.mxu0 %v3552
    %3581 = vmatpush.msra.mxu0 %v3551
    %3582 = vmatmul.f32.gmra.mxu0 %v3561
    %v3583 = vpop.f32.mrf.mxu0
    %v3584 = vadd.f32 %v3559, %v3583
    %3585 = vmatmul.f32.gmra.mxu0 %v3564
    %v3586 = vpop.f32.mrf.mxu0
    %v3587 = vadd.f32 %v3559, %v3586
    %3588 = vdwg.mxu0
    %v3589 = vadd.f32 %v3584, %v3511
    %v3590 = vadd.f32 %v3587, %v3512
    %v3591 = vsel %vm59, %v3589, 0.0
    %3592 = vadd.xlane.f32.xlu0 %v3591
    %v3593 = vpop.xlane.xlu0 %3592
    %v3594 = vsel %vm59, %v3590, 0.0
    %3595 = vadd.xlane.f32.xlu0 %v3594
    %v3596 = vpop.xlane.xlu0 %3595
    %v3597 = vmul.f32 %v3593, %v852
    %v3598 = vmul.f32 %v3596, %v852
    %v3599 = vsub.f32 %v3589, %v3597
    %v3600 = vsub.f32 %v3590, %v3598
    %v3601 = vmul.f32 %v3599, %v3599
    %v3602 = vmul.f32 %v3600, %v3600
    %v3603 = vsel %vm59, %v3601, 0.0
    %3604 = vadd.xlane.f32.xlu0 %v3603
    %v3605 = vpop.xlane.xlu0 %3604
    %v3606 = vsel %vm59, %v3602, 0.0
    %3607 = vadd.xlane.f32.xlu0 %v3606
    %v3608 = vpop.xlane.xlu0 %3607
    %v3609 = vmul.f32 %v3605, %v852
    %v3610 = vmul.f32 %v3608, %v852
    %v3611 = vadd.f32 %v3609, 1e-05
    %v3612 = vadd.f32 %v3610, 1e-05
    %v3613 = vrsqrt.pop %v3611
    %v3614 = vmul.f32 %v3613, %v3611
    %v3615 = vmul.f32 %v3614, %v3613
    %v3616 = vmul.f32 0.5, %v3615
    %v3617 = vsub.f32 1.5, %v3616
    %v3618 = vmul.f32 %v3613, %v3617
    %vm3619 = vweird.f32 %v3611
    %vm3620 = vweird.f32 %v3613
    %vm3621 = vmor %vm3619, %vm3620
    %v3622 = vsel %vm3621, %v3613, %v3618
    %v3623 = vrsqrt.pop %v3612
    %v3624 = vmul.f32 %v3623, %v3612
    %v3625 = vmul.f32 %v3624, %v3623
    %v3626 = vmul.f32 0.5, %v3625
    %v3627 = vsub.f32 1.5, %v3626
    %v3628 = vmul.f32 %v3623, %v3627
    %vm3629 = vweird.f32 %v3612
    %vm3630 = vweird.f32 %v3623
    %vm3631 = vmor %vm3629, %vm3630
    %v3632 = vsel %vm3631, %v3623, %v3628
    %v3633 = vmul.f32 %v3599, %v3622
    %v3634 = vmul.f32 %v3600, %v3632
    %v3635 = vperm.slane %v1894, 4
    %v3636 = vmul.f32 %v3633, %v3635
    %v3637 = vmul.f32 %v3634, %v3635
    %v3638 = vperm.slane %v1894, 5
    %v3639 = vadd.f32 %v3636, %v3638
    %v3640 = vadd.f32 %v3637, %v3638
    %3641 = vrot.lane.b32.xlu0 %v2278, 8
    %v3642 = vpop.permute.xlu0 %3641
    %3644 = vrot.lane.b32.xlu0 %v2293, 16
    %v3645 = vpop.permute.xlu0 %3644
    %3647 = vrot.lane.b32.xlu0 %v2308, 24
    %v3648 = vpop.permute.xlu0 %3647
    %3650 = vrot.lane.b32.xlu0 %v2323, 32
    %v3651 = vpop.permute.xlu0 %3650
    %3653 = vrot.lane.b32.xlu0 %v2338, 40
    %v3654 = vpop.permute.xlu0 %3653
    %3656 = vrot.lane.b32.xlu0 %v2353, 48
    %v3657 = vpop.permute.xlu0 %3656
    %3659 = vrot.lane.b32.xlu0 %v2368, 56
    %v3660 = vpop.permute.xlu0 %3659
    %3662 = vrot.lane.b32.xlu0 %v3082, 64
    %v3663 = vpop.permute.xlu0 %3662
    %3665 = vrot.lane.b32.xlu0 %v3097, 72
    %v3666 = vpop.permute.xlu0 %3665
    %3668 = vrot.lane.b32.xlu0 %v3112, 80
    %v3669 = vpop.permute.xlu0 %3668
    %3671 = vrot.lane.b32.xlu0 %v3127, 88
    %v3672 = vpop.permute.xlu0 %3671
    %3674 = vrot.lane.b32.xlu0 %v3142, 96
    %v3675 = vpop.permute.xlu0 %3674
    %3677 = vrot.lane.b32.xlu0 %v3157, 104
    %v3678 = vpop.permute.xlu0 %3677
    %3680 = vrot.lane.b32.xlu0 %v3172, 112
    %v3681 = vpop.permute.xlu0 %3680
    %3683 = vrot.lane.b32.xlu0 %v3187, 120
    %v3684 = vpop.permute.xlu0 %3683
    %v3686 = vsel %vm141, %v2263, %v3642
    %v3687 = vsel %vm798, %v3686, %v3645
    %v3688 = vsel %vm801, %v3687, %v3648
    %v3689 = vsel %vm59, %v3688, %v3651
    %v3690 = vsel %vm1871, %v3689, %v3654
    %v3691 = vsel %vm1873, %v3690, %v3657
    %v3692 = vsel %vm1875, %v3691, %v3660
    %v3693 = vsel %vm1740, %v3692, %v3663
    %v3694 = vsel %vm1878, %v3693, %v3666
    %v3695 = vsel %vm1880, %v3694, %v3669
    %v3696 = vsel %vm1882, %v3695, %v3672
    %v3697 = vsel %vm1884, %v3696, %v3675
    %v3698 = vsel %vm1886, %v3697, %v3678
    %v3699 = vsel %vm1888, %v3698, %v3681
    %v3700 = vsel %vm1890, %v3699, %v3684
    %s3701 = scalar_lea.vmem %s12, 8
    %3702 = vst [vmem:[%s3701] sm:$0xff] %v3700
    %3703 = vst.msk [vmem:[#allocation2] sm:$0xff] %vm59, %v3639
    %3704 = vst.msk [vmem:[#allocation2 + $0x8] sm:$0xff] %vm59, %v3640
    // Predicated region
    $region46: #{decoder_forward.1} parent=1 // pred_check
      _
    $region47: #{decoder_forward.1} parent=1 // pred_check_branch
      %3706 = sbr.rel (0) target = $region49
    $region48: #{decoder_forward.1} parent=1 // pred_region
      %3708 = vsyncadd [#allocation3], 0
      %s3709 = sshll.u32 [#allocation2], 4
      %s3710 = int_to_ptr.vmem [resolvable:$true] %s3709
      %s3711 = sshll.u32 %s11, 4
      %s3712 = int_to_ptr.hbm [resolvable:$true] %s3711
      %3717 = dma.vmem_to_hbm [thread:$0]  %s3710, 256, %s3712, [#allocation3], 128, 128, 8
    $region49: #{decoder_forward.1} parent=1 // pred_fallthru
      _
    // Predicated region
    $region50: #{decoder_forward.1} parent=1 // pred_check
      _
    $region51: #{decoder_forward.1} parent=1 // pred_check_branch
      %3719 = sbr.rel (0) target = $region53
    $region52: #{decoder_forward.1} parent=1 // pred_region
      _
    $region53: #{decoder_forward.1} parent=1 // pred_fallthru
      _
    // Predicated region
    $region54: #{decoder_forward.1} parent=1 // pred_check
      _
    $region55: #{decoder_forward.1} parent=1 // pred_check_branch
      %3721 = sbr.rel (0) target = $region57
    $region56: #{decoder_forward.1} parent=1 // pred_region
      %3723 = dma.done [#allocation3], 256
    $region57: #{decoder_forward.1} parent=1 // pred_fallthru
      _
    // Predicated region
    $region58: #{decoder_forward.1} parent=1 // pred_check
      _
    $region59: #{decoder_forward.1} parent=1 // pred_check_branch
      %3725 = sbr.rel (0) target = $region61
    $region60: #{decoder_forward.1} parent=1 // pred_region
      _
    $region61: #{decoder_forward.1} parent=1 // pred_fallthru
      _
    %3726 = vsyncpa [#allocation3], 1

</llo_original>
